<compile_context>
chip_gen: v7x
topology: tpu7x:2x2x1
jax: 0.10.0
libtpu: 0.0.40
codegen_flags: <defaults>
</compile_context>

<pallas_src>
import functools
import math

import numpy as np
import jax
import jax.numpy as jnp
from jax.experimental import pallas as pl
from jax.experimental.pallas import tpu as pltpu

_SLOPE = 0.01                     # nn.LeakyReLU default negative_slope
_WEIGHT_DTYPE = jnp.bfloat16      # MXU operand dtype (accumulation is f32)


def _leaky(v):
    return jnp.where(v >= 0, v, _SLOPE * v)


def _round_up(x, m):
    return ((x + m - 1) // m) * m


# ----------------------------------------------------------------------------
# The fused kernel: one grid step == NB images.
# Row layout: h-major within the step (row = h*NB + image).  Lane layout:
# W * C, channel-minor (matches the Toeplitz weight packing).
# ----------------------------------------------------------------------------
def _encoder_kernel(x_ref,                               # [16*NB, 32] bf16
                    m1_ref, b1_ref,                      # [7,32,320], [1,320]
                    m2_ref, b2_ref,                      # [5,320,384], [1,384]
                    m3_ref, b3_ref,                      # [3,384,64], [1,64]
                    m4_ref, b4_ref,                      # [64,4], [1,4]
                    wl_ref, bl_ref,                      # [16,16], [1,16]
                    o_ref,                               # [NB, 16]
                    *, nb):
    wdt = m1_ref.dtype
    x = x_ref[...]                                               # bf16 already

    # ---- conv1: 2 -> 32, k=7, 16x16 -> 10x10 --------------------------------
    acc = jnp.zeros((10 * nb, 320), jnp.float32)
    for ki in range(7):
        acc = acc + jnp.dot(x[ki * nb:(ki + 10) * nb, :], m1_ref[ki],
                            preferred_element_type=jnp.float32)
    h1 = _leaky(acc + b1_ref[...]).astype(wdt)                   # [10*NB, 320]

    # ---- conv2: 32 -> 64, k=5, 10x10 -> 6x6 ---------------------------------
    acc = jnp.zeros((6 * nb, 384), jnp.float32)
    for ki in range(5):
        acc = acc + jnp.dot(h1[ki * nb:(ki + 6) * nb, :], m2_ref[ki],
                            preferred_element_type=jnp.float32)
    h2 = _leaky(acc + b2_ref[...]).astype(wdt)                   # [6*NB, 384]

    # ---- conv3: 64 -> 16, k=3, 6x6 -> 4x4 -----------------------------------
    acc = jnp.zeros((4 * nb, 64), jnp.float32)
    for ki in range(3):
        acc = acc + jnp.dot(h2[ki * nb:(ki + 4) * nb, :], m3_ref[ki],
                            preferred_element_type=jnp.float32)
    h3 = _leaky(acc + b3_ref[...]).astype(wdt)                   # [4*NB, 64]

    # ---- conv4: 16 -> 1, 1x1 (folded channel reduction) ---------------------
    z = _leaky(jnp.dot(h3, m4_ref[...], preferred_element_type=jnp.float32)
               + b4_ref[...]).astype(wdt)                        # [4*NB, 4]

    # ---- flatten (row-major h, w) + Linear(16, 16) ---------------------------
    # With the h-major layout, the rows for a given h are a contiguous [NB, 4]
    # block, so the linear is 4 batched dots — no gather / reshape needed.
    wl = wl_ref[...]                                             # [16, 16] bf16
    y = bl_ref[...]                                              # [1, 16]  f32
    for h in range(4):
        y = y + jnp.dot(z[h * nb:(h + 1) * nb, :], wl[4 * h:4 * h + 4, :],
                        preferred_element_type=jnp.float32)
    o_ref[...] = y.astype(o_ref.dtype)                           # [NB, 16]


def _encoder_pallas(x3, p, nb):
    """x3: [steps*16*nb, 32] bf16 (h-major per step) -> [steps*nb, 16] f32."""
    steps = x3.shape[0] // (16 * nb)
    c3 = lambda i: (0, 0, 0)
    c2 = lambda i: (0, 0)
    return pl.pallas_call(
        functools.partial(_encoder_kernel, nb=nb),
        out_shape=jax.ShapeDtypeStruct((steps * nb, 16), jnp.float32),
        grid=(steps,),
        in_specs=[
            pl.BlockSpec((16 * nb, 32), lambda i: (i, 0)),   # NB images / step
            pl.BlockSpec((7, 32, 320), c3),                  # M1 (resident)
            pl.BlockSpec((1, 320), c2),                      # b1
            pl.BlockSpec((5, 320, 384), c3),                 # M2
            pl.BlockSpec((1, 384), c2),                      # b2
            pl.BlockSpec((3, 384, 64), c3),                  # M3
            pl.BlockSpec((1, 64), c2),                       # b3
            pl.BlockSpec((64, 4), c2),                       # M4
            pl.BlockSpec((1, 4), c2),                        # b4
            pl.BlockSpec((16, 16), c2),                      # Wl^T
            pl.BlockSpec((1, 16), c2),                       # bl
        ],
        out_specs=pl.BlockSpec((nb, 16), lambda i: (i, 0)),  # dense [NB,16] store
        compiler_params=pltpu.CompilerParams(
            dimension_semantics=("parallel",)),              # shard steps over TCs
    )(x3, p["M1"], p["b1"], p["M2"], p["b2"], p["M3"], p["b3"],
      p["M4"], p["b4"], p["WlT"], p["bl"])


# ----------------------------------------------------------------------------
# Parameter construction (PyTorch-default-style uniform init) + one-time packing
# ----------------------------------------------------------------------------
def init_encoder_params(key):
    def u(k, shape, fan_in):
        bound = 1.0 / math.sqrt(fan_in)
        return jax.random.uniform(k, shape, jnp.float32, -bound, bound)
    ks = jax.random.split(key, 10)
    return {
        "w1": u(ks[0], (32, 2, 7, 7), 2 * 7 * 7),   "b1": u(ks[1], (32,), 2 * 7 * 7),
        "w2": u(ks[2], (64, 32, 5, 5), 32 * 5 * 5), "b2": u(ks[3], (64,), 32 * 5 * 5),
        "w3": u(ks[4], (16, 64, 3, 3), 64 * 3 * 3), "b3": u(ks[5], (16,), 64 * 3 * 3),
        "w4": u(ks[6], (1, 16, 1, 1), 16),          "b4": u(ks[7], (1,), 16),
        "wl": u(ks[8], (16, 16), 16),               "bl": u(ks[9], (16,), 16),
    }


def _toeplitz_weight(w, w_in):
    """w: [Cout, Cin, k, k] -> M: [k, W_in*Cin, OW*Cout] with
    M[ki, wj*Cin+ci, ow*Cout+co] = w[co, ci, ki, wj-ow] for 0 <= wj-ow < k."""
    w = np.asarray(w, np.float32)
    cout, cin, k, _ = w.shape
    ow_n = w_in - k + 1
    m = np.zeros((k, w_in * cin, ow_n * cout), np.float32)
    for ki in range(k):
        for ow in range(ow_n):
            for kj in range(k):
                wj = ow + kj
                m[ki, wj * cin:(wj + 1) * cin, ow * cout:(ow + 1) * cout] = \
                    w[:, :, ki, kj].T
    return m


def _bias_row(b, ow_n):
    return np.tile(np.asarray(b, np.float32), ow_n)[None, :]     # [1, OW*Cout]


def pack_encoder_params(params, weight_dtype=_WEIGHT_DTYPE):
    """One-time weight prep (outside the hot path): width-Toeplitz conv
    matrices (lane axis = OW*Cout) cast to bf16, row-broadcast biases in f32."""
    p = {k: np.asarray(v) for k, v in params.items()}
    packed = {
        "M1": _toeplitz_weight(p["w1"], 16),   "b1": _bias_row(p["b1"], 10),
        "M2": _toeplitz_weight(p["w2"], 10),   "b2": _bias_row(p["b2"], 6),
        "M3": _toeplitz_weight(p["w3"], 6),    "b3": _bias_row(p["b3"], 4),
        "M4": _toeplitz_weight(p["w4"], 4)[0], "b4": _bias_row(p["b4"], 4),
        "WlT": p["wl"].T.copy(),               "bl": p["bl"][None, :].astype(np.float32),
    }
    out = {}
    for k, v in packed.items():
        mat = k.startswith("M") or k == "WlT"
        out[k] = jnp.asarray(v, weight_dtype if mat else jnp.float32)
    return out


# ----------------------------------------------------------------------------
# Encoder forward
# ----------------------------------------------------------------------------
def encoder_forward(H, packed_params, subcarrier_group, max_images_per_step=32):
    """H: [B, Subcarrier, 2, 16, 16] -> [B, G, 16], G = Subcarrier/group."""
    B = H.shape[0]
    x = H[:, ::subcarrier_group]                              # [B, G, 2, 16, 16]
    G = x.shape[1]
    BG = B * G
    x = x.reshape(BG, 2, 16, 16)

    # NCHW -> (b, h, w*c) channel-minor, bf16 (input-only layout glue).
    x2 = jnp.transpose(x, (0, 2, 3, 1)).reshape(BG, 16, 32).astype(jnp.bfloat16)

    # Batch NB images per grid step (NB multiple of 8); pad BG up if needed.
    # (For v7x, pick max_images_per_step so BG/NB is a multiple of 2 TCs.)
    nb = min(max_images_per_step, _round_up(BG, 8))
    bg_pad = _round_up(BG, nb)
    if bg_pad != BG:
        x2 = jnp.concatenate(
            [x2, jnp.zeros((bg_pad - BG, 16, 32), x2.dtype)], axis=0)
    steps = bg_pad // nb

    # h-major within each step: [steps, NB, 16, 32] -> [steps, 16, NB, 32]
    x3 = (x2.reshape(steps, nb, 16, 32)
            .transpose(0, 2, 1, 3)
            .reshape(steps * 16 * nb, 32))

    y = _encoder_pallas(x3, packed_params, nb)                # [bg_pad, 16]
    return y[:BG].reshape(B, G, 16)


# ----------------------------------------------------------------------------
# Pure-JAX f32 reference (for an in-script sanity check)
# ----------------------------------------------------------------------------
def _reference_forward(H, raw, subcarrier_group):
    B = H.shape[0]
    x = H[:, ::subcarrier_group]
    G = x.shape[1]
    x = x.reshape(B * G, 2, 16, 16)

    def conv(x, w, b):
        y = jax.lax.conv_general_dilated(
            x, w, window_strides=(1, 1), padding="VALID",
            dimension_numbers=("NCHW", "OIHW", "NCHW"))
        y = y + b[None, :, None, None]
        return jnp.where(y >= 0, y, _SLOPE * y)

    x = conv(x, raw["w1"], raw["b1"])
    x = conv(x, raw["w2"], raw["b2"])
    x = conv(x, raw["w3"], raw["b3"])
    x = conv(x, raw["w4"], raw["b4"])
    x = x.reshape(B, G, 16)
    return jnp.einsum("bgi,ji->bgj", x, raw["wl"]) + raw["bl"]


if __name__ == "__main__":
    B = 2
    Subcarrier = 8
    Subcarrier_group = 4          # -> G = 2 pilot subcarrier groups
    feedback_bit = 64             # unused in forward (matches reference module)

    key = jax.random.PRNGKey(0)
    k_param, k_input = jax.random.split(key)
    raw_params = init_encoder_params(k_param)
    packed_params = pack_encoder_params(raw_params)

    H = jax.random.normal(k_input, (B, Subcarrier, 2, 16, 16), jnp.float32)

    fwd = jax.jit(functools.partial(encoder_forward,
                                    subcarrier_group=Subcarrier_group))
    out = jax.block_until_ready(fwd(H, packed_params))

    assert out.shape == (B, Subcarrier // Subcarrier_group, 16), out.shape
    assert bool(jnp.all(jnp.isfinite(out)))

    # Numerical sanity check vs. pure-JAX f32 reference.  MXU operands are
    # intentionally bf16 (f32 accumulation), so the tolerance is bf16-level.
    ref = np.asarray(_reference_forward(H, raw_params, Subcarrier_group))
    max_err = float(np.max(np.abs(np.asarray(out) - ref)))
    assert np.allclose(np.asarray(out), ref, rtol=5e-2, atol=2e-2), max_err

    print("KERNEL_OK")
</pallas_src>

<mosaic_0001>
module attributes {stable_mosaic.version = 11 : i64} {
  func.func @_encoder_kernel(%arg0: i32, %arg1: memref<128x32xbf16, #tpu.memory_space<vmem>>, %arg2: memref<7x32x320xbf16, #tpu.memory_space<vmem>>, %arg3: memref<1x320xf32, #tpu.memory_space<vmem>>, %arg4: memref<5x320x384xbf16, #tpu.memory_space<vmem>>, %arg5: memref<1x384xf32, #tpu.memory_space<vmem>>, %arg6: memref<3x384x64xbf16, #tpu.memory_space<vmem>>, %arg7: memref<1x64xf32, #tpu.memory_space<vmem>>, %arg8: memref<64x4xbf16, #tpu.memory_space<vmem>>, %arg9: memref<1x4xf32, #tpu.memory_space<vmem>>, %arg10: memref<16x16xbf16, #tpu.memory_space<vmem>>, %arg11: memref<1x16xf32, #tpu.memory_space<vmem>>, %arg12: memref<8x16xf32, #tpu.memory_space<vmem>>) attributes {dimension_semantics = [#tpu.dimension_semantics<parallel>], iteration_bounds = array<i64: 1>, scalar_prefetch = 0 : i64, scratch_operands = 0 : i64, tpu.core_type = #tpu.core_type<tc>, window_params = [{transform_indices = @transform_0, window_bounds = array<i64: 128, 32>}, {pipeline_mode = #tpu.pipeline_mode<synchronous>, transform_indices = @transform_1, window_bounds = array<i64: 7, 32, 320>}, {pipeline_mode = #tpu.pipeline_mode<synchronous>, transform_indices = @transform_2, window_bounds = array<i64: 1, 320>}, {pipeline_mode = #tpu.pipeline_mode<synchronous>, transform_indices = @transform_3, window_bounds = array<i64: 5, 320, 384>}, {pipeline_mode = #tpu.pipeline_mode<synchronous>, transform_indices = @transform_4, window_bounds = array<i64: 1, 384>}, {pipeline_mode = #tpu.pipeline_mode<synchronous>, transform_indices = @transform_5, window_bounds = array<i64: 3, 384, 64>}, {pipeline_mode = #tpu.pipeline_mode<synchronous>, transform_indices = @transform_6, window_bounds = array<i64: 1, 64>}, {pipeline_mode = #tpu.pipeline_mode<synchronous>, transform_indices = @transform_7, window_bounds = array<i64: 64, 4>}, {pipeline_mode = #tpu.pipeline_mode<synchronous>, transform_indices = @transform_8, window_bounds = array<i64: 1, 4>}, {pipeline_mode = #tpu.pipeline_mode<synchronous>, transform_indices = @transform_9, window_bounds = array<i64: 16, 16>}, {pipeline_mode = #tpu.pipeline_mode<synchronous>, transform_indices = @transform_10, window_bounds = array<i64: 1, 16>}, {transform_indices = @transform_11, window_bounds = array<i64: 8, 16>}]} {
    %c0 = arith.constant 0 : index
    %c0_0 = arith.constant 0 : index
    %0 = vector.load %arg1[%c0, %c0_0] : memref<128x32xbf16, #tpu.memory_space<vmem>>, vector<128x32xbf16>
    %cst = arith.constant 0.000000e+00 : f32
    %1 = vector.broadcast %cst : f32 to vector<80x320xf32>
    %2 = vector.extract_strided_slice %0 {offsets = [0, 0], sizes = [80, 32], strides = [1, 1]} : vector<128x32xbf16> to vector<80x32xbf16>
    %c0_1 = arith.constant 0 : index
    %c0_2 = arith.constant 0 : index
    %c0_3 = arith.constant 0 : index
    %3 = vector.load %arg2[%c0_1, %c0_2, %c0_3] : memref<7x32x320xbf16, #tpu.memory_space<vmem>>, vector<1x32x320xbf16>
    %4 = vector.shape_cast %3 : vector<1x32x320xbf16> to vector<32x320xbf16>
    %cst_4 = arith.constant dense<0.000000e+00> : vector<80x320xf32>
    %5 = tpu.matmul %2, %4, %cst_4 {dimension_numbers = #tpu.dot_dimension_numbers<[1], [0], [0], [1], [0, 0, 1, 1], [], []>} : vector<80x32xbf16>, vector<32x320xbf16>, vector<80x320xf32> -> vector<80x320xf32>
    %6 = arith.addf %1, %5 : vector<80x320xf32>
    %7 = vector.extract_strided_slice %0 {offsets = [8, 0], sizes = [80, 32], strides = [1, 1]} : vector<128x32xbf16> to vector<80x32xbf16>
    %c1 = arith.constant 1 : index
    %c0_5 = arith.constant 0 : index
    %c0_6 = arith.constant 0 : index
    %8 = vector.load %arg2[%c1, %c0_5, %c0_6] : memref<7x32x320xbf16, #tpu.memory_space<vmem>>, vector<1x32x320xbf16>
    %9 = vector.shape_cast %8 : vector<1x32x320xbf16> to vector<32x320xbf16>
    %cst_7 = arith.constant dense<0.000000e+00> : vector<80x320xf32>
    %10 = tpu.matmul %7, %9, %cst_7 {dimension_numbers = #tpu.dot_dimension_numbers<[1], [0], [0], [1], [0, 0, 1, 1], [], []>} : vector<80x32xbf16>, vector<32x320xbf16>, vector<80x320xf32> -> vector<80x320xf32>
    %11 = arith.addf %6, %10 : vector<80x320xf32>
    %12 = vector.extract_strided_slice %0 {offsets = [16, 0], sizes = [80, 32], strides = [1, 1]} : vector<128x32xbf16> to vector<80x32xbf16>
    %c2 = arith.constant 2 : index
    %c0_8 = arith.constant 0 : index
    %c0_9 = arith.constant 0 : index
    %13 = vector.load %arg2[%c2, %c0_8, %c0_9] : memref<7x32x320xbf16, #tpu.memory_space<vmem>>, vector<1x32x320xbf16>
    %14 = vector.shape_cast %13 : vector<1x32x320xbf16> to vector<32x320xbf16>
    %cst_10 = arith.constant dense<0.000000e+00> : vector<80x320xf32>
    %15 = tpu.matmul %12, %14, %cst_10 {dimension_numbers = #tpu.dot_dimension_numbers<[1], [0], [0], [1], [0, 0, 1, 1], [], []>} : vector<80x32xbf16>, vector<32x320xbf16>, vector<80x320xf32> -> vector<80x320xf32>
    %16 = arith.addf %11, %15 : vector<80x320xf32>
    %17 = vector.extract_strided_slice %0 {offsets = [24, 0], sizes = [80, 32], strides = [1, 1]} : vector<128x32xbf16> to vector<80x32xbf16>
    %c3 = arith.constant 3 : index
    %c0_11 = arith.constant 0 : index
    %c0_12 = arith.constant 0 : index
    %18 = vector.load %arg2[%c3, %c0_11, %c0_12] : memref<7x32x320xbf16, #tpu.memory_space<vmem>>, vector<1x32x320xbf16>
    %19 = vector.shape_cast %18 : vector<1x32x320xbf16> to vector<32x320xbf16>
    %cst_13 = arith.constant dense<0.000000e+00> : vector<80x320xf32>
    %20 = tpu.matmul %17, %19, %cst_13 {dimension_numbers = #tpu.dot_dimension_numbers<[1], [0], [0], [1], [0, 0, 1, 1], [], []>} : vector<80x32xbf16>, vector<32x320xbf16>, vector<80x320xf32> -> vector<80x320xf32>
    %21 = arith.addf %16, %20 : vector<80x320xf32>
    %22 = vector.extract_strided_slice %0 {offsets = [32, 0], sizes = [80, 32], strides = [1, 1]} : vector<128x32xbf16> to vector<80x32xbf16>
    %c4 = arith.constant 4 : index
    %c0_14 = arith.constant 0 : index
    %c0_15 = arith.constant 0 : index
    %23 = vector.load %arg2[%c4, %c0_14, %c0_15] : memref<7x32x320xbf16, #tpu.memory_space<vmem>>, vector<1x32x320xbf16>
    %24 = vector.shape_cast %23 : vector<1x32x320xbf16> to vector<32x320xbf16>
    %cst_16 = arith.constant dense<0.000000e+00> : vector<80x320xf32>
    %25 = tpu.matmul %22, %24, %cst_16 {dimension_numbers = #tpu.dot_dimension_numbers<[1], [0], [0], [1], [0, 0, 1, 1], [], []>} : vector<80x32xbf16>, vector<32x320xbf16>, vector<80x320xf32> -> vector<80x320xf32>
    %26 = arith.addf %21, %25 : vector<80x320xf32>
    %27 = vector.extract_strided_slice %0 {offsets = [40, 0], sizes = [80, 32], strides = [1, 1]} : vector<128x32xbf16> to vector<80x32xbf16>
    %c5 = arith.constant 5 : index
    %c0_17 = arith.constant 0 : index
    %c0_18 = arith.constant 0 : index
    %28 = vector.load %arg2[%c5, %c0_17, %c0_18] : memref<7x32x320xbf16, #tpu.memory_space<vmem>>, vector<1x32x320xbf16>
    %29 = vector.shape_cast %28 : vector<1x32x320xbf16> to vector<32x320xbf16>
    %cst_19 = arith.constant dense<0.000000e+00> : vector<80x320xf32>
    %30 = tpu.matmul %27, %29, %cst_19 {dimension_numbers = #tpu.dot_dimension_numbers<[1], [0], [0], [1], [0, 0, 1, 1], [], []>} : vector<80x32xbf16>, vector<32x320xbf16>, vector<80x320xf32> -> vector<80x320xf32>
    %31 = arith.addf %26, %30 : vector<80x320xf32>
    %32 = vector.extract_strided_slice %0 {offsets = [48, 0], sizes = [80, 32], strides = [1, 1]} : vector<128x32xbf16> to vector<80x32xbf16>
    %c6 = arith.constant 6 : index
    %c0_20 = arith.constant 0 : index
    %c0_21 = arith.constant 0 : index
    %33 = vector.load %arg2[%c6, %c0_20, %c0_21] : memref<7x32x320xbf16, #tpu.memory_space<vmem>>, vector<1x32x320xbf16>
    %34 = vector.shape_cast %33 : vector<1x32x320xbf16> to vector<32x320xbf16>
    %cst_22 = arith.constant dense<0.000000e+00> : vector<80x320xf32>
    %35 = tpu.matmul %32, %34, %cst_22 {dimension_numbers = #tpu.dot_dimension_numbers<[1], [0], [0], [1], [0, 0, 1, 1], [], []>} : vector<80x32xbf16>, vector<32x320xbf16>, vector<80x320xf32> -> vector<80x320xf32>
    %36 = arith.addf %31, %35 : vector<80x320xf32>
    %c0_23 = arith.constant 0 : index
    %c0_24 = arith.constant 0 : index
    %37 = vector.load %arg3[%c0_23, %c0_24] : memref<1x320xf32, #tpu.memory_space<vmem>>, vector<1x320xf32>
    %38 = vector.broadcast %37 : vector<1x320xf32> to vector<80x320xf32>
    %39 = arith.addf %36, %38 : vector<80x320xf32>
    %cst_25 = arith.constant 0.000000e+00 : f32
    %40 = vector.broadcast %cst_25 : f32 to vector<80x320xf32>
    %41 = arith.cmpf oge, %39, %40 : vector<80x320xf32>
    %cst_26 = arith.constant 0.00999999977 : f32
    %42 = vector.broadcast %cst_26 : f32 to vector<80x320xf32>
    %43 = arith.mulf %42, %39 : vector<80x320xf32>
    %44 = arith.select %41, %39, %43 : vector<80x320xi1>, vector<80x320xf32>
    %45 = arith.truncf %44 : vector<80x320xf32> to vector<80x320xbf16>
    %cst_27 = arith.constant 0.000000e+00 : f32
    %46 = vector.broadcast %cst_27 : f32 to vector<48x384xf32>
    %47 = vector.extract_strided_slice %45 {offsets = [0, 0], sizes = [48, 320], strides = [1, 1]} : vector<80x320xbf16> to vector<48x320xbf16>
    %c0_28 = arith.constant 0 : index
    %c0_29 = arith.constant 0 : index
    %c0_30 = arith.constant 0 : index
    %48 = vector.load %arg4[%c0_28, %c0_29, %c0_30] : memref<5x320x384xbf16, #tpu.memory_space<vmem>>, vector<1x320x384xbf16>
    %49 = vector.shape_cast %48 : vector<1x320x384xbf16> to vector<320x384xbf16>
    %cst_31 = arith.constant dense<0.000000e+00> : vector<48x384xf32>
    %50 = tpu.matmul %47, %49, %cst_31 {dimension_numbers = #tpu.dot_dimension_numbers<[1], [0], [0], [1], [0, 0, 1, 1], [], []>} : vector<48x320xbf16>, vector<320x384xbf16>, vector<48x384xf32> -> vector<48x384xf32>
    %51 = arith.addf %46, %50 : vector<48x384xf32>
    %52 = vector.extract_strided_slice %45 {offsets = [8, 0], sizes = [48, 320], strides = [1, 1]} : vector<80x320xbf16> to vector<48x320xbf16>
    %c1_32 = arith.constant 1 : index
    %c0_33 = arith.constant 0 : index
    %c0_34 = arith.constant 0 : index
    %53 = vector.load %arg4[%c1_32, %c0_33, %c0_34] : memref<5x320x384xbf16, #tpu.memory_space<vmem>>, vector<1x320x384xbf16>
    %54 = vector.shape_cast %53 : vector<1x320x384xbf16> to vector<320x384xbf16>
    %cst_35 = arith.constant dense<0.000000e+00> : vector<48x384xf32>
    %55 = tpu.matmul %52, %54, %cst_35 {dimension_numbers = #tpu.dot_dimension_numbers<[1], [0], [0], [1], [0, 0, 1, 1], [], []>} : vector<48x320xbf16>, vector<320x384xbf16>, vector<48x384xf32> -> vector<48x384xf32>
    %56 = arith.addf %51, %55 : vector<48x384xf32>
    %57 = vector.extract_strided_slice %45 {offsets = [16, 0], sizes = [48, 320], strides = [1, 1]} : vector<80x320xbf16> to vector<48x320xbf16>
    %c2_36 = arith.constant 2 : index
    %c0_37 = arith.constant 0 : index
    %c0_38 = arith.constant 0 : index
    %58 = vector.load %arg4[%c2_36, %c0_37, %c0_38] : memref<5x320x384xbf16, #tpu.memory_space<vmem>>, vector<1x320x384xbf16>
    %59 = vector.shape_cast %58 : vector<1x320x384xbf16> to vector<320x384xbf16>
    %cst_39 = arith.constant dense<0.000000e+00> : vector<48x384xf32>
    %60 = tpu.matmul %57, %59, %cst_39 {dimension_numbers = #tpu.dot_dimension_numbers<[1], [0], [0], [1], [0, 0, 1, 1], [], []>} : vector<48x320xbf16>, vector<320x384xbf16>, vector<48x384xf32> -> vector<48x384xf32>
    %61 = arith.addf %56, %60 : vector<48x384xf32>
    %62 = vector.extract_strided_slice %45 {offsets = [24, 0], sizes = [48, 320], strides = [1, 1]} : vector<80x320xbf16> to vector<48x320xbf16>
    %c3_40 = arith.constant 3 : index
    %c0_41 = arith.constant 0 : index
    %c0_42 = arith.constant 0 : index
    %63 = vector.load %arg4[%c3_40, %c0_41, %c0_42] : memref<5x320x384xbf16, #tpu.memory_space<vmem>>, vector<1x320x384xbf16>
    %64 = vector.shape_cast %63 : vector<1x320x384xbf16> to vector<320x384xbf16>
    %cst_43 = arith.constant dense<0.000000e+00> : vector<48x384xf32>
    %65 = tpu.matmul %62, %64, %cst_43 {dimension_numbers = #tpu.dot_dimension_numbers<[1], [0], [0], [1], [0, 0, 1, 1], [], []>} : vector<48x320xbf16>, vector<320x384xbf16>, vector<48x384xf32> -> vector<48x384xf32>
    %66 = arith.addf %61, %65 : vector<48x384xf32>
    %67 = vector.extract_strided_slice %45 {offsets = [32, 0], sizes = [48, 320], strides = [1, 1]} : vector<80x320xbf16> to vector<48x320xbf16>
    %c4_44 = arith.constant 4 : index
    %c0_45 = arith.constant 0 : index
    %c0_46 = arith.constant 0 : index
    %68 = vector.load %arg4[%c4_44, %c0_45, %c0_46] : memref<5x320x384xbf16, #tpu.memory_space<vmem>>, vector<1x320x384xbf16>
    %69 = vector.shape_cast %68 : vector<1x320x384xbf16> to vector<320x384xbf16>
    %cst_47 = arith.constant dense<0.000000e+00> : vector<48x384xf32>
    %70 = tpu.matmul %67, %69, %cst_47 {dimension_numbers = #tpu.dot_dimension_numbers<[1], [0], [0], [1], [0, 0, 1, 1], [], []>} : vector<48x320xbf16>, vector<320x384xbf16>, vector<48x384xf32> -> vector<48x384xf32>
    %71 = arith.addf %66, %70 : vector<48x384xf32>
    %c0_48 = arith.constant 0 : index
    %c0_49 = arith.constant 0 : index
    %72 = vector.load %arg5[%c0_48, %c0_49] : memref<1x384xf32, #tpu.memory_space<vmem>>, vector<1x384xf32>
    %73 = vector.broadcast %72 : vector<1x384xf32> to vector<48x384xf32>
    %74 = arith.addf %71, %73 : vector<48x384xf32>
    %cst_50 = arith.constant 0.000000e+00 : f32
    %75 = vector.broadcast %cst_50 : f32 to vector<48x384xf32>
    %76 = arith.cmpf oge, %74, %75 : vector<48x384xf32>
    %cst_51 = arith.constant 0.00999999977 : f32
    %77 = vector.broadcast %cst_51 : f32 to vector<48x384xf32>
    %78 = arith.mulf %77, %74 : vector<48x384xf32>
    %79 = arith.select %76, %74, %78 : vector<48x384xi1>, vector<48x384xf32>
    %80 = arith.truncf %79 : vector<48x384xf32> to vector<48x384xbf16>
    %cst_52 = arith.constant 0.000000e+00 : f32
    %81 = vector.broadcast %cst_52 : f32 to vector<32x64xf32>
    %82 = vector.extract_strided_slice %80 {offsets = [0, 0], sizes = [32, 384], strides = [1, 1]} : vector<48x384xbf16> to vector<32x384xbf16>
    %c0_53 = arith.constant 0 : index
    %c0_54 = arith.constant 0 : index
    %c0_55 = arith.constant 0 : index
    %83 = vector.load %arg6[%c0_53, %c0_54, %c0_55] : memref<3x384x64xbf16, #tpu.memory_space<vmem>>, vector<1x384x64xbf16>
    %84 = vector.shape_cast %83 : vector<1x384x64xbf16> to vector<384x64xbf16>
    %cst_56 = arith.constant dense<0.000000e+00> : vector<32x64xf32>
    %85 = tpu.matmul %82, %84, %cst_56 {dimension_numbers = #tpu.dot_dimension_numbers<[1], [0], [0], [1], [0, 0, 1, 1], [], []>} : vector<32x384xbf16>, vector<384x64xbf16>, vector<32x64xf32> -> vector<32x64xf32>
    %86 = arith.addf %81, %85 : vector<32x64xf32>
    %87 = vector.extract_strided_slice %80 {offsets = [8, 0], sizes = [32, 384], strides = [1, 1]} : vector<48x384xbf16> to vector<32x384xbf16>
    %c1_57 = arith.constant 1 : index
    %c0_58 = arith.constant 0 : index
    %c0_59 = arith.constant 0 : index
    %88 = vector.load %arg6[%c1_57, %c0_58, %c0_59] : memref<3x384x64xbf16, #tpu.memory_space<vmem>>, vector<1x384x64xbf16>
    %89 = vector.shape_cast %88 : vector<1x384x64xbf16> to vector<384x64xbf16>
    %cst_60 = arith.constant dense<0.000000e+00> : vector<32x64xf32>
    %90 = tpu.matmul %87, %89, %cst_60 {dimension_numbers = #tpu.dot_dimension_numbers<[1], [0], [0], [1], [0, 0, 1, 1], [], []>} : vector<32x384xbf16>, vector<384x64xbf16>, vector<32x64xf32> -> vector<32x64xf32>
    %91 = arith.addf %86, %90 : vector<32x64xf32>
    %92 = vector.extract_strided_slice %80 {offsets = [16, 0], sizes = [32, 384], strides = [1, 1]} : vector<48x384xbf16> to vector<32x384xbf16>
    %c2_61 = arith.constant 2 : index
    %c0_62 = arith.constant 0 : index
    %c0_63 = arith.constant 0 : index
    %93 = vector.load %arg6[%c2_61, %c0_62, %c0_63] : memref<3x384x64xbf16, #tpu.memory_space<vmem>>, vector<1x384x64xbf16>
    %94 = vector.shape_cast %93 : vector<1x384x64xbf16> to vector<384x64xbf16>
    %cst_64 = arith.constant dense<0.000000e+00> : vector<32x64xf32>
    %95 = tpu.matmul %92, %94, %cst_64 {dimension_numbers = #tpu.dot_dimension_numbers<[1], [0], [0], [1], [0, 0, 1, 1], [], []>} : vector<32x384xbf16>, vector<384x64xbf16>, vector<32x64xf32> -> vector<32x64xf32>
    %96 = arith.addf %91, %95 : vector<32x64xf32>
    %c0_65 = arith.constant 0 : index
    %c0_66 = arith.constant 0 : index
    %97 = vector.load %arg7[%c0_65, %c0_66] : memref<1x64xf32, #tpu.memory_space<vmem>>, vector<1x64xf32>
    %98 = vector.broadcast %97 : vector<1x64xf32> to vector<32x64xf32>
    %99 = arith.addf %96, %98 : vector<32x64xf32>
    %cst_67 = arith.constant 0.000000e+00 : f32
    %100 = vector.broadcast %cst_67 : f32 to vector<32x64xf32>
    %101 = arith.cmpf oge, %99, %100 : vector<32x64xf32>
    %cst_68 = arith.constant 0.00999999977 : f32
    %102 = vector.broadcast %cst_68 : f32 to vector<32x64xf32>
    %103 = arith.mulf %102, %99 : vector<32x64xf32>
    %104 = arith.select %101, %99, %103 : vector<32x64xi1>, vector<32x64xf32>
    %105 = arith.truncf %104 : vector<32x64xf32> to vector<32x64xbf16>
    %c0_69 = arith.constant 0 : index
    %c0_70 = arith.constant 0 : index
    %106 = vector.load %arg8[%c0_69, %c0_70] : memref<64x4xbf16, #tpu.memory_space<vmem>>, vector<64x4xbf16>
    %cst_71 = arith.constant dense<0.000000e+00> : vector<32x4xf32>
    %107 = tpu.matmul %105, %106, %cst_71 {dimension_numbers = #tpu.dot_dimension_numbers<[1], [0], [0], [1], [0, 0, 1, 1], [], []>} : vector<32x64xbf16>, vector<64x4xbf16>, vector<32x4xf32> -> vector<32x4xf32>
    %c0_72 = arith.constant 0 : index
    %c0_73 = arith.constant 0 : index
    %108 = vector.load %arg9[%c0_72, %c0_73] : memref<1x4xf32, #tpu.memory_space<vmem>>, vector<1x4xf32>
    %109 = vector.broadcast %108 : vector<1x4xf32> to vector<32x4xf32>
    %110 = arith.addf %107, %109 : vector<32x4xf32>
    %cst_74 = arith.constant 0.000000e+00 : f32
    %111 = vector.broadcast %cst_74 : f32 to vector<32x4xf32>
    %112 = arith.cmpf oge, %110, %111 : vector<32x4xf32>
    %cst_75 = arith.constant 0.00999999977 : f32
    %113 = vector.broadcast %cst_75 : f32 to vector<32x4xf32>
    %114 = arith.mulf %113, %110 : vector<32x4xf32>
    %115 = arith.select %112, %110, %114 : vector<32x4xi1>, vector<32x4xf32>
    %116 = arith.truncf %115 : vector<32x4xf32> to vector<32x4xbf16>
    %c0_76 = arith.constant 0 : index
    %c0_77 = arith.constant 0 : index
    %117 = vector.load %arg10[%c0_76, %c0_77] : memref<16x16xbf16, #tpu.memory_space<vmem>>, vector<16x16xbf16>
    %c0_78 = arith.constant 0 : index
    %c0_79 = arith.constant 0 : index
    %118 = vector.load %arg11[%c0_78, %c0_79] : memref<1x16xf32, #tpu.memory_space<vmem>>, vector<1x16xf32>
    %119 = vector.extract_strided_slice %116 {offsets = [0, 0], sizes = [8, 4], strides = [1, 1]} : vector<32x4xbf16> to vector<8x4xbf16>
    %120 = vector.extract_strided_slice %117 {offsets = [0, 0], sizes = [4, 16], strides = [1, 1]} : vector<16x16xbf16> to vector<4x16xbf16>
    %cst_80 = arith.constant dense<0.000000e+00> : vector<8x16xf32>
    %121 = tpu.matmul %119, %120, %cst_80 {dimension_numbers = #tpu.dot_dimension_numbers<[1], [0], [0], [1], [0, 0, 1, 1], [], []>} : vector<8x4xbf16>, vector<4x16xbf16>, vector<8x16xf32> -> vector<8x16xf32>
    %122 = vector.broadcast %118 : vector<1x16xf32> to vector<8x16xf32>
    %123 = arith.addf %122, %121 : vector<8x16xf32>
    %124 = vector.extract_strided_slice %116 {offsets = [8, 0], sizes = [8, 4], strides = [1, 1]} : vector<32x4xbf16> to vector<8x4xbf16>
    %125 = vector.extract_strided_slice %117 {offsets = [4, 0], sizes = [4, 16], strides = [1, 1]} : vector<16x16xbf16> to vector<4x16xbf16>
    %cst_81 = arith.constant dense<0.000000e+00> : vector<8x16xf32>
    %126 = tpu.matmul %124, %125, %cst_81 {dimension_numbers = #tpu.dot_dimension_numbers<[1], [0], [0], [1], [0, 0, 1, 1], [], []>} : vector<8x4xbf16>, vector<4x16xbf16>, vector<8x16xf32> -> vector<8x16xf32>
    %127 = arith.addf %123, %126 : vector<8x16xf32>
    %128 = vector.extract_strided_slice %116 {offsets = [16, 0], sizes = [8, 4], strides = [1, 1]} : vector<32x4xbf16> to vector<8x4xbf16>
    %129 = vector.extract_strided_slice %117 {offsets = [8, 0], sizes = [4, 16], strides = [1, 1]} : vector<16x16xbf16> to vector<4x16xbf16>
    %cst_82 = arith.constant dense<0.000000e+00> : vector<8x16xf32>
    %130 = tpu.matmul %128, %129, %cst_82 {dimension_numbers = #tpu.dot_dimension_numbers<[1], [0], [0], [1], [0, 0, 1, 1], [], []>} : vector<8x4xbf16>, vector<4x16xbf16>, vector<8x16xf32> -> vector<8x16xf32>
    %131 = arith.addf %127, %130 : vector<8x16xf32>
    %132 = vector.extract_strided_slice %116 {offsets = [24, 0], sizes = [8, 4], strides = [1, 1]} : vector<32x4xbf16> to vector<8x4xbf16>
    %133 = vector.extract_strided_slice %117 {offsets = [12, 0], sizes = [4, 16], strides = [1, 1]} : vector<16x16xbf16> to vector<4x16xbf16>
    %cst_83 = arith.constant dense<0.000000e+00> : vector<8x16xf32>
    %134 = tpu.matmul %132, %133, %cst_83 {dimension_numbers = #tpu.dot_dimension_numbers<[1], [0], [0], [1], [0, 0, 1, 1], [], []>} : vector<8x4xbf16>, vector<4x16xbf16>, vector<8x16xf32> -> vector<8x16xf32>
    %135 = arith.addf %131, %134 : vector<8x16xf32>
    %c0_84 = arith.constant 0 : index
    %c0_85 = arith.constant 0 : index
    %136 = vector.load %arg12[%c0_84, %c0_85] : memref<8x16xf32, #tpu.memory_space<vmem>>, vector<8x16xf32>
    tpu.vector_store %arg12[%c0_84, %c0_85], %135 {strides = array<i32>} : memref<8x16xf32, #tpu.memory_space<vmem>>, vector<8x16xf32>,
    return
  }
  func.func @transform_0(%arg0: i32) -> (i32, i32) {
    %c0_i32 = arith.constant 0 : i32
    %c0_i32_0 = arith.constant 0 : i32
    return %arg0, %c0_i32 : i32, i32
  }
  func.func @transform_1(%arg0: i32) -> (i32, i32, i32) {
    %c0_i32 = arith.constant 0 : i32
    %c0_i32_0 = arith.constant 0 : i32
    %c0_i32_1 = arith.constant 0 : i32
    %c0_i32_2 = arith.constant 0 : i32
    return %c0_i32, %c0_i32_0, %c0_i32_1 : i32, i32, i32
  }
  func.func @transform_2(%arg0: i32) -> (i32, i32) {
    %c0_i32 = arith.constant 0 : i32
    %c0_i32_0 = arith.constant 0 : i32
    %c0_i32_1 = arith.constant 0 : i32
    return %c0_i32, %c0_i32_0 : i32, i32
  }
  func.func @transform_3(%arg0: i32) -> (i32, i32, i32) {
    %c0_i32 = arith.constant 0 : i32
    %c0_i32_0 = arith.constant 0 : i32
    %c0_i32_1 = arith.constant 0 : i32
    %c0_i32_2 = arith.constant 0 : i32
    return %c0_i32, %c0_i32_0, %c0_i32_1 : i32, i32, i32
  }
  func.func @transform_4(%arg0: i32) -> (i32, i32) {
    %c0_i32 = arith.constant 0 : i32
    %c0_i32_0 = arith.constant 0 : i32
    %c0_i32_1 = arith.constant 0 : i32
    return %c0_i32, %c0_i32_0 : i32, i32
  }
  func.func @transform_5(%arg0: i32) -> (i32, i32, i32) {
    %c0_i32 = arith.constant 0 : i32
    %c0_i32_0 = arith.constant 0 : i32
    %c0_i32_1 = arith.constant 0 : i32
    %c0_i32_2 = arith.constant 0 : i32
    return %c0_i32, %c0_i32_0, %c0_i32_1 : i32, i32, i32
  }
  func.func @transform_6(%arg0: i32) -> (i32, i32) {
    %c0_i32 = arith.constant 0 : i32
    %c0_i32_0 = arith.constant 0 : i32
    %c0_i32_1 = arith.constant 0 : i32
    return %c0_i32, %c0_i32_0 : i32, i32
  }
  func.func @transform_7(%arg0: i32) -> (i32, i32) {
    %c0_i32 = arith.constant 0 : i32
    %c0_i32_0 = arith.constant 0 : i32
    %c0_i32_1 = arith.constant 0 : i32
    return %c0_i32, %c0_i32_0 : i32, i32
  }
  func.func @transform_8(%arg0: i32) -> (i32, i32) {
    %c0_i32 = arith.constant 0 : i32
    %c0_i32_0 = arith.constant 0 : i32
    %c0_i32_1 = arith.constant 0 : i32
    return %c0_i32, %c0_i32_0 : i32, i32
  }
  func.func @transform_9(%arg0: i32) -> (i32, i32) {
    %c0_i32 = arith.constant 0 : i32
    %c0_i32_0 = arith.constant 0 : i32
    %c0_i32_1 = arith.constant 0 : i32
    return %c0_i32, %c0_i32_0 : i32, i32
  }
  func.func @transform_10(%arg0: i32) -> (i32, i32) {
    %c0_i32 = arith.constant 0 : i32
    %c0_i32_0 = arith.constant 0 : i32
    %c0_i32_1 = arith.constant 0 : i32
    return %c0_i32, %c0_i32_0 : i32, i32
  }
  func.func @transform_11(%arg0: i32) -> (i32, i32) {
    %c0_i32 = arith.constant 0 : i32
    %c0_i32_0 = arith.constant 0 : i32
    return %arg0, %c0_i32 : i32, i32
  }
}

</mosaic_0001>

<llo_original>
// kernel: encoder_forward.1
$region0: #{encoder_forward.1}
  #allocation0 [shape = 'u32[]', space=smem, size = 0x4, offset = 0x4, fixed_abs, tag = 'smem constant byte address 0x4 - core index']
  #allocation1 [shape = 'u32[144,128]{1,0:T(1,128)}', space=vmem, size = 0x12000, scoped, tag = 'internal scratch']
  %s0 = inlined_call_operand.vmem [shape: bf16[128,32], index: 0, kind: input, shape index: {}]
  %s1 = inlined_call_operand.vmem [shape: bf16[7,32,320], index: 1, kind: input, shape index: {}]
  %s2 = inlined_call_operand.hbm [shape: f32[1,320], index: 2, kind: input, shape index: {}]
  %s3 = inlined_call_operand.hbm [shape: bf16[5,320,384], index: 3, kind: input, shape index: {}]
  %s4 = inlined_call_operand.hbm [shape: f32[1,384], index: 4, kind: input, shape index: {}]
  %s5 = inlined_call_operand.vmem [shape: bf16[3,384,64], index: 5, kind: input, shape index: {}]
  %s6 = inlined_call_operand.hbm [shape: f32[1,64], index: 6, kind: input, shape index: {}]
  %s7 = inlined_call_operand.vmem [shape: bf16[64,4], index: 7, kind: input, shape index: {}]
  %s8 = inlined_call_operand.hbm [shape: f32[1,4], index: 8, kind: input, shape index: {}]
  %s9 = inlined_call_operand.hbm [shape: bf16[16,16], index: 9, kind: input, shape index: {}]
  %s10 = inlined_call_operand.hbm [shape: f32[1,16], index: 10, kind: input, shape index: {}]
  %s11 = inlined_call_operand.vmem [shape: f32[8,16], index: 11, kind: output, shape index: {}]
  %s12 = sld [smem:[#allocation0]]
  $region82: #{encoder_forward.1} parent=0
    _
  %s14 = ssub.s32 1, %s12
  %s15 = scalar_select 0, %s14, %s12
  $region1: #{encoder_forward.1} parent=0
    #allocation2 [shape = 'u8[1536]{0}', space=vmem, size = 0x800, scoped, tag = 'input window, operand 2, single buffered']
    #allocation3 [shape = 's32[1]{0}', space=sflag, size = 0x4, scoped, tag = 'scoped memory for encoder_forward.1']
    #allocation4 [shape = 'u8[1228800]{0}', space=vmem, size = 0x12c000, scoped, tag = 'input window, operand 3, single buffered']
    #allocation5 [shape = 's32[1]{0}', space=sflag, size = 0x4, scoped, tag = 'scoped memory for encoder_forward.1']
    #allocation6 [shape = 'u8[1536]{0}', space=vmem, size = 0x800, scoped, tag = 'input window, operand 4, single buffered']
    #allocation7 [shape = 'u8[512]{0}', space=vmem, size = 0x400, scoped, tag = 'input window, operand 6, single buffered']
    #allocation8 [shape = 's32[1]{0}', space=sflag, size = 0x4, scoped, tag = 'scoped memory for encoder_forward.1']
    #allocation9 [shape = 'u8[512]{0}', space=vmem, size = 0x400, scoped, tag = 'input window, operand 8, single buffered']
    #allocation10 [shape = 'u8[4096]{0}', space=vmem, size = 0x1000, scoped, tag = 'input window, operand 9, single buffered']
    #allocation11 [shape = 's32[1]{0}', space=sflag, size = 0x4, scoped, tag = 'scoped memory for encoder_forward.1']
    #allocation12 [shape = 'u8[512]{0}', space=vmem, size = 0x400, scoped, tag = 'input window, operand 10, single buffered']
    %16 = vsyncpa [#allocation3], 0
    %17 = vsyncpa [#allocation5], 0
    %18 = vsyncpa [#allocation8], 0
    %19 = vsyncpa [#allocation11], 0
    // Predicated region
    $region2: #{encoder_forward.1} parent=1 // pred_check
      _
    $region3: #{encoder_forward.1} parent=1 // pred_check_branch
      %21 = sbr.rel (0) target = $region5
    $region4: #{encoder_forward.1} parent=1 // pred_region
      _
    $region5: #{encoder_forward.1} parent=1 // pred_fallthru
      _
    // Predicated region
    $region6: #{encoder_forward.1} parent=1 // pred_check
      _
    $region7: #{encoder_forward.1} parent=1 // pred_check_branch
      %23 = sbr.rel (0) target = $region9
    $region8: #{encoder_forward.1} parent=1 // pred_region
      _
    $region9: #{encoder_forward.1} parent=1 // pred_fallthru
      _
    // Predicated region
    $region10: #{encoder_forward.1} parent=1 // pred_check
      _
    $region11: #{encoder_forward.1} parent=1 // pred_check_branch
      %25 = sbr.rel (0) target = $region13
    $region12: #{encoder_forward.1} parent=1 // pred_region
      %s27 = ssub.s32 48, 48
      %28 = vsyncadd [#allocation3], %s27
      %s30 = sshll.u32 [#allocation2], 4
      %s31 = int_to_ptr.vmem [resolvable:$true] %s30
      %33 = dma.hbm_to_vmem [thread:$0]  %s2, 48, %s31, [#allocation3]
    $region13: #{encoder_forward.1} parent=1 // pred_fallthru
      _
    // Predicated region
    $region14: #{encoder_forward.1} parent=1 // pred_check
      _
    $region15: #{encoder_forward.1} parent=1 // pred_check_branch
      %35 = sbr.rel (0) target = $region17
    $region16: #{encoder_forward.1} parent=1 // pred_region
      %s37 = ssub.s32 38400, 38400
      %38 = vsyncadd [#allocation5], %s37
      %s39 = sshll.u32 [#allocation4], 4
      %s40 = int_to_ptr.vmem [resolvable:$true] %s39
      %45 = dma.hbm_to_vmem [thread:$0]  %s3, 38400, %s40, [#allocation5], 192, 192, 12
    $region17: #{encoder_forward.1} parent=1 // pred_fallthru
      _
    // Predicated region
    $region18: #{encoder_forward.1} parent=1 // pred_check
      _
    $region19: #{encoder_forward.1} parent=1 // pred_check_branch
      %47 = sbr.rel (0) target = $region21
    $region20: #{encoder_forward.1} parent=1 // pred_region
      %s49 = ssub.s32 48, 48
      %50 = vsyncadd [#allocation5], %s49
      %s52 = sshll.u32 [#allocation6], 4
      %s53 = int_to_ptr.vmem [resolvable:$true] %s52
      %55 = dma.hbm_to_vmem [thread:$0]  %s4, 48, %s53, [#allocation5]
    $region21: #{encoder_forward.1} parent=1 // pred_fallthru
      _
    // Predicated region
    $region22: #{encoder_forward.1} parent=1 // pred_check
      _
    $region23: #{encoder_forward.1} parent=1 // pred_check_branch
      %57 = sbr.rel (0) target = $region25
    $region24: #{encoder_forward.1} parent=1 // pred_region
      _
    $region25: #{encoder_forward.1} parent=1 // pred_fallthru
      _
    // Predicated region
    $region26: #{encoder_forward.1} parent=1 // pred_check
      _
    $region27: #{encoder_forward.1} parent=1 // pred_check_branch
      %59 = sbr.rel (0) target = $region29
    $region28: #{encoder_forward.1} parent=1 // pred_region
      %s61 = ssub.s32 16, 16
      %62 = vsyncadd [#allocation8], %s61
      %s64 = sshll.u32 [#allocation7], 4
      %s65 = int_to_ptr.vmem [resolvable:$true] %s64
      %67 = dma.hbm_to_vmem [thread:$0]  %s6, 16, %s65, [#allocation8]
    $region29: #{encoder_forward.1} parent=1 // pred_fallthru
      _
    // Predicated region
    $region30: #{encoder_forward.1} parent=1 // pred_check
      _
    $region31: #{encoder_forward.1} parent=1 // pred_check_branch
      %69 = sbr.rel (0) target = $region33
    $region32: #{encoder_forward.1} parent=1 // pred_region
      _
    $region33: #{encoder_forward.1} parent=1 // pred_fallthru
      _
    // Predicated region
    $region34: #{encoder_forward.1} parent=1 // pred_check
      _
    $region35: #{encoder_forward.1} parent=1 // pred_check_branch
      %71 = sbr.rel (0) target = $region37
    $region36: #{encoder_forward.1} parent=1 // pred_region
      %s73 = ssub.s32 16, 16
      %74 = vsyncadd [#allocation8], %s73
      %s76 = sshll.u32 [#allocation9], 4
      %s77 = int_to_ptr.vmem [resolvable:$true] %s76
      %79 = dma.hbm_to_vmem [thread:$0]  %s8, 16, %s77, [#allocation8]
    $region37: #{encoder_forward.1} parent=1 // pred_fallthru
      _
    // Predicated region
    $region38: #{encoder_forward.1} parent=1 // pred_check
      _
    $region39: #{encoder_forward.1} parent=1 // pred_check_branch
      %81 = sbr.rel (0) target = $region41
    $region40: #{encoder_forward.1} parent=1 // pred_region
      %s83 = ssub.s32 128, 128
      %84 = vsyncadd [#allocation11], %s83
      %s85 = sshll.u32 [#allocation10], 4
      %s86 = int_to_ptr.vmem [resolvable:$true] %s85
      %91 = dma.hbm_to_vmem [thread:$0]  %s9, 128, %s86, [#allocation11], 64, 64, 4
    $region41: #{encoder_forward.1} parent=1 // pred_fallthru
      _
    // Predicated region
    $region42: #{encoder_forward.1} parent=1 // pred_check
      _
    $region43: #{encoder_forward.1} parent=1 // pred_check_branch
      %93 = sbr.rel (0) target = $region45
    $region44: #{encoder_forward.1} parent=1 // pred_region
      %s95 = ssub.s32 16, 16
      %96 = vsyncadd [#allocation11], %s95
      %s98 = sshll.u32 [#allocation12], 4
      %s99 = int_to_ptr.vmem [resolvable:$true] %s98
      %101 = dma.hbm_to_vmem [thread:$0]  %s10, 16, %s99, [#allocation11]
    $region45: #{encoder_forward.1} parent=1 // pred_fallthru
      _
    // Predicated region
    $region46: #{encoder_forward.1} parent=1 // pred_check
      _
    $region47: #{encoder_forward.1} parent=1 // pred_check_branch
      %103 = sbr.rel (0) target = $region49
    $region48: #{encoder_forward.1} parent=1 // pred_region
      %104 = dma.done [#allocation3], 48
    $region49: #{encoder_forward.1} parent=1 // pred_fallthru
      _
    // Predicated region
    $region50: #{encoder_forward.1} parent=1 // pred_check
      _
    $region51: #{encoder_forward.1} parent=1 // pred_check_branch
      %106 = sbr.rel (0) target = $region53
    $region52: #{encoder_forward.1} parent=1 // pred_region
      %107 = dma.done [#allocation5], 38400
    $region53: #{encoder_forward.1} parent=1 // pred_fallthru
      _
    // Predicated region
    $region54: #{encoder_forward.1} parent=1 // pred_check
      _
    $region55: #{encoder_forward.1} parent=1 // pred_check_branch
      %109 = sbr.rel (0) target = $region57
    $region56: #{encoder_forward.1} parent=1 // pred_region
      %110 = dma.done [#allocation5], 48
    $region57: #{encoder_forward.1} parent=1 // pred_fallthru
      _
    // Predicated region
    $region58: #{encoder_forward.1} parent=1 // pred_check
      _
    $region59: #{encoder_forward.1} parent=1 // pred_check_branch
      %112 = sbr.rel (0) target = $region61
    $region60: #{encoder_forward.1} parent=1 // pred_region
      %113 = dma.done [#allocation8], 16
    $region61: #{encoder_forward.1} parent=1 // pred_fallthru
      _
    // Predicated region
    $region62: #{encoder_forward.1} parent=1 // pred_check
      _
    $region63: #{encoder_forward.1} parent=1 // pred_check_branch
      %115 = sbr.rel (0) target = $region65
    $region64: #{encoder_forward.1} parent=1 // pred_region
      %116 = dma.done [#allocation8], 16
    $region65: #{encoder_forward.1} parent=1 // pred_fallthru
      _
    // Predicated region
    $region66: #{encoder_forward.1} parent=1 // pred_check
      _
    $region67: #{encoder_forward.1} parent=1 // pred_check_branch
      %118 = sbr.rel (0) target = $region69
    $region68: #{encoder_forward.1} parent=1 // pred_region
      %119 = dma.done [#allocation11], 128
    $region69: #{encoder_forward.1} parent=1 // pred_fallthru
      _
    // Predicated region
    $region70: #{encoder_forward.1} parent=1 // pred_check
      _
    $region71: #{encoder_forward.1} parent=1 // pred_check_branch
      %121 = sbr.rel (0) target = $region73
    $region72: #{encoder_forward.1} parent=1 // pred_region
      %122 = dma.done [#allocation11], 16
    $region73: #{encoder_forward.1} parent=1 // pred_fallthru
      _
    %v124 = vld [vmem:[%s0] sm:$0xf]
    %v125 = vld [vmem:[%s0 + $0x4] sm:$0xf]
    %v126 = vld [vmem:[%s0 + $0x8] sm:$0xf]
    %v127 = vld [vmem:[%s0 + $0xc] sm:$0xf]
    %v128 = vld [vmem:[%s0 + $0x10] sm:$0xf]
    %v129 = vld [vmem:[%s0 + $0x14] sm:$0xf]
    %v130 = vld [vmem:[%s0 + $0x18] sm:$0xf]
    %v131 = vld [vmem:[%s0 + $0x1c] sm:$0xf]
    %v132 = vld [vmem:[%s0 + $0x20] sm:$0xf]
    %v133 = vld [vmem:[%s0 + $0x24] sm:$0xf]
    %v134 = vld [vmem:[%s0 + $0x28] sm:$0xf]
    %v135 = vld [vmem:[%s0 + $0x2c] sm:$0xf]
    %v136 = vld [vmem:[%s0 + $0x30] sm:$0xf]
    %v137 = vld [vmem:[%s0 + $0x34] sm:$0xf]
    %v138 = vld [vmem:[%s0 + $0x38] sm:$0xf]
    %v139 = vld [vmem:[%s0 + $0x3c] sm:$0xf]
    %v140 = vld [vmem:[%s1] sm:$0xff]
    %v141 = vld [vmem:[%s1 + $0x8] sm:$0xf]
    %v142 = vld [vmem:[%s1 + $0xc] sm:$0xff]
    %v143 = vld [vmem:[%s1 + $0x14] sm:$0xf]
    %v144 = vld [vmem:[%s1 + $0x18] sm:$0xff]
    %v145 = vld [vmem:[%s1 + $0x20] sm:$0xf]
    %v146 = vld [vmem:[%s1 + $0x24] sm:$0xff]
    %v147 = vld [vmem:[%s1 + $0x2c] sm:$0xf]
    %s148 = scalar_lea.vmem %s1, 48
    %v149 = vld [vmem:[%s148] sm:$0xff]
    %v150 = vld [vmem:[%s148 + $0x8] sm:$0xf]
    %v151 = vld [vmem:[%s148 + $0xc] sm:$0xff]
    %v152 = vld [vmem:[%s148 + $0x14] sm:$0xf]
    %v153 = vld [vmem:[%s148 + $0x18] sm:$0xff]
    %v154 = vld [vmem:[%s148 + $0x20] sm:$0xf]
    %v155 = vld [vmem:[%s148 + $0x24] sm:$0xff]
    %v156 = vld [vmem:[%s148 + $0x2c] sm:$0xf]
    %v167 = vunpack.c.l.b16 %v125
    %v168 = vunpack.c.l.b16 %v126
    %v169 = vunpack.c.l.b16 %v127
    %v170 = vunpack.c.l.b16 %v128
    %v171 = vunpack.c.l.b16 %v129
    %v172 = vunpack.c.l.b16 %v130
    %v173 = vunpack.c.l.b16 %v131
    %v174 = vunpack.c.l.b16 %v132
    %v175 = vunpack.c.l.b16 %v133
    %v176 = vunpack.c.l.b16 %v134
    %v177 = vpack.c.b16 %v168, %v167
    %v178 = vpack.c.b16 %v170, %v169
    %v179 = vpack.c.b16 %v172, %v171
    %v180 = vpack.c.b16 %v174, %v173
    %v181 = vpack.c.b16 %v176, %v175
    %v190 = vunpack.c.l.b16 %v149
    %v191 = vunpack.c.h.b16 %v149
    %v192 = vunpack.c.l.b16 %v150
    %v193 = vunpack.c.l.b16 %v151
    %v194 = vunpack.c.h.b16 %v151
    %v195 = vunpack.c.l.b16 %v152
    %v196 = vunpack.c.l.b16 %v153
    %v197 = vunpack.c.h.b16 %v153
    %v198 = vunpack.c.l.b16 %v154
    %v199 = vunpack.c.l.b16 %v155
    %v200 = vunpack.c.h.b16 %v155
    %v201 = vunpack.c.l.b16 %v156
    %v202 = vpack.c.b16 %v193, %v190
    %v203 = vpack.c.b16 %v194, %v191
    %v204 = vpack.c.b16 %v195, %v192
    %v205 = vpack.c.b16 %v199, %v196
    %v206 = vpack.c.b16 %v200, %v197
    %v207 = vpack.c.b16 %v201, %v198
    %vm214 = vcmask 261120
    %v216 = vsel %vm214, %v177, 0
    %v219 = vsel %vm214, %v178, 0
    %v222 = vsel %vm214, %v179, 0
    %v225 = vsel %vm214, %v180, 0
    %v228 = vsel %vm214, %v181, 0
    %230 = vmatprep.subr.bf16.mxu0 %v203
    %231 = vmatpush1.bf16.msra.mxu0 %v202
    %232 = vmatprep.subr.bf16.mxu0 %v206
    %233 = vmatpush1.bf16.msra.mxu0 %v205
    %234 = vmatprep.subr.bf16.mxu0 0
    %235 = vmatpush1.bf16.msra.mxu0 0
    %236 = vmatprep.subr.bf16.mxu0 0
    %237 = vmatpush1.bf16.msra.mxu0 0
    %238 = vmatprep.subr.bf16.mxu0 0
    %239 = vmatpush1.bf16.msra.mxu0 0
    %240 = vmatprep.subr.bf16.mxu0 0
    %241 = vmatpush1.bf16.msra.mxu0 0
    %242 = vmatprep.subr.bf16.mxu0 0
    %243 = vmatpush1.bf16.msra.mxu0 0
    %244 = vmatprep.subr.bf16.mxu0 0
    %245 = vmatpush1.bf16.msra.mxu0 0
    %246 = vmatprep.subr.bf16.mxu0 0
    %247 = vmatpush1.bf16.msra.mxu0 0
    %248 = vmatprep.subr.bf16.mxu0 0
    %249 = vmatpush1.bf16.msra.mxu0 0
    %250 = vmatprep.subr.bf16.mxu0 0
    %251 = vmatpush1.bf16.msra.mxu0 0
    %252 = vmatprep.subr.bf16.mxu0 0
    %253 = vmatpush1.bf16.msra.mxu0 0
    %254 = vmatprep.subr.bf16.mxu0 0
    %255 = vmatpush1.bf16.msra.mxu0 0
    %256 = vmatprep.subr.bf16.mxu0 0
    %257 = vmatpush1.bf16.msra.mxu0 0
    %258 = vmatprep.subr.bf16.mxu0 0
    %259 = vmatpush1.bf16.msra.mxu0 0
    %260 = vmatprep.subr.bf16.mxu0 0
    %261 = vmatpush1.bf16.msra.mxu0 0
    %262 = vmatprep.mubr.bf16.mxu0 0
    %263 = vmatmul.mubr.bf16.gmra.mrb[0].mxu0 %v216
    %v264 = vpop.f32.mrb[0].mxu0
    %v265 = vadd.f32 0.0, %v264
    %v266 = vpop.f32.mrb[0].mxu0
    %v267 = vadd.f32 0.0, %v266
    %v268 = vpop.f32.mrb[0].mxu0
    %v269 = vadd.f32 0.0, %v268
    %v270 = vpop.f32.mrb[0].mxu0
    %v271 = vadd.f32 0.0, %v270
    %272 = vmatprep.mubr.bf16.mxu0 0
    %273 = vmatmul.mubr.bf16.gmra.mrb[0].mxu0 %v219
    %v274 = vpop.f32.mrb[0].mxu0
    %v275 = vadd.f32 0.0, %v274
    %v276 = vpop.f32.mrb[0].mxu0
    %v277 = vadd.f32 0.0, %v276
    %v278 = vpop.f32.mrb[0].mxu0
    %v279 = vadd.f32 0.0, %v278
    %v280 = vpop.f32.mrb[0].mxu0
    %v281 = vadd.f32 0.0, %v280
    %282 = vmatprep.mubr.bf16.mxu0 0
    %283 = vmatmul.mubr.bf16.gmra.mrb[0].mxu0 %v222
    %v284 = vpop.f32.mrb[0].mxu0
    %v285 = vadd.f32 0.0, %v284
    %v286 = vpop.f32.mrb[0].mxu0
    %v287 = vadd.f32 0.0, %v286
    %v288 = vpop.f32.mrb[0].mxu0
    %v289 = vadd.f32 0.0, %v288
    %v290 = vpop.f32.mrb[0].mxu0
    %v291 = vadd.f32 0.0, %v290
    %292 = vmatprep.mubr.bf16.mxu0 0
    %293 = vmatmul.mubr.bf16.gmra.mrb[0].mxu0 %v225
    %v294 = vpop.f32.mrb[0].mxu0
    %v295 = vadd.f32 0.0, %v294
    %v296 = vpop.f32.mrb[0].mxu0
    %v297 = vadd.f32 0.0, %v296
    %v298 = vpop.f32.mrb[0].mxu0
    %v299 = vadd.f32 0.0, %v298
    %v300 = vpop.f32.mrb[0].mxu0
    %v301 = vadd.f32 0.0, %v300
    %302 = vmatprep.mubr.bf16.mxu0 0
    %303 = vmatmul.mubr.bf16.gmra.mrb[0].mxu0 %v228
    %v304 = vpop.f32.mrb[0].mxu0
    %v305 = vadd.f32 0.0, %v304
    %v306 = vpop.f32.mrb[0].mxu0
    %v307 = vadd.f32 0.0, %v306
    %v308 = vpop.f32.mrb[0].mxu0
    %v309 = vadd.f32 0.0, %v308
    %v310 = vpop.f32.mrb[0].mxu0
    %v311 = vadd.f32 0.0, %v310
    %312 = vdwg.mxu0
    %313 = vmatprep.subr.bf16.mxu0 0
    %314 = vmatpush1.bf16.msra.mxu0 %v204
    %315 = vmatprep.subr.bf16.mxu0 0
    %316 = vmatpush1.bf16.msra.mxu0 %v207
    %317 = vmatprep.subr.bf16.mxu0 0
    %318 = vmatpush1.bf16.msra.mxu0 0
    %319 = vmatprep.subr.bf16.mxu0 0
    %320 = vmatpush1.bf16.msra.mxu0 0
    %321 = vmatprep.subr.bf16.mxu0 0
    %322 = vmatpush1.bf16.msra.mxu0 0
    %323 = vmatprep.subr.bf16.mxu0 0
    %324 = vmatpush1.bf16.msra.mxu0 0
    %325 = vmatprep.subr.bf16.mxu0 0
    %326 = vmatpush1.bf16.msra.mxu0 0
    %327 = vmatprep.subr.bf16.mxu0 0
    %328 = vmatpush1.bf16.msra.mxu0 0
    %329 = vmatprep.subr.bf16.mxu0 0
    %330 = vmatpush1.bf16.msra.mxu0 0
    %331 = vmatprep.subr.bf16.mxu0 0
    %332 = vmatpush1.bf16.msra.mxu0 0
    %333 = vmatprep.subr.bf16.mxu0 0
    %334 = vmatpush1.bf16.msra.mxu0 0
    %335 = vmatprep.subr.bf16.mxu0 0
    %336 = vmatpush1.bf16.msra.mxu0 0
    %337 = vmatprep.subr.bf16.mxu0 0
    %338 = vmatpush1.bf16.msra.mxu0 0
    %339 = vmatprep.subr.bf16.mxu0 0
    %340 = vmatpush1.bf16.msra.mxu0 0
    %341 = vmatprep.subr.bf16.mxu0 0
    %342 = vmatpush1.bf16.msra.mxu0 0
    %343 = vmatprep.subr.bf16.mxu0 0
    %344 = vmatpush1.bf16.msra.mxu0 0
    %345 = vmatprep.mubr.bf16.mxu0 0
    %346 = vmatmul.mubr.bf16.gmra.mrb[0].mxu0 %v216
    %v347 = vpop.f32.mrb[0].mxu0
    %v348 = vadd.f32 0.0, %v347
    %v349 = vpop.f32.mrb[0].mxu0
    %v350 = vpop.f32.mrb[0].mxu0
    %v351 = vadd.f32 0.0, %v350
    %v352 = vpop.f32.mrb[0].mxu0
    %353 = vmatprep.mubr.bf16.mxu0 0
    %354 = vmatmul.mubr.bf16.gmra.mrb[0].mxu0 %v219
    %v355 = vpop.f32.mrb[0].mxu0
    %v356 = vadd.f32 0.0, %v355
    %v357 = vpop.f32.mrb[0].mxu0
    %v358 = vpop.f32.mrb[0].mxu0
    %v359 = vadd.f32 0.0, %v358
    %v360 = vpop.f32.mrb[0].mxu0
    %361 = vmatprep.mubr.bf16.mxu0 0
    %362 = vmatmul.mubr.bf16.gmra.mrb[0].mxu0 %v222
    %v363 = vpop.f32.mrb[0].mxu0
    %v364 = vadd.f32 0.0, %v363
    %v365 = vpop.f32.mrb[0].mxu0
    %v366 = vpop.f32.mrb[0].mxu0
    %v367 = vadd.f32 0.0, %v366
    %v368 = vpop.f32.mrb[0].mxu0
    %369 = vmatprep.mubr.bf16.mxu0 0
    %370 = vmatmul.mubr.bf16.gmra.mrb[0].mxu0 %v225
    %v371 = vpop.f32.mrb[0].mxu0
    %v372 = vadd.f32 0.0, %v371
    %v373 = vpop.f32.mrb[0].mxu0
    %v374 = vpop.f32.mrb[0].mxu0
    %v375 = vadd.f32 0.0, %v374
    %v376 = vpop.f32.mrb[0].mxu0
    %377 = vmatprep.mubr.bf16.mxu0 0
    %378 = vmatmul.mubr.bf16.gmra.mrb[0].mxu0 %v228
    %v379 = vpop.f32.mrb[0].mxu0
    %v380 = vadd.f32 0.0, %v379
    %v381 = vpop.f32.mrb[0].mxu0
    %v382 = vpop.f32.mrb[0].mxu0
    %v383 = vadd.f32 0.0, %v382
    %v384 = vpop.f32.mrb[0].mxu0
    %385 = vdwg.mxu0
    %v387 = vunpack.c.l.b16 %v124
    %v388 = vpack.c.b16 %v167, %v387
    %v389 = vpack.c.b16 %v169, %v168
    %v390 = vpack.c.b16 %v171, %v170
    %v391 = vpack.c.b16 %v173, %v172
    %v392 = vpack.c.b16 %v175, %v174
    %v401 = vunpack.c.l.b16 %v140
    %v402 = vunpack.c.h.b16 %v140
    %v403 = vunpack.c.l.b16 %v141
    %v404 = vunpack.c.l.b16 %v142
    %v405 = vunpack.c.h.b16 %v142
    %v406 = vunpack.c.l.b16 %v143
    %v407 = vunpack.c.l.b16 %v144
    %v408 = vunpack.c.h.b16 %v144
    %v409 = vunpack.c.l.b16 %v145
    %v410 = vunpack.c.l.b16 %v146
    %v411 = vunpack.c.h.b16 %v146
    %v412 = vunpack.c.l.b16 %v147
    %v413 = vpack.c.b16 %v404, %v401
    %v414 = vpack.c.b16 %v405, %v402
    %v415 = vpack.c.b16 %v406, %v403
    %v416 = vpack.c.b16 %v410, %v407
    %v417 = vpack.c.b16 %v411, %v408
    %v418 = vpack.c.b16 %v412, %v409
    %v426 = vsel %vm214, %v388, 0
    %v429 = vsel %vm214, %v389, 0
    %v432 = vsel %vm214, %v390, 0
    %v435 = vsel %vm214, %v391, 0
    %v438 = vsel %vm214, %v392, 0
    %440 = vmatprep.subr.bf16.mxu0 %v414
    %441 = vmatpush1.bf16.msra.mxu0 %v413
    %442 = vmatprep.subr.bf16.mxu0 %v417
    %443 = vmatpush1.bf16.msra.mxu0 %v416
    %444 = vmatprep.subr.bf16.mxu0 0
    %445 = vmatpush1.bf16.msra.mxu0 0
    %446 = vmatprep.subr.bf16.mxu0 0
    %447 = vmatpush1.bf16.msra.mxu0 0
    %448 = vmatprep.subr.bf16.mxu0 0
    %449 = vmatpush1.bf16.msra.mxu0 0
    %450 = vmatprep.subr.bf16.mxu0 0
    %451 = vmatpush1.bf16.msra.mxu0 0
    %452 = vmatprep.subr.bf16.mxu0 0
    %453 = vmatpush1.bf16.msra.mxu0 0
    %454 = vmatprep.subr.bf16.mxu0 0
    %455 = vmatpush1.bf16.msra.mxu0 0
    %456 = vmatprep.subr.bf16.mxu0 0
    %457 = vmatpush1.bf16.msra.mxu0 0
    %458 = vmatprep.subr.bf16.mxu0 0
    %459 = vmatpush1.bf16.msra.mxu0 0
    %460 = vmatprep.subr.bf16.mxu0 0
    %461 = vmatpush1.bf16.msra.mxu0 0
    %462 = vmatprep.subr.bf16.mxu0 0
    %463 = vmatpush1.bf16.msra.mxu0 0
    %464 = vmatprep.subr.bf16.mxu0 0
    %465 = vmatpush1.bf16.msra.mxu0 0
    %466 = vmatprep.subr.bf16.mxu0 0
    %467 = vmatpush1.bf16.msra.mxu0 0
    %468 = vmatprep.subr.bf16.mxu0 0
    %469 = vmatpush1.bf16.msra.mxu0 0
    %470 = vmatprep.subr.bf16.mxu0 0
    %471 = vmatpush1.bf16.msra.mxu0 0
    %472 = vmatprep.mubr.bf16.mxu0 0
    %473 = vmatmul.mubr.bf16.gmra.mrb[0].mxu0 %v426
    %v474 = vpop.f32.mrb[0].mxu0
    %v475 = vadd.f32 %v265, %v474
    %v476 = vpop.f32.mrb[0].mxu0
    %v477 = vadd.f32 %v267, %v476
    %v478 = vpop.f32.mrb[0].mxu0
    %v479 = vadd.f32 %v269, %v478
    %v480 = vpop.f32.mrb[0].mxu0
    %v481 = vadd.f32 %v271, %v480
    %482 = vmatprep.mubr.bf16.mxu0 0
    %483 = vmatmul.mubr.bf16.gmra.mrb[0].mxu0 %v429
    %v484 = vpop.f32.mrb[0].mxu0
    %v485 = vadd.f32 %v275, %v484
    %v486 = vpop.f32.mrb[0].mxu0
    %v487 = vadd.f32 %v277, %v486
    %v488 = vpop.f32.mrb[0].mxu0
    %v489 = vadd.f32 %v279, %v488
    %v490 = vpop.f32.mrb[0].mxu0
    %v491 = vadd.f32 %v281, %v490
    %492 = vmatprep.mubr.bf16.mxu0 0
    %493 = vmatmul.mubr.bf16.gmra.mrb[0].mxu0 %v432
    %v494 = vpop.f32.mrb[0].mxu0
    %v495 = vadd.f32 %v285, %v494
    %v496 = vpop.f32.mrb[0].mxu0
    %v497 = vadd.f32 %v287, %v496
    %v498 = vpop.f32.mrb[0].mxu0
    %v499 = vadd.f32 %v289, %v498
    %v500 = vpop.f32.mrb[0].mxu0
    %v501 = vadd.f32 %v291, %v500
    %502 = vmatprep.mubr.bf16.mxu0 0
    %503 = vmatmul.mubr.bf16.gmra.mrb[0].mxu0 %v435
    %v504 = vpop.f32.mrb[0].mxu0
    %v505 = vadd.f32 %v295, %v504
    %v506 = vpop.f32.mrb[0].mxu0
    %v507 = vadd.f32 %v297, %v506
    %v508 = vpop.f32.mrb[0].mxu0
    %v509 = vadd.f32 %v299, %v508
    %v510 = vpop.f32.mrb[0].mxu0
    %v511 = vadd.f32 %v301, %v510
    %512 = vmatprep.mubr.bf16.mxu0 0
    %513 = vmatmul.mubr.bf16.gmra.mrb[0].mxu0 %v438
    %v514 = vpop.f32.mrb[0].mxu0
    %v515 = vadd.f32 %v305, %v514
    %v516 = vpop.f32.mrb[0].mxu0
    %v517 = vadd.f32 %v307, %v516
    %v518 = vpop.f32.mrb[0].mxu0
    %v519 = vadd.f32 %v309, %v518
    %v520 = vpop.f32.mrb[0].mxu0
    %v521 = vadd.f32 %v311, %v520
    %522 = vdwg.mxu0
    %523 = vmatprep.subr.bf16.mxu0 0
    %524 = vmatpush1.bf16.msra.mxu0 %v415
    %525 = vmatprep.subr.bf16.mxu0 0
    %526 = vmatpush1.bf16.msra.mxu0 %v418
    %527 = vmatprep.subr.bf16.mxu0 0
    %528 = vmatpush1.bf16.msra.mxu0 0
    %529 = vmatprep.subr.bf16.mxu0 0
    %530 = vmatpush1.bf16.msra.mxu0 0
    %531 = vmatprep.subr.bf16.mxu0 0
    %532 = vmatpush1.bf16.msra.mxu0 0
    %533 = vmatprep.subr.bf16.mxu0 0
    %534 = vmatpush1.bf16.msra.mxu0 0
    %535 = vmatprep.subr.bf16.mxu0 0
    %536 = vmatpush1.bf16.msra.mxu0 0
    %537 = vmatprep.subr.bf16.mxu0 0
    %538 = vmatpush1.bf16.msra.mxu0 0
    %539 = vmatprep.subr.bf16.mxu0 0
    %540 = vmatpush1.bf16.msra.mxu0 0
    %541 = vmatprep.subr.bf16.mxu0 0
    %542 = vmatpush1.bf16.msra.mxu0 0
    %543 = vmatprep.subr.bf16.mxu0 0
    %544 = vmatpush1.bf16.msra.mxu0 0
    %545 = vmatprep.subr.bf16.mxu0 0
    %546 = vmatpush1.bf16.msra.mxu0 0
    %547 = vmatprep.subr.bf16.mxu0 0
    %548 = vmatpush1.bf16.msra.mxu0 0
    %549 = vmatprep.subr.bf16.mxu0 0
    %550 = vmatpush1.bf16.msra.mxu0 0
    %551 = vmatprep.subr.bf16.mxu0 0
    %552 = vmatpush1.bf16.msra.mxu0 0
    %553 = vmatprep.subr.bf16.mxu0 0
    %554 = vmatpush1.bf16.msra.mxu0 0
    %555 = vmatprep.mubr.bf16.mxu0 0
    %556 = vmatmul.mubr.bf16.gmra.mrb[0].mxu0 %v426
    %v557 = vpop.f32.mrb[0].mxu0
    %v558 = vadd.f32 %v348, %v557
    %v559 = vpop.f32.mrb[0].mxu0
    %v560 = vpop.f32.mrb[0].mxu0
    %v561 = vadd.f32 %v351, %v560
    %v562 = vpop.f32.mrb[0].mxu0
    %563 = vmatprep.mubr.bf16.mxu0 0
    %564 = vmatmul.mubr.bf16.gmra.mrb[0].mxu0 %v429
    %v565 = vpop.f32.mrb[0].mxu0
    %v566 = vadd.f32 %v356, %v565
    %v567 = vpop.f32.mrb[0].mxu0
    %v568 = vpop.f32.mrb[0].mxu0
    %v569 = vadd.f32 %v359, %v568
    %v570 = vpop.f32.mrb[0].mxu0
    %571 = vmatprep.mubr.bf16.mxu0 0
    %572 = vmatmul.mubr.bf16.gmra.mrb[0].mxu0 %v432
    %v573 = vpop.f32.mrb[0].mxu0
    %v574 = vadd.f32 %v364, %v573
    %v575 = vpop.f32.mrb[0].mxu0
    %v576 = vpop.f32.mrb[0].mxu0
    %v577 = vadd.f32 %v367, %v576
    %v578 = vpop.f32.mrb[0].mxu0
    %579 = vmatprep.mubr.bf16.mxu0 0
    %580 = vmatmul.mubr.bf16.gmra.mrb[0].mxu0 %v435
    %v581 = vpop.f32.mrb[0].mxu0
    %v582 = vadd.f32 %v372, %v581
    %v583 = vpop.f32.mrb[0].mxu0
    %v584 = vpop.f32.mrb[0].mxu0
    %v585 = vadd.f32 %v375, %v584
    %v586 = vpop.f32.mrb[0].mxu0
    %587 = vmatprep.mubr.bf16.mxu0 0
    %588 = vmatmul.mubr.bf16.gmra.mrb[0].mxu0 %v438
    %v589 = vpop.f32.mrb[0].mxu0
    %v590 = vadd.f32 %v380, %v589
    %v591 = vpop.f32.mrb[0].mxu0
    %v592 = vpop.f32.mrb[0].mxu0
    %v593 = vadd.f32 %v383, %v592
    %v594 = vpop.f32.mrb[0].mxu0
    %595 = vdwg.mxu0
    %s596 = scalar_lea.vmem %s1, 96
    %v597 = vld [vmem:[%s596] sm:$0xff]
    %v598 = vld [vmem:[%s596 + $0x8] sm:$0xf]
    %v599 = vld [vmem:[%s596 + $0xc] sm:$0xff]
    %v600 = vld [vmem:[%s596 + $0x14] sm:$0xf]
    %v601 = vld [vmem:[%s596 + $0x18] sm:$0xff]
    %v602 = vld [vmem:[%s596 + $0x20] sm:$0xf]
    %v603 = vld [vmem:[%s596 + $0x24] sm:$0xff]
    %v604 = vld [vmem:[%s596 + $0x2c] sm:$0xf]
    %v606 = vunpack.c.l.b16 %v135
    %v607 = vpack.c.b16 %v606, %v176
    %v616 = vunpack.c.l.b16 %v597
    %v617 = vunpack.c.h.b16 %v597
    %v618 = vunpack.c.l.b16 %v598
    %v619 = vunpack.c.l.b16 %v599
    %v620 = vunpack.c.h.b16 %v599
    %v621 = vunpack.c.l.b16 %v600
    %v622 = vunpack.c.l.b16 %v601
    %v623 = vunpack.c.h.b16 %v601
    %v624 = vunpack.c.l.b16 %v602
    %v625 = vunpack.c.l.b16 %v603
    %v626 = vunpack.c.h.b16 %v603
    %v627 = vunpack.c.l.b16 %v604
    %v628 = vpack.c.b16 %v619, %v616
    %v629 = vpack.c.b16 %v620, %v617
    %v630 = vpack.c.b16 %v621, %v618
    %v631 = vpack.c.b16 %v625, %v622
    %v632 = vpack.c.b16 %v626, %v623
    %v633 = vpack.c.b16 %v627, %v624
    %v641 = vsel %vm214, %v607, 0
    %643 = vmatprep.subr.bf16.mxu0 %v629
    %644 = vmatpush1.bf16.msra.mxu0 %v628
    %645 = vmatprep.subr.bf16.mxu0 %v632
    %646 = vmatpush1.bf16.msra.mxu0 %v631
    %647 = vmatprep.subr.bf16.mxu0 0
    %648 = vmatpush1.bf16.msra.mxu0 0
    %649 = vmatprep.subr.bf16.mxu0 0
    %650 = vmatpush1.bf16.msra.mxu0 0
    %651 = vmatprep.subr.bf16.mxu0 0
    %652 = vmatpush1.bf16.msra.mxu0 0
    %653 = vmatprep.subr.bf16.mxu0 0
    %654 = vmatpush1.bf16.msra.mxu0 0
    %655 = vmatprep.subr.bf16.mxu0 0
    %656 = vmatpush1.bf16.msra.mxu0 0
    %657 = vmatprep.subr.bf16.mxu0 0
    %658 = vmatpush1.bf16.msra.mxu0 0
    %659 = vmatprep.subr.bf16.mxu0 0
    %660 = vmatpush1.bf16.msra.mxu0 0
    %661 = vmatprep.subr.bf16.mxu0 0
    %662 = vmatpush1.bf16.msra.mxu0 0
    %663 = vmatprep.subr.bf16.mxu0 0
    %664 = vmatpush1.bf16.msra.mxu0 0
    %665 = vmatprep.subr.bf16.mxu0 0
    %666 = vmatpush1.bf16.msra.mxu0 0
    %667 = vmatprep.subr.bf16.mxu0 0
    %668 = vmatpush1.bf16.msra.mxu0 0
    %669 = vmatprep.subr.bf16.mxu0 0
    %670 = vmatpush1.bf16.msra.mxu0 0
    %671 = vmatprep.subr.bf16.mxu0 0
    %672 = vmatpush1.bf16.msra.mxu0 0
    %673 = vmatprep.subr.bf16.mxu0 0
    %674 = vmatpush1.bf16.msra.mxu0 0
    %675 = vmatprep.mubr.bf16.mxu0 0
    %676 = vmatmul.mubr.bf16.gmra.mrb[0].mxu0 %v429
    %v677 = vpop.f32.mrb[0].mxu0
    %v678 = vadd.f32 0.0, %v677
    %v679 = vpop.f32.mrb[0].mxu0
    %v680 = vadd.f32 0.0, %v679
    %v681 = vpop.f32.mrb[0].mxu0
    %v682 = vadd.f32 0.0, %v681
    %v683 = vpop.f32.mrb[0].mxu0
    %v684 = vadd.f32 0.0, %v683
    %685 = vmatprep.mubr.bf16.mxu0 0
    %686 = vmatmul.mubr.bf16.gmra.mrb[0].mxu0 %v432
    %v687 = vpop.f32.mrb[0].mxu0
    %v688 = vadd.f32 0.0, %v687
    %v689 = vpop.f32.mrb[0].mxu0
    %v690 = vadd.f32 0.0, %v689
    %v691 = vpop.f32.mrb[0].mxu0
    %v692 = vadd.f32 0.0, %v691
    %v693 = vpop.f32.mrb[0].mxu0
    %v694 = vadd.f32 0.0, %v693
    %695 = vmatprep.mubr.bf16.mxu0 0
    %696 = vmatmul.mubr.bf16.gmra.mrb[0].mxu0 %v435
    %v697 = vpop.f32.mrb[0].mxu0
    %v698 = vadd.f32 0.0, %v697
    %v699 = vpop.f32.mrb[0].mxu0
    %v700 = vadd.f32 0.0, %v699
    %v701 = vpop.f32.mrb[0].mxu0
    %v702 = vadd.f32 0.0, %v701
    %v703 = vpop.f32.mrb[0].mxu0
    %v704 = vadd.f32 0.0, %v703
    %705 = vmatprep.mubr.bf16.mxu0 0
    %706 = vmatmul.mubr.bf16.gmra.mrb[0].mxu0 %v438
    %v707 = vpop.f32.mrb[0].mxu0
    %v708 = vadd.f32 0.0, %v707
    %v709 = vpop.f32.mrb[0].mxu0
    %v710 = vadd.f32 0.0, %v709
    %v711 = vpop.f32.mrb[0].mxu0
    %v712 = vadd.f32 0.0, %v711
    %v713 = vpop.f32.mrb[0].mxu0
    %v714 = vadd.f32 0.0, %v713
    %715 = vmatprep.mubr.bf16.mxu0 0
    %716 = vmatmul.mubr.bf16.gmra.mrb[0].mxu0 %v641
    %v717 = vpop.f32.mrb[0].mxu0
    %v718 = vadd.f32 0.0, %v717
    %v719 = vpop.f32.mrb[0].mxu0
    %v720 = vadd.f32 0.0, %v719
    %v721 = vpop.f32.mrb[0].mxu0
    %v722 = vadd.f32 0.0, %v721
    %v723 = vpop.f32.mrb[0].mxu0
    %v724 = vadd.f32 0.0, %v723
    %725 = vdwg.mxu0
    %726 = vmatprep.subr.bf16.mxu0 0
    %727 = vmatpush1.bf16.msra.mxu0 %v630
    %728 = vmatprep.subr.bf16.mxu0 0
    %729 = vmatpush1.bf16.msra.mxu0 %v633
    %730 = vmatprep.subr.bf16.mxu0 0
    %731 = vmatpush1.bf16.msra.mxu0 0
    %732 = vmatprep.subr.bf16.mxu0 0
    %733 = vmatpush1.bf16.msra.mxu0 0
    %734 = vmatprep.subr.bf16.mxu0 0
    %735 = vmatpush1.bf16.msra.mxu0 0
    %736 = vmatprep.subr.bf16.mxu0 0
    %737 = vmatpush1.bf16.msra.mxu0 0
    %738 = vmatprep.subr.bf16.mxu0 0
    %739 = vmatpush1.bf16.msra.mxu0 0
    %740 = vmatprep.subr.bf16.mxu0 0
    %741 = vmatpush1.bf16.msra.mxu0 0
    %742 = vmatprep.subr.bf16.mxu0 0
    %743 = vmatpush1.bf16.msra.mxu0 0
    %744 = vmatprep.subr.bf16.mxu0 0
    %745 = vmatpush1.bf16.msra.mxu0 0
    %746 = vmatprep.subr.bf16.mxu0 0
    %747 = vmatpush1.bf16.msra.mxu0 0
    %748 = vmatprep.subr.bf16.mxu0 0
    %749 = vmatpush1.bf16.msra.mxu0 0
    %750 = vmatprep.subr.bf16.mxu0 0
    %751 = vmatpush1.bf16.msra.mxu0 0
    %752 = vmatprep.subr.bf16.mxu0 0
    %753 = vmatpush1.bf16.msra.mxu0 0
    %754 = vmatprep.subr.bf16.mxu0 0
    %755 = vmatpush1.bf16.msra.mxu0 0
    %756 = vmatprep.subr.bf16.mxu0 0
    %757 = vmatpush1.bf16.msra.mxu0 0
    %758 = vmatprep.mubr.bf16.mxu0 0
    %759 = vmatmul.mubr.bf16.gmra.mrb[0].mxu0 %v429
    %v760 = vpop.f32.mrb[0].mxu0
    %v761 = vadd.f32 0.0, %v760
    %v762 = vpop.f32.mrb[0].mxu0
    %v763 = vpop.f32.mrb[0].mxu0
    %v764 = vadd.f32 0.0, %v763
    %v765 = vpop.f32.mrb[0].mxu0
    %766 = vmatprep.mubr.bf16.mxu0 0
    %767 = vmatmul.mubr.bf16.gmra.mrb[0].mxu0 %v432
    %v768 = vpop.f32.mrb[0].mxu0
    %v769 = vadd.f32 0.0, %v768
    %v770 = vpop.f32.mrb[0].mxu0
    %v771 = vpop.f32.mrb[0].mxu0
    %v772 = vadd.f32 0.0, %v771
    %v773 = vpop.f32.mrb[0].mxu0
    %774 = vmatprep.mubr.bf16.mxu0 0
    %775 = vmatmul.mubr.bf16.gmra.mrb[0].mxu0 %v435
    %v776 = vpop.f32.mrb[0].mxu0
    %v777 = vadd.f32 0.0, %v776
    %v778 = vpop.f32.mrb[0].mxu0
    %v779 = vpop.f32.mrb[0].mxu0
    %v780 = vadd.f32 0.0, %v779
    %v781 = vpop.f32.mrb[0].mxu0
    %782 = vmatprep.mubr.bf16.mxu0 0
    %783 = vmatmul.mubr.bf16.gmra.mrb[0].mxu0 %v438
    %v784 = vpop.f32.mrb[0].mxu0
    %v785 = vadd.f32 0.0, %v784
    %v786 = vpop.f32.mrb[0].mxu0
    %v787 = vpop.f32.mrb[0].mxu0
    %v788 = vadd.f32 0.0, %v787
    %v789 = vpop.f32.mrb[0].mxu0
    %790 = vmatprep.mubr.bf16.mxu0 0
    %791 = vmatmul.mubr.bf16.gmra.mrb[0].mxu0 %v641
    %v792 = vpop.f32.mrb[0].mxu0
    %v793 = vadd.f32 0.0, %v792
    %v794 = vpop.f32.mrb[0].mxu0
    %v795 = vpop.f32.mrb[0].mxu0
    %v796 = vadd.f32 0.0, %v795
    %v797 = vpop.f32.mrb[0].mxu0
    %798 = vdwg.mxu0
    %v799 = vadd.f32 %v475, %v678
    %v800 = vadd.f32 %v477, %v680
    %v801 = vadd.f32 %v558, %v761
    %v802 = vadd.f32 %v479, %v682
    %v803 = vadd.f32 %v481, %v684
    %v804 = vadd.f32 %v561, %v764
    %v805 = vadd.f32 %v485, %v688
    %v806 = vadd.f32 %v487, %v690
    %v807 = vadd.f32 %v566, %v769
    %v808 = vadd.f32 %v489, %v692
    %v809 = vadd.f32 %v491, %v694
    %v810 = vadd.f32 %v569, %v772
    %v811 = vadd.f32 %v495, %v698
    %v812 = vadd.f32 %v497, %v700
    %v813 = vadd.f32 %v574, %v777
    %v814 = vadd.f32 %v499, %v702
    %v815 = vadd.f32 %v501, %v704
    %v816 = vadd.f32 %v577, %v780
    %v817 = vadd.f32 %v505, %v708
    %v818 = vadd.f32 %v507, %v710
    %v819 = vadd.f32 %v582, %v785
    %v820 = vadd.f32 %v509, %v712
    %v821 = vadd.f32 %v511, %v714
    %v822 = vadd.f32 %v585, %v788
    %v823 = vadd.f32 %v515, %v718
    %v824 = vadd.f32 %v517, %v720
    %v825 = vadd.f32 %v590, %v793
    %v826 = vadd.f32 %v519, %v722
    %v827 = vadd.f32 %v521, %v724
    %v828 = vadd.f32 %v593, %v796
    %s829 = scalar_lea.vmem %s1, 144
    %v830 = vld [vmem:[%s829] sm:$0xff]
    %v831 = vld [vmem:[%s829 + $0x8] sm:$0xf]
    %v832 = vld [vmem:[%s829 + $0xc] sm:$0xff]
    %v833 = vld [vmem:[%s829 + $0x14] sm:$0xf]
    %v834 = vld [vmem:[%s829 + $0x18] sm:$0xff]
    %v835 = vld [vmem:[%s829 + $0x20] sm:$0xf]
    %v836 = vld [vmem:[%s829 + $0x24] sm:$0xff]
    %v837 = vld [vmem:[%s829 + $0x2c] sm:$0xf]
    %v839 = vunpack.c.l.b16 %v136
    %v840 = vpack.c.b16 %v839, %v606
    %v849 = vunpack.c.l.b16 %v830
    %v850 = vunpack.c.h.b16 %v830
    %v851 = vunpack.c.l.b16 %v831
    %v852 = vunpack.c.l.b16 %v832
    %v853 = vunpack.c.h.b16 %v832
    %v854 = vunpack.c.l.b16 %v833
    %v855 = vunpack.c.l.b16 %v834
    %v856 = vunpack.c.h.b16 %v834
    %v857 = vunpack.c.l.b16 %v835
    %v858 = vunpack.c.l.b16 %v836
    %v859 = vunpack.c.h.b16 %v836
    %v860 = vunpack.c.l.b16 %v837
    %v861 = vpack.c.b16 %v852, %v849
    %v862 = vpack.c.b16 %v853, %v850
    %v863 = vpack.c.b16 %v854, %v851
    %v864 = vpack.c.b16 %v858, %v855
    %v865 = vpack.c.b16 %v859, %v856
    %v866 = vpack.c.b16 %v860, %v857
    %v874 = vsel %vm214, %v840, 0
    %876 = vmatprep.subr.bf16.mxu0 %v862
    %877 = vmatpush1.bf16.msra.mxu0 %v861
    %878 = vmatprep.subr.bf16.mxu0 %v865
    %879 = vmatpush1.bf16.msra.mxu0 %v864
    %880 = vmatprep.subr.bf16.mxu0 0
    %881 = vmatpush1.bf16.msra.mxu0 0
    %882 = vmatprep.subr.bf16.mxu0 0
    %883 = vmatpush1.bf16.msra.mxu0 0
    %884 = vmatprep.subr.bf16.mxu0 0
    %885 = vmatpush1.bf16.msra.mxu0 0
    %886 = vmatprep.subr.bf16.mxu0 0
    %887 = vmatpush1.bf16.msra.mxu0 0
    %888 = vmatprep.subr.bf16.mxu0 0
    %889 = vmatpush1.bf16.msra.mxu0 0
    %890 = vmatprep.subr.bf16.mxu0 0
    %891 = vmatpush1.bf16.msra.mxu0 0
    %892 = vmatprep.subr.bf16.mxu0 0
    %893 = vmatpush1.bf16.msra.mxu0 0
    %894 = vmatprep.subr.bf16.mxu0 0
    %895 = vmatpush1.bf16.msra.mxu0 0
    %896 = vmatprep.subr.bf16.mxu0 0
    %897 = vmatpush1.bf16.msra.mxu0 0
    %898 = vmatprep.subr.bf16.mxu0 0
    %899 = vmatpush1.bf16.msra.mxu0 0
    %900 = vmatprep.subr.bf16.mxu0 0
    %901 = vmatpush1.bf16.msra.mxu0 0
    %902 = vmatprep.subr.bf16.mxu0 0
    %903 = vmatpush1.bf16.msra.mxu0 0
    %904 = vmatprep.subr.bf16.mxu0 0
    %905 = vmatpush1.bf16.msra.mxu0 0
    %906 = vmatprep.subr.bf16.mxu0 0
    %907 = vmatpush1.bf16.msra.mxu0 0
    %908 = vmatprep.mubr.bf16.mxu0 0
    %909 = vmatmul.mubr.bf16.gmra.mrb[0].mxu0 %v219
    %v910 = vpop.f32.mrb[0].mxu0
    %v911 = vadd.f32 0.0, %v910
    %v912 = vpop.f32.mrb[0].mxu0
    %v913 = vadd.f32 0.0, %v912
    %v914 = vpop.f32.mrb[0].mxu0
    %v915 = vadd.f32 0.0, %v914
    %v916 = vpop.f32.mrb[0].mxu0
    %v917 = vadd.f32 0.0, %v916
    %918 = vmatprep.mubr.bf16.mxu0 0
    %919 = vmatmul.mubr.bf16.gmra.mrb[0].mxu0 %v222
    %v920 = vpop.f32.mrb[0].mxu0
    %v921 = vadd.f32 0.0, %v920
    %v922 = vpop.f32.mrb[0].mxu0
    %v923 = vadd.f32 0.0, %v922
    %v924 = vpop.f32.mrb[0].mxu0
    %v925 = vadd.f32 0.0, %v924
    %v926 = vpop.f32.mrb[0].mxu0
    %v927 = vadd.f32 0.0, %v926
    %928 = vmatprep.mubr.bf16.mxu0 0
    %929 = vmatmul.mubr.bf16.gmra.mrb[0].mxu0 %v225
    %v930 = vpop.f32.mrb[0].mxu0
    %v931 = vadd.f32 0.0, %v930
    %v932 = vpop.f32.mrb[0].mxu0
    %v933 = vadd.f32 0.0, %v932
    %v934 = vpop.f32.mrb[0].mxu0
    %v935 = vadd.f32 0.0, %v934
    %v936 = vpop.f32.mrb[0].mxu0
    %v937 = vadd.f32 0.0, %v936
    %938 = vmatprep.mubr.bf16.mxu0 0
    %939 = vmatmul.mubr.bf16.gmra.mrb[0].mxu0 %v228
    %v940 = vpop.f32.mrb[0].mxu0
    %v941 = vadd.f32 0.0, %v940
    %v942 = vpop.f32.mrb[0].mxu0
    %v943 = vadd.f32 0.0, %v942
    %v944 = vpop.f32.mrb[0].mxu0
    %v945 = vadd.f32 0.0, %v944
    %v946 = vpop.f32.mrb[0].mxu0
    %v947 = vadd.f32 0.0, %v946
    %948 = vmatprep.mubr.bf16.mxu0 0
    %949 = vmatmul.mubr.bf16.gmra.mrb[0].mxu0 %v874
    %v950 = vpop.f32.mrb[0].mxu0
    %v951 = vadd.f32 0.0, %v950
    %v952 = vpop.f32.mrb[0].mxu0
    %v953 = vadd.f32 0.0, %v952
    %v954 = vpop.f32.mrb[0].mxu0
    %v955 = vadd.f32 0.0, %v954
    %v956 = vpop.f32.mrb[0].mxu0
    %v957 = vadd.f32 0.0, %v956
    %958 = vdwg.mxu0
    %959 = vmatprep.subr.bf16.mxu0 0
    %960 = vmatpush1.bf16.msra.mxu0 %v863
    %961 = vmatprep.subr.bf16.mxu0 0
    %962 = vmatpush1.bf16.msra.mxu0 %v866
    %963 = vmatprep.subr.bf16.mxu0 0
    %964 = vmatpush1.bf16.msra.mxu0 0
    %965 = vmatprep.subr.bf16.mxu0 0
    %966 = vmatpush1.bf16.msra.mxu0 0
    %967 = vmatprep.subr.bf16.mxu0 0
    %968 = vmatpush1.bf16.msra.mxu0 0
    %969 = vmatprep.subr.bf16.mxu0 0
    %970 = vmatpush1.bf16.msra.mxu0 0
    %971 = vmatprep.subr.bf16.mxu0 0
    %972 = vmatpush1.bf16.msra.mxu0 0
    %973 = vmatprep.subr.bf16.mxu0 0
    %974 = vmatpush1.bf16.msra.mxu0 0
    %975 = vmatprep.subr.bf16.mxu0 0
    %976 = vmatpush1.bf16.msra.mxu0 0
    %977 = vmatprep.subr.bf16.mxu0 0
    %978 = vmatpush1.bf16.msra.mxu0 0
    %979 = vmatprep.subr.bf16.mxu0 0
    %980 = vmatpush1.bf16.msra.mxu0 0
    %981 = vmatprep.subr.bf16.mxu0 0
    %982 = vmatpush1.bf16.msra.mxu0 0
    %983 = vmatprep.subr.bf16.mxu0 0
    %984 = vmatpush1.bf16.msra.mxu0 0
    %985 = vmatprep.subr.bf16.mxu0 0
    %986 = vmatpush1.bf16.msra.mxu0 0
    %987 = vmatprep.subr.bf16.mxu0 0
    %988 = vmatpush1.bf16.msra.mxu0 0
    %989 = vmatprep.subr.bf16.mxu0 0
    %990 = vmatpush1.bf16.msra.mxu0 0
    %991 = vmatprep.mubr.bf16.mxu0 0
    %992 = vmatmul.mubr.bf16.gmra.mrb[0].mxu0 %v219
    %v993 = vpop.f32.mrb[0].mxu0
    %v994 = vadd.f32 0.0, %v993
    %v995 = vpop.f32.mrb[0].mxu0
    %v996 = vpop.f32.mrb[0].mxu0
    %v997 = vadd.f32 0.0, %v996
    %v998 = vpop.f32.mrb[0].mxu0
    %999 = vmatprep.mubr.bf16.mxu0 0
    %1000 = vmatmul.mubr.bf16.gmra.mrb[0].mxu0 %v222
    %v1001 = vpop.f32.mrb[0].mxu0
    %v1002 = vadd.f32 0.0, %v1001
    %v1003 = vpop.f32.mrb[0].mxu0
    %v1004 = vpop.f32.mrb[0].mxu0
    %v1005 = vadd.f32 0.0, %v1004
    %v1006 = vpop.f32.mrb[0].mxu0
    %1007 = vmatprep.mubr.bf16.mxu0 0
    %1008 = vmatmul.mubr.bf16.gmra.mrb[0].mxu0 %v225
    %v1009 = vpop.f32.mrb[0].mxu0
    %v1010 = vadd.f32 0.0, %v1009
    %v1011 = vpop.f32.mrb[0].mxu0
    %v1012 = vpop.f32.mrb[0].mxu0
    %v1013 = vadd.f32 0.0, %v1012
    %v1014 = vpop.f32.mrb[0].mxu0
    %1015 = vmatprep.mubr.bf16.mxu0 0
    %1016 = vmatmul.mubr.bf16.gmra.mrb[0].mxu0 %v228
    %v1017 = vpop.f32.mrb[0].mxu0
    %v1018 = vadd.f32 0.0, %v1017
    %v1019 = vpop.f32.mrb[0].mxu0
    %v1020 = vpop.f32.mrb[0].mxu0
    %v1021 = vadd.f32 0.0, %v1020
    %v1022 = vpop.f32.mrb[0].mxu0
    %1023 = vmatprep.mubr.bf16.mxu0 0
    %1024 = vmatmul.mubr.bf16.gmra.mrb[0].mxu0 %v874
    %v1025 = vpop.f32.mrb[0].mxu0
    %v1026 = vadd.f32 0.0, %v1025
    %v1027 = vpop.f32.mrb[0].mxu0
    %v1028 = vpop.f32.mrb[0].mxu0
    %v1029 = vadd.f32 0.0, %v1028
    %v1030 = vpop.f32.mrb[0].mxu0
    %1031 = vdwg.mxu0
    %v1032 = vadd.f32 %v799, %v911
    %v1033 = vadd.f32 %v800, %v913
    %v1034 = vadd.f32 %v801, %v994
    %v1035 = vadd.f32 %v802, %v915
    %v1036 = vadd.f32 %v803, %v917
    %v1037 = vadd.f32 %v804, %v997
    %v1038 = vadd.f32 %v805, %v921
    %v1039 = vadd.f32 %v806, %v923
    %v1040 = vadd.f32 %v807, %v1002
    %v1041 = vadd.f32 %v808, %v925
    %v1042 = vadd.f32 %v809, %v927
    %v1043 = vadd.f32 %v810, %v1005
    %v1044 = vadd.f32 %v811, %v931
    %v1045 = vadd.f32 %v812, %v933
    %v1046 = vadd.f32 %v813, %v1010
    %v1047 = vadd.f32 %v814, %v935
    %v1048 = vadd.f32 %v815, %v937
    %v1049 = vadd.f32 %v816, %v1013
    %v1050 = vadd.f32 %v817, %v941
    %v1051 = vadd.f32 %v818, %v943
    %v1052 = vadd.f32 %v819, %v1018
    %v1053 = vadd.f32 %v820, %v945
    %v1054 = vadd.f32 %v821, %v947
    %v1055 = vadd.f32 %v822, %v1021
    %v1056 = vadd.f32 %v823, %v951
    %v1057 = vadd.f32 %v824, %v953
    %v1058 = vadd.f32 %v825, %v1026
    %v1059 = vadd.f32 %v826, %v955
    %v1060 = vadd.f32 %v827, %v957
    %v1061 = vadd.f32 %v828, %v1029
    %s1062 = scalar_lea.vmem %s1, 192
    %v1063 = vld [vmem:[%s1062] sm:$0xff]
    %v1064 = vld [vmem:[%s1062 + $0x8] sm:$0xf]
    %v1065 = vld [vmem:[%s1062 + $0xc] sm:$0xff]
    %v1066 = vld [vmem:[%s1062 + $0x14] sm:$0xf]
    %v1067 = vld [vmem:[%s1062 + $0x18] sm:$0xff]
    %v1068 = vld [vmem:[%s1062 + $0x20] sm:$0xf]
    %v1069 = vld [vmem:[%s1062 + $0x24] sm:$0xff]
    %v1070 = vld [vmem:[%s1062 + $0x2c] sm:$0xf]
    %v1072 = vunpack.c.l.b16 %v137
    %v1073 = vpack.c.b16 %v1072, %v839
    %v1082 = vunpack.c.l.b16 %v1063
    %v1083 = vunpack.c.h.b16 %v1063
    %v1084 = vunpack.c.l.b16 %v1064
    %v1085 = vunpack.c.l.b16 %v1065
    %v1086 = vunpack.c.h.b16 %v1065
    %v1087 = vunpack.c.l.b16 %v1066
    %v1088 = vunpack.c.l.b16 %v1067
    %v1089 = vunpack.c.h.b16 %v1067
    %v1090 = vunpack.c.l.b16 %v1068
    %v1091 = vunpack.c.l.b16 %v1069
    %v1092 = vunpack.c.h.b16 %v1069
    %v1093 = vunpack.c.l.b16 %v1070
    %v1094 = vpack.c.b16 %v1085, %v1082
    %v1095 = vpack.c.b16 %v1086, %v1083
    %v1096 = vpack.c.b16 %v1087, %v1084
    %v1097 = vpack.c.b16 %v1091, %v1088
    %v1098 = vpack.c.b16 %v1092, %v1089
    %v1099 = vpack.c.b16 %v1093, %v1090
    %v1107 = vsel %vm214, %v1073, 0
    %1109 = vmatprep.subr.bf16.mxu0 %v1095
    %1110 = vmatpush1.bf16.msra.mxu0 %v1094
    %1111 = vmatprep.subr.bf16.mxu0 %v1098
    %1112 = vmatpush1.bf16.msra.mxu0 %v1097
    %1113 = vmatprep.subr.bf16.mxu0 0
    %1114 = vmatpush1.bf16.msra.mxu0 0
    %1115 = vmatprep.subr.bf16.mxu0 0
    %1116 = vmatpush1.bf16.msra.mxu0 0
    %1117 = vmatprep.subr.bf16.mxu0 0
    %1118 = vmatpush1.bf16.msra.mxu0 0
    %1119 = vmatprep.subr.bf16.mxu0 0
    %1120 = vmatpush1.bf16.msra.mxu0 0
    %1121 = vmatprep.subr.bf16.mxu0 0
    %1122 = vmatpush1.bf16.msra.mxu0 0
    %1123 = vmatprep.subr.bf16.mxu0 0
    %1124 = vmatpush1.bf16.msra.mxu0 0
    %1125 = vmatprep.subr.bf16.mxu0 0
    %1126 = vmatpush1.bf16.msra.mxu0 0
    %1127 = vmatprep.subr.bf16.mxu0 0
    %1128 = vmatpush1.bf16.msra.mxu0 0
    %1129 = vmatprep.subr.bf16.mxu0 0
    %1130 = vmatpush1.bf16.msra.mxu0 0
    %1131 = vmatprep.subr.bf16.mxu0 0
    %1132 = vmatpush1.bf16.msra.mxu0 0
    %1133 = vmatprep.subr.bf16.mxu0 0
    %1134 = vmatpush1.bf16.msra.mxu0 0
    %1135 = vmatprep.subr.bf16.mxu0 0
    %1136 = vmatpush1.bf16.msra.mxu0 0
    %1137 = vmatprep.subr.bf16.mxu0 0
    %1138 = vmatpush1.bf16.msra.mxu0 0
    %1139 = vmatprep.subr.bf16.mxu0 0
    %1140 = vmatpush1.bf16.msra.mxu0 0
    %1141 = vmatprep.mubr.bf16.mxu0 0
    %1142 = vmatmul.mubr.bf16.gmra.mrb[0].mxu0 %v432
    %v1143 = vpop.f32.mrb[0].mxu0
    %v1144 = vadd.f32 0.0, %v1143
    %v1145 = vpop.f32.mrb[0].mxu0
    %v1146 = vadd.f32 0.0, %v1145
    %v1147 = vpop.f32.mrb[0].mxu0
    %v1148 = vadd.f32 0.0, %v1147
    %v1149 = vpop.f32.mrb[0].mxu0
    %v1150 = vadd.f32 0.0, %v1149
    %1151 = vmatprep.mubr.bf16.mxu0 0
    %1152 = vmatmul.mubr.bf16.gmra.mrb[0].mxu0 %v435
    %v1153 = vpop.f32.mrb[0].mxu0
    %v1154 = vadd.f32 0.0, %v1153
    %v1155 = vpop.f32.mrb[0].mxu0
    %v1156 = vadd.f32 0.0, %v1155
    %v1157 = vpop.f32.mrb[0].mxu0
    %v1158 = vadd.f32 0.0, %v1157
    %v1159 = vpop.f32.mrb[0].mxu0
    %v1160 = vadd.f32 0.0, %v1159
    %1161 = vmatprep.mubr.bf16.mxu0 0
    %1162 = vmatmul.mubr.bf16.gmra.mrb[0].mxu0 %v438
    %v1163 = vpop.f32.mrb[0].mxu0
    %v1164 = vadd.f32 0.0, %v1163
    %v1165 = vpop.f32.mrb[0].mxu0
    %v1166 = vadd.f32 0.0, %v1165
    %v1167 = vpop.f32.mrb[0].mxu0
    %v1168 = vadd.f32 0.0, %v1167
    %v1169 = vpop.f32.mrb[0].mxu0
    %v1170 = vadd.f32 0.0, %v1169
    %1171 = vmatprep.mubr.bf16.mxu0 0
    %1172 = vmatmul.mubr.bf16.gmra.mrb[0].mxu0 %v641
    %v1173 = vpop.f32.mrb[0].mxu0
    %v1174 = vadd.f32 0.0, %v1173
    %v1175 = vpop.f32.mrb[0].mxu0
    %v1176 = vadd.f32 0.0, %v1175
    %v1177 = vpop.f32.mrb[0].mxu0
    %v1178 = vadd.f32 0.0, %v1177
    %v1179 = vpop.f32.mrb[0].mxu0
    %v1180 = vadd.f32 0.0, %v1179
    %1181 = vmatprep.mubr.bf16.mxu0 0
    %1182 = vmatmul.mubr.bf16.gmra.mrb[0].mxu0 %v1107
    %v1183 = vpop.f32.mrb[0].mxu0
    %v1184 = vadd.f32 0.0, %v1183
    %v1185 = vpop.f32.mrb[0].mxu0
    %v1186 = vadd.f32 0.0, %v1185
    %v1187 = vpop.f32.mrb[0].mxu0
    %v1188 = vadd.f32 0.0, %v1187
    %v1189 = vpop.f32.mrb[0].mxu0
    %v1190 = vadd.f32 0.0, %v1189
    %1191 = vdwg.mxu0
    %1192 = vmatprep.subr.bf16.mxu0 0
    %1193 = vmatpush1.bf16.msra.mxu0 %v1096
    %1194 = vmatprep.subr.bf16.mxu0 0
    %1195 = vmatpush1.bf16.msra.mxu0 %v1099
    %1196 = vmatprep.subr.bf16.mxu0 0
    %1197 = vmatpush1.bf16.msra.mxu0 0
    %1198 = vmatprep.subr.bf16.mxu0 0
    %1199 = vmatpush1.bf16.msra.mxu0 0
    %1200 = vmatprep.subr.bf16.mxu0 0
    %1201 = vmatpush1.bf16.msra.mxu0 0
    %1202 = vmatprep.subr.bf16.mxu0 0
    %1203 = vmatpush1.bf16.msra.mxu0 0
    %1204 = vmatprep.subr.bf16.mxu0 0
    %1205 = vmatpush1.bf16.msra.mxu0 0
    %1206 = vmatprep.subr.bf16.mxu0 0
    %1207 = vmatpush1.bf16.msra.mxu0 0
    %1208 = vmatprep.subr.bf16.mxu0 0
    %1209 = vmatpush1.bf16.msra.mxu0 0
    %1210 = vmatprep.subr.bf16.mxu0 0
    %1211 = vmatpush1.bf16.msra.mxu0 0
    %1212 = vmatprep.subr.bf16.mxu0 0
    %1213 = vmatpush1.bf16.msra.mxu0 0
    %1214 = vmatprep.subr.bf16.mxu0 0
    %1215 = vmatpush1.bf16.msra.mxu0 0
    %1216 = vmatprep.subr.bf16.mxu0 0
    %1217 = vmatpush1.bf16.msra.mxu0 0
    %1218 = vmatprep.subr.bf16.mxu0 0
    %1219 = vmatpush1.bf16.msra.mxu0 0
    %1220 = vmatprep.subr.bf16.mxu0 0
    %1221 = vmatpush1.bf16.msra.mxu0 0
    %1222 = vmatprep.subr.bf16.mxu0 0
    %1223 = vmatpush1.bf16.msra.mxu0 0
    %1224 = vmatprep.mubr.bf16.mxu0 0
    %1225 = vmatmul.mubr.bf16.gmra.mrb[0].mxu0 %v432
    %v1226 = vpop.f32.mrb[0].mxu0
    %v1227 = vadd.f32 0.0, %v1226
    %v1228 = vpop.f32.mrb[0].mxu0
    %v1229 = vpop.f32.mrb[0].mxu0
    %v1230 = vadd.f32 0.0, %v1229
    %v1231 = vpop.f32.mrb[0].mxu0
    %1232 = vmatprep.mubr.bf16.mxu0 0
    %1233 = vmatmul.mubr.bf16.gmra.mrb[0].mxu0 %v435
    %v1234 = vpop.f32.mrb[0].mxu0
    %v1235 = vadd.f32 0.0, %v1234
    %v1236 = vpop.f32.mrb[0].mxu0
    %v1237 = vpop.f32.mrb[0].mxu0
    %v1238 = vadd.f32 0.0, %v1237
    %v1239 = vpop.f32.mrb[0].mxu0
    %1240 = vmatprep.mubr.bf16.mxu0 0
    %1241 = vmatmul.mubr.bf16.gmra.mrb[0].mxu0 %v438
    %v1242 = vpop.f32.mrb[0].mxu0
    %v1243 = vadd.f32 0.0, %v1242
    %v1244 = vpop.f32.mrb[0].mxu0
    %v1245 = vpop.f32.mrb[0].mxu0
    %v1246 = vadd.f32 0.0, %v1245
    %v1247 = vpop.f32.mrb[0].mxu0
    %1248 = vmatprep.mubr.bf16.mxu0 0
    %1249 = vmatmul.mubr.bf16.gmra.mrb[0].mxu0 %v641
    %v1250 = vpop.f32.mrb[0].mxu0
    %v1251 = vadd.f32 0.0, %v1250
    %v1252 = vpop.f32.mrb[0].mxu0
    %v1253 = vpop.f32.mrb[0].mxu0
    %v1254 = vadd.f32 0.0, %v1253
    %v1255 = vpop.f32.mrb[0].mxu0
    %1256 = vmatprep.mubr.bf16.mxu0 0
    %1257 = vmatmul.mubr.bf16.gmra.mrb[0].mxu0 %v1107
    %v1258 = vpop.f32.mrb[0].mxu0
    %v1259 = vadd.f32 0.0, %v1258
    %v1260 = vpop.f32.mrb[0].mxu0
    %v1261 = vpop.f32.mrb[0].mxu0
    %v1262 = vadd.f32 0.0, %v1261
    %v1263 = vpop.f32.mrb[0].mxu0
    %1264 = vdwg.mxu0
    %v1265 = vadd.f32 %v1032, %v1144
    %v1266 = vadd.f32 %v1033, %v1146
    %v1267 = vadd.f32 %v1034, %v1227
    %v1268 = vadd.f32 %v1035, %v1148
    %v1269 = vadd.f32 %v1036, %v1150
    %v1270 = vadd.f32 %v1037, %v1230
    %v1271 = vadd.f32 %v1038, %v1154
    %v1272 = vadd.f32 %v1039, %v1156
    %v1273 = vadd.f32 %v1040, %v1235
    %v1274 = vadd.f32 %v1041, %v1158
    %v1275 = vadd.f32 %v1042, %v1160
    %v1276 = vadd.f32 %v1043, %v1238
    %v1277 = vadd.f32 %v1044, %v1164
    %v1278 = vadd.f32 %v1045, %v1166
    %v1279 = vadd.f32 %v1046, %v1243
    %v1280 = vadd.f32 %v1047, %v1168
    %v1281 = vadd.f32 %v1048, %v1170
    %v1282 = vadd.f32 %v1049, %v1246
    %v1283 = vadd.f32 %v1050, %v1174
    %v1284 = vadd.f32 %v1051, %v1176
    %v1285 = vadd.f32 %v1052, %v1251
    %v1286 = vadd.f32 %v1053, %v1178
    %v1287 = vadd.f32 %v1054, %v1180
    %v1288 = vadd.f32 %v1055, %v1254
    %v1289 = vadd.f32 %v1056, %v1184
    %v1290 = vadd.f32 %v1057, %v1186
    %v1291 = vadd.f32 %v1058, %v1259
    %v1292 = vadd.f32 %v1059, %v1188
    %v1293 = vadd.f32 %v1060, %v1190
    %v1294 = vadd.f32 %v1061, %v1262
    %s1295 = scalar_lea.vmem %s1, 240
    %v1296 = vld [vmem:[%s1295] sm:$0xff]
    %v1297 = vld [vmem:[%s1295 + $0x8] sm:$0xf]
    %v1298 = vld [vmem:[%s1295 + $0xc] sm:$0xff]
    %v1299 = vld [vmem:[%s1295 + $0x14] sm:$0xf]
    %v1300 = vld [vmem:[%s1295 + $0x18] sm:$0xff]
    %v1301 = vld [vmem:[%s1295 + $0x20] sm:$0xf]
    %v1302 = vld [vmem:[%s1295 + $0x24] sm:$0xff]
    %v1303 = vld [vmem:[%s1295 + $0x2c] sm:$0xf]
    %v1305 = vunpack.c.l.b16 %v138
    %v1306 = vpack.c.b16 %v1305, %v1072
    %v1315 = vunpack.c.l.b16 %v1296
    %v1316 = vunpack.c.h.b16 %v1296
    %v1317 = vunpack.c.l.b16 %v1297
    %v1318 = vunpack.c.l.b16 %v1298
    %v1319 = vunpack.c.h.b16 %v1298
    %v1320 = vunpack.c.l.b16 %v1299
    %v1321 = vunpack.c.l.b16 %v1300
    %v1322 = vunpack.c.h.b16 %v1300
    %v1323 = vunpack.c.l.b16 %v1301
    %v1324 = vunpack.c.l.b16 %v1302
    %v1325 = vunpack.c.h.b16 %v1302
    %v1326 = vunpack.c.l.b16 %v1303
    %v1327 = vpack.c.b16 %v1318, %v1315
    %v1328 = vpack.c.b16 %v1319, %v1316
    %v1329 = vpack.c.b16 %v1320, %v1317
    %v1330 = vpack.c.b16 %v1324, %v1321
    %v1331 = vpack.c.b16 %v1325, %v1322
    %v1332 = vpack.c.b16 %v1326, %v1323
    %v1340 = vsel %vm214, %v1306, 0
    %1342 = vmatprep.subr.bf16.mxu0 %v1328
    %1343 = vmatpush1.bf16.msra.mxu0 %v1327
    %1344 = vmatprep.subr.bf16.mxu0 %v1331
    %1345 = vmatpush1.bf16.msra.mxu0 %v1330
    %1346 = vmatprep.subr.bf16.mxu0 0
    %1347 = vmatpush1.bf16.msra.mxu0 0
    %1348 = vmatprep.subr.bf16.mxu0 0
    %1349 = vmatpush1.bf16.msra.mxu0 0
    %1350 = vmatprep.subr.bf16.mxu0 0
    %1351 = vmatpush1.bf16.msra.mxu0 0
    %1352 = vmatprep.subr.bf16.mxu0 0
    %1353 = vmatpush1.bf16.msra.mxu0 0
    %1354 = vmatprep.subr.bf16.mxu0 0
    %1355 = vmatpush1.bf16.msra.mxu0 0
    %1356 = vmatprep.subr.bf16.mxu0 0
    %1357 = vmatpush1.bf16.msra.mxu0 0
    %1358 = vmatprep.subr.bf16.mxu0 0
    %1359 = vmatpush1.bf16.msra.mxu0 0
    %1360 = vmatprep.subr.bf16.mxu0 0
    %1361 = vmatpush1.bf16.msra.mxu0 0
    %1362 = vmatprep.subr.bf16.mxu0 0
    %1363 = vmatpush1.bf16.msra.mxu0 0
    %1364 = vmatprep.subr.bf16.mxu0 0
    %1365 = vmatpush1.bf16.msra.mxu0 0
    %1366 = vmatprep.subr.bf16.mxu0 0
    %1367 = vmatpush1.bf16.msra.mxu0 0
    %1368 = vmatprep.subr.bf16.mxu0 0
    %1369 = vmatpush1.bf16.msra.mxu0 0
    %1370 = vmatprep.subr.bf16.mxu0 0
    %1371 = vmatpush1.bf16.msra.mxu0 0
    %1372 = vmatprep.subr.bf16.mxu0 0
    %1373 = vmatpush1.bf16.msra.mxu0 0
    %1374 = vmatprep.mubr.bf16.mxu0 0
    %1375 = vmatmul.mubr.bf16.gmra.mrb[0].mxu0 %v222
    %v1376 = vpop.f32.mrb[0].mxu0
    %v1377 = vadd.f32 0.0, %v1376
    %v1378 = vpop.f32.mrb[0].mxu0
    %v1379 = vadd.f32 0.0, %v1378
    %v1380 = vpop.f32.mrb[0].mxu0
    %v1381 = vadd.f32 0.0, %v1380
    %v1382 = vpop.f32.mrb[0].mxu0
    %v1383 = vadd.f32 0.0, %v1382
    %1384 = vmatprep.mubr.bf16.mxu0 0
    %1385 = vmatmul.mubr.bf16.gmra.mrb[0].mxu0 %v225
    %v1386 = vpop.f32.mrb[0].mxu0
    %v1387 = vadd.f32 0.0, %v1386
    %v1388 = vpop.f32.mrb[0].mxu0
    %v1389 = vadd.f32 0.0, %v1388
    %v1390 = vpop.f32.mrb[0].mxu0
    %v1391 = vadd.f32 0.0, %v1390
    %v1392 = vpop.f32.mrb[0].mxu0
    %v1393 = vadd.f32 0.0, %v1392
    %1394 = vmatprep.mubr.bf16.mxu0 0
    %1395 = vmatmul.mubr.bf16.gmra.mrb[0].mxu0 %v228
    %v1396 = vpop.f32.mrb[0].mxu0
    %v1397 = vadd.f32 0.0, %v1396
    %v1398 = vpop.f32.mrb[0].mxu0
    %v1399 = vadd.f32 0.0, %v1398
    %v1400 = vpop.f32.mrb[0].mxu0
    %v1401 = vadd.f32 0.0, %v1400
    %v1402 = vpop.f32.mrb[0].mxu0
    %v1403 = vadd.f32 0.0, %v1402
    %1404 = vmatprep.mubr.bf16.mxu0 0
    %1405 = vmatmul.mubr.bf16.gmra.mrb[0].mxu0 %v874
    %v1406 = vpop.f32.mrb[0].mxu0
    %v1407 = vadd.f32 0.0, %v1406
    %v1408 = vpop.f32.mrb[0].mxu0
    %v1409 = vadd.f32 0.0, %v1408
    %v1410 = vpop.f32.mrb[0].mxu0
    %v1411 = vadd.f32 0.0, %v1410
    %v1412 = vpop.f32.mrb[0].mxu0
    %v1413 = vadd.f32 0.0, %v1412
    %1414 = vmatprep.mubr.bf16.mxu0 0
    %1415 = vmatmul.mubr.bf16.gmra.mrb[0].mxu0 %v1340
    %v1416 = vpop.f32.mrb[0].mxu0
    %v1417 = vadd.f32 0.0, %v1416
    %v1418 = vpop.f32.mrb[0].mxu0
    %v1419 = vadd.f32 0.0, %v1418
    %v1420 = vpop.f32.mrb[0].mxu0
    %v1421 = vadd.f32 0.0, %v1420
    %v1422 = vpop.f32.mrb[0].mxu0
    %v1423 = vadd.f32 0.0, %v1422
    %1424 = vdwg.mxu0
    %1425 = vmatprep.subr.bf16.mxu0 0
    %1426 = vmatpush1.bf16.msra.mxu0 %v1329
    %1427 = vmatprep.subr.bf16.mxu0 0
    %1428 = vmatpush1.bf16.msra.mxu0 %v1332
    %1429 = vmatprep.subr.bf16.mxu0 0
    %1430 = vmatpush1.bf16.msra.mxu0 0
    %1431 = vmatprep.subr.bf16.mxu0 0
    %1432 = vmatpush1.bf16.msra.mxu0 0
    %1433 = vmatprep.subr.bf16.mxu0 0
    %1434 = vmatpush1.bf16.msra.mxu0 0
    %1435 = vmatprep.subr.bf16.mxu0 0
    %1436 = vmatpush1.bf16.msra.mxu0 0
    %1437 = vmatprep.subr.bf16.mxu0 0
    %1438 = vmatpush1.bf16.msra.mxu0 0
    %1439 = vmatprep.subr.bf16.mxu0 0
    %1440 = vmatpush1.bf16.msra.mxu0 0
    %1441 = vmatprep.subr.bf16.mxu0 0
    %1442 = vmatpush1.bf16.msra.mxu0 0
    %1443 = vmatprep.subr.bf16.mxu0 0
    %1444 = vmatpush1.bf16.msra.mxu0 0
    %1445 = vmatprep.subr.bf16.mxu0 0
    %1446 = vmatpush1.bf16.msra.mxu0 0
    %1447 = vmatprep.subr.bf16.mxu0 0
    %1448 = vmatpush1.bf16.msra.mxu0 0
    %1449 = vmatprep.subr.bf16.mxu0 0
    %1450 = vmatpush1.bf16.msra.mxu0 0
    %1451 = vmatprep.subr.bf16.mxu0 0
    %1452 = vmatpush1.bf16.msra.mxu0 0
    %1453 = vmatprep.subr.bf16.mxu0 0
    %1454 = vmatpush1.bf16.msra.mxu0 0
    %1455 = vmatprep.subr.bf16.mxu0 0
    %1456 = vmatpush1.bf16.msra.mxu0 0
    %1457 = vmatprep.mubr.bf16.mxu0 0
    %1458 = vmatmul.mubr.bf16.gmra.mrb[0].mxu0 %v222
    %v1459 = vpop.f32.mrb[0].mxu0
    %v1460 = vadd.f32 0.0, %v1459
    %v1461 = vpop.f32.mrb[0].mxu0
    %v1462 = vpop.f32.mrb[0].mxu0
    %v1463 = vadd.f32 0.0, %v1462
    %v1464 = vpop.f32.mrb[0].mxu0
    %1465 = vmatprep.mubr.bf16.mxu0 0
    %1466 = vmatmul.mubr.bf16.gmra.mrb[0].mxu0 %v225
    %v1467 = vpop.f32.mrb[0].mxu0
    %v1468 = vadd.f32 0.0, %v1467
    %v1469 = vpop.f32.mrb[0].mxu0
    %v1470 = vpop.f32.mrb[0].mxu0
    %v1471 = vadd.f32 0.0, %v1470
    %v1472 = vpop.f32.mrb[0].mxu0
    %1473 = vmatprep.mubr.bf16.mxu0 0
    %1474 = vmatmul.mubr.bf16.gmra.mrb[0].mxu0 %v228
    %v1475 = vpop.f32.mrb[0].mxu0
    %v1476 = vadd.f32 0.0, %v1475
    %v1477 = vpop.f32.mrb[0].mxu0
    %v1478 = vpop.f32.mrb[0].mxu0
    %v1479 = vadd.f32 0.0, %v1478
    %v1480 = vpop.f32.mrb[0].mxu0
    %1481 = vmatprep.mubr.bf16.mxu0 0
    %1482 = vmatmul.mubr.bf16.gmra.mrb[0].mxu0 %v874
    %v1483 = vpop.f32.mrb[0].mxu0
    %v1484 = vadd.f32 0.0, %v1483
    %v1485 = vpop.f32.mrb[0].mxu0
    %v1486 = vpop.f32.mrb[0].mxu0
    %v1487 = vadd.f32 0.0, %v1486
    %v1488 = vpop.f32.mrb[0].mxu0
    %1489 = vmatprep.mubr.bf16.mxu0 0
    %1490 = vmatmul.mubr.bf16.gmra.mrb[0].mxu0 %v1340
    %v1491 = vpop.f32.mrb[0].mxu0
    %v1492 = vadd.f32 0.0, %v1491
    %v1493 = vpop.f32.mrb[0].mxu0
    %v1494 = vpop.f32.mrb[0].mxu0
    %v1495 = vadd.f32 0.0, %v1494
    %v1496 = vpop.f32.mrb[0].mxu0
    %1497 = vdwg.mxu0
    %v1498 = vadd.f32 %v1265, %v1377
    %v1499 = vadd.f32 %v1266, %v1379
    %v1500 = vadd.f32 %v1267, %v1460
    %v1501 = vadd.f32 %v1268, %v1381
    %v1502 = vadd.f32 %v1269, %v1383
    %v1503 = vadd.f32 %v1270, %v1463
    %v1504 = vadd.f32 %v1271, %v1387
    %v1505 = vadd.f32 %v1272, %v1389
    %v1506 = vadd.f32 %v1273, %v1468
    %v1507 = vadd.f32 %v1274, %v1391
    %v1508 = vadd.f32 %v1275, %v1393
    %v1509 = vadd.f32 %v1276, %v1471
    %v1510 = vadd.f32 %v1277, %v1397
    %v1511 = vadd.f32 %v1278, %v1399
    %v1512 = vadd.f32 %v1279, %v1476
    %v1513 = vadd.f32 %v1280, %v1401
    %v1514 = vadd.f32 %v1281, %v1403
    %v1515 = vadd.f32 %v1282, %v1479
    %v1516 = vadd.f32 %v1283, %v1407
    %v1517 = vadd.f32 %v1284, %v1409
    %v1518 = vadd.f32 %v1285, %v1484
    %v1519 = vadd.f32 %v1286, %v1411
    %v1520 = vadd.f32 %v1287, %v1413
    %v1521 = vadd.f32 %v1288, %v1487
    %v1522 = vadd.f32 %v1289, %v1417
    %v1523 = vadd.f32 %v1290, %v1419
    %v1524 = vadd.f32 %v1291, %v1492
    %v1525 = vadd.f32 %v1292, %v1421
    %v1526 = vadd.f32 %v1293, %v1423
    %v1527 = vadd.f32 %v1294, %v1495
    %s1528 = scalar_lea.vmem %s1, 288
    %v1529 = vld [vmem:[%s1528] sm:$0xff]
    %v1530 = vld [vmem:[%s1528 + $0x8] sm:$0xf]
    %v1531 = vld [vmem:[%s1528 + $0xc] sm:$0xff]
    %v1532 = vld [vmem:[%s1528 + $0x14] sm:$0xf]
    %v1533 = vld [vmem:[%s1528 + $0x18] sm:$0xff]
    %v1534 = vld [vmem:[%s1528 + $0x20] sm:$0xf]
    %v1535 = vld [vmem:[%s1528 + $0x24] sm:$0xff]
    %v1536 = vld [vmem:[%s1528 + $0x2c] sm:$0xf]
    %v1538 = vunpack.c.l.b16 %v139
    %v1539 = vpack.c.b16 %v1538, %v1305
    %v1548 = vunpack.c.l.b16 %v1529
    %v1549 = vunpack.c.h.b16 %v1529
    %v1550 = vunpack.c.l.b16 %v1530
    %v1551 = vunpack.c.l.b16 %v1531
    %v1552 = vunpack.c.h.b16 %v1531
    %v1553 = vunpack.c.l.b16 %v1532
    %v1554 = vunpack.c.l.b16 %v1533
    %v1555 = vunpack.c.h.b16 %v1533
    %v1556 = vunpack.c.l.b16 %v1534
    %v1557 = vunpack.c.l.b16 %v1535
    %v1558 = vunpack.c.h.b16 %v1535
    %v1559 = vunpack.c.l.b16 %v1536
    %v1560 = vpack.c.b16 %v1551, %v1548
    %v1561 = vpack.c.b16 %v1552, %v1549
    %v1562 = vpack.c.b16 %v1553, %v1550
    %v1563 = vpack.c.b16 %v1557, %v1554
    %v1564 = vpack.c.b16 %v1558, %v1555
    %v1565 = vpack.c.b16 %v1559, %v1556
    %v1573 = vsel %vm214, %v1539, 0
    %1575 = vmatprep.subr.bf16.mxu0 %v1561
    %1576 = vmatpush1.bf16.msra.mxu0 %v1560
    %1577 = vmatprep.subr.bf16.mxu0 %v1564
    %1578 = vmatpush1.bf16.msra.mxu0 %v1563
    %1579 = vmatprep.subr.bf16.mxu0 0
    %1580 = vmatpush1.bf16.msra.mxu0 0
    %1581 = vmatprep.subr.bf16.mxu0 0
    %1582 = vmatpush1.bf16.msra.mxu0 0
    %1583 = vmatprep.subr.bf16.mxu0 0
    %1584 = vmatpush1.bf16.msra.mxu0 0
    %1585 = vmatprep.subr.bf16.mxu0 0
    %1586 = vmatpush1.bf16.msra.mxu0 0
    %1587 = vmatprep.subr.bf16.mxu0 0
    %1588 = vmatpush1.bf16.msra.mxu0 0
    %1589 = vmatprep.subr.bf16.mxu0 0
    %1590 = vmatpush1.bf16.msra.mxu0 0
    %1591 = vmatprep.subr.bf16.mxu0 0
    %1592 = vmatpush1.bf16.msra.mxu0 0
    %1593 = vmatprep.subr.bf16.mxu0 0
    %1594 = vmatpush1.bf16.msra.mxu0 0
    %1595 = vmatprep.subr.bf16.mxu0 0
    %1596 = vmatpush1.bf16.msra.mxu0 0
    %1597 = vmatprep.subr.bf16.mxu0 0
    %1598 = vmatpush1.bf16.msra.mxu0 0
    %1599 = vmatprep.subr.bf16.mxu0 0
    %1600 = vmatpush1.bf16.msra.mxu0 0
    %1601 = vmatprep.subr.bf16.mxu0 0
    %1602 = vmatpush1.bf16.msra.mxu0 0
    %1603 = vmatprep.subr.bf16.mxu0 0
    %1604 = vmatpush1.bf16.msra.mxu0 0
    %1605 = vmatprep.subr.bf16.mxu0 0
    %1606 = vmatpush1.bf16.msra.mxu0 0
    %1607 = vmatprep.mubr.bf16.mxu0 0
    %1608 = vmatmul.mubr.bf16.gmra.mrb[0].mxu0 %v435
    %v1609 = vpop.f32.mrb[0].mxu0
    %v1610 = vadd.f32 0.0, %v1609
    %v1611 = vpop.f32.mrb[0].mxu0
    %v1612 = vadd.f32 0.0, %v1611
    %v1613 = vpop.f32.mrb[0].mxu0
    %v1614 = vadd.f32 0.0, %v1613
    %v1615 = vpop.f32.mrb[0].mxu0
    %v1616 = vadd.f32 0.0, %v1615
    %1617 = vmatprep.mubr.bf16.mxu0 0
    %1618 = vmatmul.mubr.bf16.gmra.mrb[0].mxu0 %v438
    %v1619 = vpop.f32.mrb[0].mxu0
    %v1620 = vadd.f32 0.0, %v1619
    %v1621 = vpop.f32.mrb[0].mxu0
    %v1622 = vadd.f32 0.0, %v1621
    %v1623 = vpop.f32.mrb[0].mxu0
    %v1624 = vadd.f32 0.0, %v1623
    %v1625 = vpop.f32.mrb[0].mxu0
    %v1626 = vadd.f32 0.0, %v1625
    %1627 = vmatprep.mubr.bf16.mxu0 0
    %1628 = vmatmul.mubr.bf16.gmra.mrb[0].mxu0 %v641
    %v1629 = vpop.f32.mrb[0].mxu0
    %v1630 = vadd.f32 0.0, %v1629
    %v1631 = vpop.f32.mrb[0].mxu0
    %v1632 = vadd.f32 0.0, %v1631
    %v1633 = vpop.f32.mrb[0].mxu0
    %v1634 = vadd.f32 0.0, %v1633
    %v1635 = vpop.f32.mrb[0].mxu0
    %v1636 = vadd.f32 0.0, %v1635
    %1637 = vmatprep.mubr.bf16.mxu0 0
    %1638 = vmatmul.mubr.bf16.gmra.mrb[0].mxu0 %v1107
    %v1639 = vpop.f32.mrb[0].mxu0
    %v1640 = vadd.f32 0.0, %v1639
    %v1641 = vpop.f32.mrb[0].mxu0
    %v1642 = vadd.f32 0.0, %v1641
    %v1643 = vpop.f32.mrb[0].mxu0
    %v1644 = vadd.f32 0.0, %v1643
    %v1645 = vpop.f32.mrb[0].mxu0
    %v1646 = vadd.f32 0.0, %v1645
    %1647 = vmatprep.mubr.bf16.mxu0 0
    %1648 = vmatmul.mubr.bf16.gmra.mrb[0].mxu0 %v1573
    %v1649 = vpop.f32.mrb[0].mxu0
    %v1650 = vadd.f32 0.0, %v1649
    %v1651 = vpop.f32.mrb[0].mxu0
    %v1652 = vadd.f32 0.0, %v1651
    %v1653 = vpop.f32.mrb[0].mxu0
    %v1654 = vadd.f32 0.0, %v1653
    %v1655 = vpop.f32.mrb[0].mxu0
    %v1656 = vadd.f32 0.0, %v1655
    %1657 = vdwg.mxu0
    %1658 = vmatprep.subr.bf16.mxu0 0
    %1659 = vmatpush1.bf16.msra.mxu0 %v1562
    %1660 = vmatprep.subr.bf16.mxu0 0
    %1661 = vmatpush1.bf16.msra.mxu0 %v1565
    %1662 = vmatprep.subr.bf16.mxu0 0
    %1663 = vmatpush1.bf16.msra.mxu0 0
    %1664 = vmatprep.subr.bf16.mxu0 0
    %1665 = vmatpush1.bf16.msra.mxu0 0
    %1666 = vmatprep.subr.bf16.mxu0 0
    %1667 = vmatpush1.bf16.msra.mxu0 0
    %1668 = vmatprep.subr.bf16.mxu0 0
    %1669 = vmatpush1.bf16.msra.mxu0 0
    %1670 = vmatprep.subr.bf16.mxu0 0
    %1671 = vmatpush1.bf16.msra.mxu0 0
    %1672 = vmatprep.subr.bf16.mxu0 0
    %1673 = vmatpush1.bf16.msra.mxu0 0
    %1674 = vmatprep.subr.bf16.mxu0 0
    %1675 = vmatpush1.bf16.msra.mxu0 0
    %1676 = vmatprep.subr.bf16.mxu0 0
    %1677 = vmatpush1.bf16.msra.mxu0 0
    %1678 = vmatprep.subr.bf16.mxu0 0
    %1679 = vmatpush1.bf16.msra.mxu0 0
    %1680 = vmatprep.subr.bf16.mxu0 0
    %1681 = vmatpush1.bf16.msra.mxu0 0
    %1682 = vmatprep.subr.bf16.mxu0 0
    %1683 = vmatpush1.bf16.msra.mxu0 0
    %1684 = vmatprep.subr.bf16.mxu0 0
    %1685 = vmatpush1.bf16.msra.mxu0 0
    %1686 = vmatprep.subr.bf16.mxu0 0
    %1687 = vmatpush1.bf16.msra.mxu0 0
    %1688 = vmatprep.subr.bf16.mxu0 0
    %1689 = vmatpush1.bf16.msra.mxu0 0
    %1690 = vmatprep.mubr.bf16.mxu0 0
    %1691 = vmatmul.mubr.bf16.gmra.mrb[0].mxu0 %v435
    %v1692 = vpop.f32.mrb[0].mxu0
    %v1693 = vadd.f32 0.0, %v1692
    %v1694 = vpop.f32.mrb[0].mxu0
    %v1695 = vpop.f32.mrb[0].mxu0
    %v1696 = vadd.f32 0.0, %v1695
    %v1697 = vpop.f32.mrb[0].mxu0
    %1698 = vmatprep.mubr.bf16.mxu0 0
    %1699 = vmatmul.mubr.bf16.gmra.mrb[0].mxu0 %v438
    %v1700 = vpop.f32.mrb[0].mxu0
    %v1701 = vadd.f32 0.0, %v1700
    %v1702 = vpop.f32.mrb[0].mxu0
    %v1703 = vpop.f32.mrb[0].mxu0
    %v1704 = vadd.f32 0.0, %v1703
    %v1705 = vpop.f32.mrb[0].mxu0
    %1706 = vmatprep.mubr.bf16.mxu0 0
    %1707 = vmatmul.mubr.bf16.gmra.mrb[0].mxu0 %v641
    %v1708 = vpop.f32.mrb[0].mxu0
    %v1709 = vadd.f32 0.0, %v1708
    %v1710 = vpop.f32.mrb[0].mxu0
    %v1711 = vpop.f32.mrb[0].mxu0
    %v1712 = vadd.f32 0.0, %v1711
    %v1713 = vpop.f32.mrb[0].mxu0
    %1714 = vmatprep.mubr.bf16.mxu0 0
    %1715 = vmatmul.mubr.bf16.gmra.mrb[0].mxu0 %v1107
    %v1716 = vpop.f32.mrb[0].mxu0
    %v1717 = vadd.f32 0.0, %v1716
    %v1718 = vpop.f32.mrb[0].mxu0
    %v1719 = vpop.f32.mrb[0].mxu0
    %v1720 = vadd.f32 0.0, %v1719
    %v1721 = vpop.f32.mrb[0].mxu0
    %1722 = vmatprep.mubr.bf16.mxu0 0
    %1723 = vmatmul.mubr.bf16.gmra.mrb[0].mxu0 %v1573
    %v1724 = vpop.f32.mrb[0].mxu0
    %v1725 = vadd.f32 0.0, %v1724
    %v1726 = vpop.f32.mrb[0].mxu0
    %v1727 = vpop.f32.mrb[0].mxu0
    %v1728 = vadd.f32 0.0, %v1727
    %v1729 = vpop.f32.mrb[0].mxu0
    %1730 = vdwg.mxu0
    %v1731 = vadd.f32 %v1498, %v1610
    %v1732 = vadd.f32 %v1499, %v1612
    %v1733 = vadd.f32 %v1500, %v1693
    %v1734 = vadd.f32 %v1501, %v1614
    %v1735 = vadd.f32 %v1502, %v1616
    %v1736 = vadd.f32 %v1503, %v1696
    %v1737 = vadd.f32 %v1504, %v1620
    %v1738 = vadd.f32 %v1505, %v1622
    %v1739 = vadd.f32 %v1506, %v1701
    %v1740 = vadd.f32 %v1507, %v1624
    %v1741 = vadd.f32 %v1508, %v1626
    %v1742 = vadd.f32 %v1509, %v1704
    %v1743 = vadd.f32 %v1510, %v1630
    %v1744 = vadd.f32 %v1511, %v1632
    %v1745 = vadd.f32 %v1512, %v1709
    %v1746 = vadd.f32 %v1513, %v1634
    %v1747 = vadd.f32 %v1514, %v1636
    %v1748 = vadd.f32 %v1515, %v1712
    %v1749 = vadd.f32 %v1516, %v1640
    %v1750 = vadd.f32 %v1517, %v1642
    %v1751 = vadd.f32 %v1518, %v1717
    %v1752 = vadd.f32 %v1519, %v1644
    %v1753 = vadd.f32 %v1520, %v1646
    %v1754 = vadd.f32 %v1521, %v1720
    %v1755 = vadd.f32 %v1522, %v1650
    %v1756 = vadd.f32 %v1523, %v1652
    %v1757 = vadd.f32 %v1524, %v1725
    %v1758 = vadd.f32 %v1525, %v1654
    %v1759 = vadd.f32 %v1526, %v1656
    %v1760 = vadd.f32 %v1527, %v1728
    %v1761 = vld [vmem:[#allocation2] sm:$0x7]
    %v1763 = vlaneseq
    %v1764 = vshrl.u32 %v1763, 7
    %v1765 = vsub.s32 0, %v1764
    %v1766 = vrot.slane %v1761, %v1765
    %v1767 = vlaneseq
    %v1768 = vshrl.u32 %v1767, 7
    %v1769 = vsub.s32 1, %v1768
    %v1770 = vrot.slane %v1761, %v1769
    %v1771 = vlaneseq
    %v1772 = vshrl.u32 %v1771, 7
    %v1773 = vsub.s32 2, %v1772
    %v1774 = vrot.slane %v1761, %v1773
    %v1778 = vadd.f32 %v1731, %v1766
    %v1779 = vadd.f32 %v1732, %v1770
    %v1780 = vadd.f32 %v1733, %v1774
    %v1781 = vadd.f32 %v1734, %v1766
    %v1782 = vadd.f32 %v1735, %v1770
    %v1783 = vadd.f32 %v1736, %v1774
    %v1784 = vadd.f32 %v1737, %v1766
    %v1785 = vadd.f32 %v1738, %v1770
    %v1786 = vadd.f32 %v1739, %v1774
    %v1787 = vadd.f32 %v1740, %v1766
    %v1788 = vadd.f32 %v1741, %v1770
    %v1789 = vadd.f32 %v1742, %v1774
    %v1790 = vadd.f32 %v1743, %v1766
    %v1791 = vadd.f32 %v1744, %v1770
    %v1792 = vadd.f32 %v1745, %v1774
    %v1793 = vadd.f32 %v1746, %v1766
    %v1794 = vadd.f32 %v1747, %v1770
    %v1795 = vadd.f32 %v1748, %v1774
    %v1796 = vadd.f32 %v1749, %v1766
    %v1797 = vadd.f32 %v1750, %v1770
    %v1798 = vadd.f32 %v1751, %v1774
    %v1799 = vadd.f32 %v1752, %v1766
    %v1800 = vadd.f32 %v1753, %v1770
    %v1801 = vadd.f32 %v1754, %v1774
    %v1802 = vadd.f32 %v1755, %v1766
    %v1803 = vadd.f32 %v1756, %v1770
    %v1804 = vadd.f32 %v1757, %v1774
    %v1805 = vadd.f32 %v1758, %v1766
    %v1806 = vadd.f32 %v1759, %v1770
    %v1807 = vadd.f32 %v1760, %v1774
    %vm1808 = vcmp.ge.f32.partialorder %v1778, 0.0
    %vm1809 = vcmp.ge.f32.partialorder %v1779, 0.0
    %vm1810 = vcmp.ge.f32.partialorder %v1780, 0.0
    %vm1811 = vcmp.ge.f32.partialorder %v1781, 0.0
    %vm1812 = vcmp.ge.f32.partialorder %v1782, 0.0
    %vm1813 = vcmp.ge.f32.partialorder %v1783, 0.0
    %vm1814 = vcmp.ge.f32.partialorder %v1784, 0.0
    %vm1815 = vcmp.ge.f32.partialorder %v1785, 0.0
    %vm1816 = vcmp.ge.f32.partialorder %v1786, 0.0
    %vm1817 = vcmp.ge.f32.partialorder %v1787, 0.0
    %vm1818 = vcmp.ge.f32.partialorder %v1788, 0.0
    %vm1819 = vcmp.ge.f32.partialorder %v1789, 0.0
    %vm1820 = vcmp.ge.f32.partialorder %v1790, 0.0
    %vm1821 = vcmp.ge.f32.partialorder %v1791, 0.0
    %vm1822 = vcmp.ge.f32.partialorder %v1792, 0.0
    %vm1823 = vcmp.ge.f32.partialorder %v1793, 0.0
    %vm1824 = vcmp.ge.f32.partialorder %v1794, 0.0
    %vm1825 = vcmp.ge.f32.partialorder %v1795, 0.0
    %vm1826 = vcmp.ge.f32.partialorder %v1796, 0.0
    %vm1827 = vcmp.ge.f32.partialorder %v1797, 0.0
    %vm1828 = vcmp.ge.f32.partialorder %v1798, 0.0
    %vm1829 = vcmp.ge.f32.partialorder %v1799, 0.0
    %vm1830 = vcmp.ge.f32.partialorder %v1800, 0.0
    %vm1831 = vcmp.ge.f32.partialorder %v1801, 0.0
    %vm1832 = vcmp.ge.f32.partialorder %v1802, 0.0
    %vm1833 = vcmp.ge.f32.partialorder %v1803, 0.0
    %vm1834 = vcmp.ge.f32.partialorder %v1804, 0.0
    %vm1835 = vcmp.ge.f32.partialorder %v1805, 0.0
    %vm1836 = vcmp.ge.f32.partialorder %v1806, 0.0
    %vm1837 = vcmp.ge.f32.partialorder %v1807, 0.0
    %v1838 = vmul.f32 %v1778, 0.01
    %v1839 = vmul.f32 %v1779, 0.01
    %v1840 = vmul.f32 %v1780, 0.01
    %v1841 = vmul.f32 %v1781, 0.01
    %v1842 = vmul.f32 %v1782, 0.01
    %v1843 = vmul.f32 %v1783, 0.01
    %v1844 = vmul.f32 %v1784, 0.01
    %v1845 = vmul.f32 %v1785, 0.01
    %v1846 = vmul.f32 %v1786, 0.01
    %v1847 = vmul.f32 %v1787, 0.01
    %v1848 = vmul.f32 %v1788, 0.01
    %v1849 = vmul.f32 %v1789, 0.01
    %v1850 = vmul.f32 %v1790, 0.01
    %v1851 = vmul.f32 %v1791, 0.01
    %v1852 = vmul.f32 %v1792, 0.01
    %v1853 = vmul.f32 %v1793, 0.01
    %v1854 = vmul.f32 %v1794, 0.01
    %v1855 = vmul.f32 %v1795, 0.01
    %v1856 = vmul.f32 %v1796, 0.01
    %v1857 = vmul.f32 %v1797, 0.01
    %v1858 = vmul.f32 %v1798, 0.01
    %v1859 = vmul.f32 %v1799, 0.01
    %v1860 = vmul.f32 %v1800, 0.01
    %v1861 = vmul.f32 %v1801, 0.01
    %v1862 = vmul.f32 %v1802, 0.01
    %v1863 = vmul.f32 %v1803, 0.01
    %v1864 = vmul.f32 %v1804, 0.01
    %v1865 = vmul.f32 %v1805, 0.01
    %v1866 = vmul.f32 %v1806, 0.01
    %v1867 = vmul.f32 %v1807, 0.01
    %v1868 = vsel %vm1808, %v1778, %v1838
    %v1869 = vsel %vm1809, %v1779, %v1839
    %v1870 = vsel %vm1810, %v1780, %v1840
    %v1871 = vsel %vm1811, %v1781, %v1841
    %v1872 = vsel %vm1812, %v1782, %v1842
    %v1873 = vsel %vm1813, %v1783, %v1843
    %v1874 = vsel %vm1814, %v1784, %v1844
    %v1875 = vsel %vm1815, %v1785, %v1845
    %v1876 = vsel %vm1816, %v1786, %v1846
    %v1877 = vsel %vm1817, %v1787, %v1847
    %v1878 = vsel %vm1818, %v1788, %v1848
    %v1879 = vsel %vm1819, %v1789, %v1849
    %v1880 = vsel %vm1820, %v1790, %v1850
    %v1881 = vsel %vm1821, %v1791, %v1851
    %v1882 = vsel %vm1822, %v1792, %v1852
    %v1883 = vsel %vm1823, %v1793, %v1853
    %v1884 = vsel %vm1824, %v1794, %v1854
    %v1885 = vsel %vm1825, %v1795, %v1855
    %v1886 = vsel %vm1826, %v1796, %v1856
    %v1887 = vsel %vm1827, %v1797, %v1857
    %v1888 = vsel %vm1828, %v1798, %v1858
    %v1889 = vsel %vm1829, %v1799, %v1859
    %v1890 = vsel %vm1830, %v1800, %v1860
    %v1891 = vsel %vm1831, %v1801, %v1861
    %v1892 = vsel %vm1832, %v1802, %v1862
    %v1893 = vsel %vm1833, %v1803, %v1863
    %v1894 = vsel %vm1834, %v1804, %v1864
    %v1895 = vsel %vm1835, %v1805, %v1865
    %v1896 = vsel %vm1836, %v1806, %v1866
    %v1897 = vsel %vm1837, %v1807, %v1867
    %v1898 = vpack.c.bf16 %v1871, %v1868
    %v1899 = vpack.c.bf16 %v1872, %v1869
    %v1900 = vpack.c.bf16 %v1873, %v1870
    %v1901 = vpack.c.bf16 %v1877, %v1874
    %v1902 = vpack.c.bf16 %v1878, %v1875
    %v1903 = vpack.c.bf16 %v1879, %v1876
    %v1904 = vpack.c.bf16 %v1883, %v1880
    %v1905 = vpack.c.bf16 %v1884, %v1881
    %v1906 = vpack.c.bf16 %v1885, %v1882
    %v1907 = vpack.c.bf16 %v1889, %v1886
    %v1908 = vpack.c.bf16 %v1890, %v1887
    %v1909 = vpack.c.bf16 %v1891, %v1888
    %v1910 = vpack.c.bf16 %v1895, %v1892
    %v1911 = vpack.c.bf16 %v1896, %v1893
    %v1912 = vpack.c.bf16 %v1897, %v1894
    %v1913 = vld [vmem:[#allocation4] sm:$0xff]
    %v1914 = vld [vmem:[#allocation4 + $0x8] sm:$0xf]
    %v1915 = vld [vmem:[#allocation4 + $0xc] sm:$0xff]
    %v1916 = vld [vmem:[#allocation4 + $0x14] sm:$0xf]
    %v1917 = vld [vmem:[#allocation4 + $0x18] sm:$0xff]
    %v1918 = vld [vmem:[#allocation4 + $0x20] sm:$0xf]
    %v1919 = vld [vmem:[#allocation4 + $0x24] sm:$0xff]
    %v1920 = vld [vmem:[#allocation4 + $0x2c] sm:$0xf]
    %v1921 = vld [vmem:[#allocation4 + $0x30] sm:$0xff]
    %v1922 = vld [vmem:[#allocation4 + $0x38] sm:$0xf]
    %v1923 = vld [vmem:[#allocation4 + $0x3c] sm:$0xff]
    %v1924 = vld [vmem:[#allocation4 + $0x44] sm:$0xf]
    %v1925 = vld [vmem:[#allocation4 + $0x48] sm:$0xff]
    %v1926 = vld [vmem:[#allocation4 + $0x50] sm:$0xf]
    %v1927 = vld [vmem:[#allocation4 + $0x54] sm:$0xff]
    %v1928 = vld [vmem:[#allocation4 + $0x5c] sm:$0xf]
    %v1929 = vld [vmem:[#allocation4 + $0x60] sm:$0xff]
    %v1930 = vld [vmem:[#allocation4 + $0x68] sm:$0xf]
    %v1931 = vld [vmem:[#allocation4 + $0x6c] sm:$0xff]
    %v1932 = vld [vmem:[#allocation4 + $0x74] sm:$0xf]
    %v1933 = vld [vmem:[#allocation4 + $0x78] sm:$0xff]
    %v1934 = vld [vmem:[#allocation4 + $0x80] sm:$0xf]
    %v1935 = vld [vmem:[#allocation4 + $0x84] sm:$0xff]
    %v1936 = vld [vmem:[#allocation4 + $0x8c] sm:$0xf]
    %v1937 = vld [vmem:[#allocation4 + $0x90] sm:$0xff]
    %v1938 = vld [vmem:[#allocation4 + $0x98] sm:$0xf]
    %v1939 = vld [vmem:[#allocation4 + $0x9c] sm:$0xff]
    %v1940 = vld [vmem:[#allocation4 + $0xa4] sm:$0xf]
    %v1941 = vld [vmem:[#allocation4 + $0xa8] sm:$0xff]
    %v1942 = vld [vmem:[#allocation4 + $0xb0] sm:$0xf]
    %v1943 = vld [vmem:[#allocation4 + $0xb4] sm:$0xff]
    %v1944 = vld [vmem:[#allocation4 + $0xbc] sm:$0xf]
    %v1945 = vld [vmem:[#allocation4 + $0xc0] sm:$0xff]
    %v1946 = vld [vmem:[#allocation4 + $0xc8] sm:$0xf]
    %v1947 = vld [vmem:[#allocation4 + $0xcc] sm:$0xff]
    %v1948 = vld [vmem:[#allocation4 + $0xd4] sm:$0xf]
    %v1949 = vld [vmem:[#allocation4 + $0xd8] sm:$0xff]
    %v1950 = vld [vmem:[#allocation4 + $0xe0] sm:$0xf]
    %v1951 = vld [vmem:[#allocation4 + $0xe4] sm:$0xff]
    %v1952 = vld [vmem:[#allocation4 + $0xec] sm:$0xf]
    %v1953 = vld [vmem:[#allocation4 + $0xf0] sm:$0xff]
    %v1954 = vld [vmem:[#allocation4 + $0xf8] sm:$0xf]
    %v1955 = vld [vmem:[#allocation4 + $0xfc] sm:$0xff]
    %v1956 = vld [vmem:[#allocation4 + $0x104] sm:$0xf]
    %v1957 = vld [vmem:[#allocation4 + $0x108] sm:$0xff]
    %v1958 = vld [vmem:[#allocation4 + $0x110] sm:$0xf]
    %v1959 = vld [vmem:[#allocation4 + $0x114] sm:$0xff]
    %v1960 = vld [vmem:[#allocation4 + $0x11c] sm:$0xf]
    %v1961 = vld [vmem:[#allocation4 + $0x120] sm:$0xff]
    %v1962 = vld [vmem:[#allocation4 + $0x128] sm:$0xf]
    %v1963 = vld [vmem:[#allocation4 + $0x12c] sm:$0xff]
    %v1964 = vld [vmem:[#allocation4 + $0x134] sm:$0xf]
    %v1965 = vld [vmem:[#allocation4 + $0x138] sm:$0xff]
    %v1966 = vld [vmem:[#allocation4 + $0x140] sm:$0xf]
    %v1967 = vld [vmem:[#allocation4 + $0x144] sm:$0xff]
    %v1968 = vld [vmem:[#allocation4 + $0x14c] sm:$0xf]
    %v1969 = vld [vmem:[#allocation4 + $0x150] sm:$0xff]
    %v1970 = vld [vmem:[#allocation4 + $0x158] sm:$0xf]
    %v1971 = vld [vmem:[#allocation4 + $0x15c] sm:$0xff]
    %v1972 = vld [vmem:[#allocation4 + $0x164] sm:$0xf]
    %v1973 = vld [vmem:[#allocation4 + $0x168] sm:$0xff]
    %v1974 = vld [vmem:[#allocation4 + $0x170] sm:$0xf]
    %v1975 = vld [vmem:[#allocation4 + $0x174] sm:$0xff]
    %v1976 = vld [vmem:[#allocation4 + $0x17c] sm:$0xf]
    %v1977 = vld [vmem:[#allocation4 + $0x180] sm:$0xff]
    %v1978 = vld [vmem:[#allocation4 + $0x188] sm:$0xf]
    %v1979 = vld [vmem:[#allocation4 + $0x18c] sm:$0xff]
    %v1980 = vld [vmem:[#allocation4 + $0x194] sm:$0xf]
    %v1981 = vld [vmem:[#allocation4 + $0x198] sm:$0xff]
    %v1982 = vld [vmem:[#allocation4 + $0x1a0] sm:$0xf]
    %v1983 = vld [vmem:[#allocation4 + $0x1a4] sm:$0xff]
    %v1984 = vld [vmem:[#allocation4 + $0x1ac] sm:$0xf]
    %v1985 = vld [vmem:[#allocation4 + $0x1b0] sm:$0xff]
    %v1986 = vld [vmem:[#allocation4 + $0x1b8] sm:$0xf]
    %v1987 = vld [vmem:[#allocation4 + $0x1bc] sm:$0xff]
    %v1988 = vld [vmem:[#allocation4 + $0x1c4] sm:$0xf]
    %v1989 = vld [vmem:[#allocation4 + $0x1c8] sm:$0xff]
    %v1990 = vld [vmem:[#allocation4 + $0x1d0] sm:$0xf]
    %v1991 = vld [vmem:[#allocation4 + $0x1d4] sm:$0xff]
    %v1992 = vld [vmem:[#allocation4 + $0x1dc] sm:$0xf]
    %s1993 = scalar_lea.vmem [#allocation4], 480
    %v1994 = vld [vmem:[%s1993] sm:$0xff]
    %v1995 = vld [vmem:[%s1993 + $0x8] sm:$0xf]
    %v1996 = vld [vmem:[%s1993 + $0xc] sm:$0xff]
    %v1997 = vld [vmem:[%s1993 + $0x14] sm:$0xf]
    %v1998 = vld [vmem:[%s1993 + $0x18] sm:$0xff]
    %v1999 = vld [vmem:[%s1993 + $0x20] sm:$0xf]
    %v2000 = vld [vmem:[%s1993 + $0x24] sm:$0xff]
    %v2001 = vld [vmem:[%s1993 + $0x2c] sm:$0xf]
    %v2002 = vld [vmem:[%s1993 + $0x30] sm:$0xff]
    %v2003 = vld [vmem:[%s1993 + $0x38] sm:$0xf]
    %v2004 = vld [vmem:[%s1993 + $0x3c] sm:$0xff]
    %v2005 = vld [vmem:[%s1993 + $0x44] sm:$0xf]
    %v2006 = vld [vmem:[%s1993 + $0x48] sm:$0xff]
    %v2007 = vld [vmem:[%s1993 + $0x50] sm:$0xf]
    %v2008 = vld [vmem:[%s1993 + $0x54] sm:$0xff]
    %v2009 = vld [vmem:[%s1993 + $0x5c] sm:$0xf]
    %v2010 = vld [vmem:[%s1993 + $0x60] sm:$0xff]
    %v2011 = vld [vmem:[%s1993 + $0x68] sm:$0xf]
    %v2012 = vld [vmem:[%s1993 + $0x6c] sm:$0xff]
    %v2013 = vld [vmem:[%s1993 + $0x74] sm:$0xf]
    %v2014 = vld [vmem:[%s1993 + $0x78] sm:$0xff]
    %v2015 = vld [vmem:[%s1993 + $0x80] sm:$0xf]
    %v2016 = vld [vmem:[%s1993 + $0x84] sm:$0xff]
    %v2017 = vld [vmem:[%s1993 + $0x8c] sm:$0xf]
    %v2018 = vld [vmem:[%s1993 + $0x90] sm:$0xff]
    %v2019 = vld [vmem:[%s1993 + $0x98] sm:$0xf]
    %v2020 = vld [vmem:[%s1993 + $0x9c] sm:$0xff]
    %v2021 = vld [vmem:[%s1993 + $0xa4] sm:$0xf]
    %v2022 = vld [vmem:[%s1993 + $0xa8] sm:$0xff]
    %v2023 = vld [vmem:[%s1993 + $0xb0] sm:$0xf]
    %v2024 = vld [vmem:[%s1993 + $0xb4] sm:$0xff]
    %v2025 = vld [vmem:[%s1993 + $0xbc] sm:$0xf]
    %v2026 = vld [vmem:[%s1993 + $0xc0] sm:$0xff]
    %v2027 = vld [vmem:[%s1993 + $0xc8] sm:$0xf]
    %v2028 = vld [vmem:[%s1993 + $0xcc] sm:$0xff]
    %v2029 = vld [vmem:[%s1993 + $0xd4] sm:$0xf]
    %v2030 = vld [vmem:[%s1993 + $0xd8] sm:$0xff]
    %v2031 = vld [vmem:[%s1993 + $0xe0] sm:$0xf]
    %v2032 = vld [vmem:[%s1993 + $0xe4] sm:$0xff]
    %v2033 = vld [vmem:[%s1993 + $0xec] sm:$0xf]
    %v2034 = vld [vmem:[%s1993 + $0xf0] sm:$0xff]
    %v2035 = vld [vmem:[%s1993 + $0xf8] sm:$0xf]
    %v2036 = vld [vmem:[%s1993 + $0xfc] sm:$0xff]
    %v2037 = vld [vmem:[%s1993 + $0x104] sm:$0xf]
    %v2038 = vld [vmem:[%s1993 + $0x108] sm:$0xff]
    %v2039 = vld [vmem:[%s1993 + $0x110] sm:$0xf]
    %v2040 = vld [vmem:[%s1993 + $0x114] sm:$0xff]
    %v2041 = vld [vmem:[%s1993 + $0x11c] sm:$0xf]
    %v2042 = vld [vmem:[%s1993 + $0x120] sm:$0xff]
    %v2043 = vld [vmem:[%s1993 + $0x128] sm:$0xf]
    %v2044 = vld [vmem:[%s1993 + $0x12c] sm:$0xff]
    %v2045 = vld [vmem:[%s1993 + $0x134] sm:$0xf]
    %v2046 = vld [vmem:[%s1993 + $0x138] sm:$0xff]
    %v2047 = vld [vmem:[%s1993 + $0x140] sm:$0xf]
    %v2048 = vld [vmem:[%s1993 + $0x144] sm:$0xff]
    %v2049 = vld [vmem:[%s1993 + $0x14c] sm:$0xf]
    %v2050 = vld [vmem:[%s1993 + $0x150] sm:$0xff]
    %v2051 = vld [vmem:[%s1993 + $0x158] sm:$0xf]
    %v2052 = vld [vmem:[%s1993 + $0x15c] sm:$0xff]
    %v2053 = vld [vmem:[%s1993 + $0x164] sm:$0xf]
    %v2054 = vld [vmem:[%s1993 + $0x168] sm:$0xff]
    %v2055 = vld [vmem:[%s1993 + $0x170] sm:$0xf]
    %v2056 = vld [vmem:[%s1993 + $0x174] sm:$0xff]
    %v2057 = vld [vmem:[%s1993 + $0x17c] sm:$0xf]
    %v2058 = vld [vmem:[%s1993 + $0x180] sm:$0xff]
    %v2059 = vld [vmem:[%s1993 + $0x188] sm:$0xf]
    %v2060 = vld [vmem:[%s1993 + $0x18c] sm:$0xff]
    %v2061 = vld [vmem:[%s1993 + $0x194] sm:$0xf]
    %v2062 = vld [vmem:[%s1993 + $0x198] sm:$0xff]
    %v2063 = vld [vmem:[%s1993 + $0x1a0] sm:$0xf]
    %v2064 = vld [vmem:[%s1993 + $0x1a4] sm:$0xff]
    %v2065 = vld [vmem:[%s1993 + $0x1ac] sm:$0xf]
    %v2066 = vld [vmem:[%s1993 + $0x1b0] sm:$0xff]
    %v2067 = vld [vmem:[%s1993 + $0x1b8] sm:$0xf]
    %v2068 = vld [vmem:[%s1993 + $0x1bc] sm:$0xff]
    %v2069 = vld [vmem:[%s1993 + $0x1c4] sm:$0xf]
    %v2070 = vld [vmem:[%s1993 + $0x1c8] sm:$0xff]
    %v2071 = vld [vmem:[%s1993 + $0x1d0] sm:$0xf]
    %v2072 = vld [vmem:[%s1993 + $0x1d4] sm:$0xff]
    %v2073 = vld [vmem:[%s1993 + $0x1dc] sm:$0xf]
    %vm2086 = vcmask 1043456
    %v2087 = vrot.slane %v1898, 4
    %v2088 = vrot.slane %v1901, 4
    %v2089 = vsel %vm2086, %v2087, %v2088
    %v2090 = vrot.slane %v1899, 4
    %v2091 = vrot.slane %v1902, 4
    %v2092 = vsel %vm2086, %v2090, %v2091
    %v2093 = vrot.slane %v1900, 4
    %v2094 = vrot.slane %v1903, 4
    %v2095 = vsel %vm2086, %v2093, %v2094
    %v2096 = vrot.slane %v1904, 4
    %v2097 = vsel %vm2086, %v2088, %v2096
    %v2098 = vrot.slane %v1905, 4
    %v2099 = vsel %vm2086, %v2091, %v2098
    %v2100 = vrot.slane %v1906, 4
    %v2101 = vsel %vm2086, %v2094, %v2100
    %v2102 = vrot.slane %v1907, 4
    %v2103 = vsel %vm2086, %v2096, %v2102
    %v2104 = vrot.slane %v1908, 4
    %v2105 = vsel %vm2086, %v2098, %v2104
    %v2106 = vrot.slane %v1909, 4
    %v2107 = vsel %vm2086, %v2100, %v2106
    %v2194 = vunpack.c.l.b16 %v1994
    %v2195 = vunpack.c.h.b16 %v1994
    %v2196 = vunpack.c.l.b16 %v1995
    %v2197 = vunpack.c.l.b16 %v1996
    %v2198 = vunpack.c.h.b16 %v1996
    %v2199 = vunpack.c.l.b16 %v1997
    %v2200 = vunpack.c.l.b16 %v1998
    %v2201 = vunpack.c.h.b16 %v1998
    %v2202 = vunpack.c.l.b16 %v1999
    %v2203 = vunpack.c.l.b16 %v2000
    %v2204 = vunpack.c.h.b16 %v2000
    %v2205 = vunpack.c.l.b16 %v2001
    %v2206 = vunpack.c.l.b16 %v2002
    %v2207 = vunpack.c.h.b16 %v2002
    %v2208 = vunpack.c.l.b16 %v2003
    %v2209 = vunpack.c.l.b16 %v2004
    %v2210 = vunpack.c.h.b16 %v2004
    %v2211 = vunpack.c.l.b16 %v2005
    %v2212 = vunpack.c.l.b16 %v2006
    %v2213 = vunpack.c.h.b16 %v2006
    %v2214 = vunpack.c.l.b16 %v2007
    %v2215 = vunpack.c.l.b16 %v2008
    %v2216 = vunpack.c.h.b16 %v2008
    %v2217 = vunpack.c.l.b16 %v2009
    %v2218 = vunpack.c.l.b16 %v2010
    %v2219 = vunpack.c.h.b16 %v2010
    %v2220 = vunpack.c.l.b16 %v2011
    %v2221 = vunpack.c.l.b16 %v2012
    %v2222 = vunpack.c.h.b16 %v2012
    %v2223 = vunpack.c.l.b16 %v2013
    %v2224 = vunpack.c.l.b16 %v2014
    %v2225 = vunpack.c.h.b16 %v2014
    %v2226 = vunpack.c.l.b16 %v2015
    %v2227 = vunpack.c.l.b16 %v2016
    %v2228 = vunpack.c.h.b16 %v2016
    %v2229 = vunpack.c.l.b16 %v2017
    %v2230 = vunpack.c.l.b16 %v2018
    %v2231 = vunpack.c.h.b16 %v2018
    %v2232 = vunpack.c.l.b16 %v2019
    %v2233 = vunpack.c.l.b16 %v2020
    %v2234 = vunpack.c.h.b16 %v2020
    %v2235 = vunpack.c.l.b16 %v2021
    %v2236 = vunpack.c.l.b16 %v2022
    %v2237 = vunpack.c.h.b16 %v2022
    %v2238 = vunpack.c.l.b16 %v2023
    %v2239 = vunpack.c.l.b16 %v2024
    %v2240 = vunpack.c.h.b16 %v2024
    %v2241 = vunpack.c.l.b16 %v2025
    %v2242 = vunpack.c.l.b16 %v2026
    %v2243 = vunpack.c.h.b16 %v2026
    %v2244 = vunpack.c.l.b16 %v2027
    %v2245 = vunpack.c.l.b16 %v2028
    %v2246 = vunpack.c.h.b16 %v2028
    %v2247 = vunpack.c.l.b16 %v2029
    %v2248 = vunpack.c.l.b16 %v2030
    %v2249 = vunpack.c.h.b16 %v2030
    %v2250 = vunpack.c.l.b16 %v2031
    %v2251 = vunpack.c.l.b16 %v2032
    %v2252 = vunpack.c.h.b16 %v2032
    %v2253 = vunpack.c.l.b16 %v2033
    %v2254 = vunpack.c.l.b16 %v2034
    %v2255 = vunpack.c.h.b16 %v2034
    %v2256 = vunpack.c.l.b16 %v2035
    %v2257 = vunpack.c.l.b16 %v2036
    %v2258 = vunpack.c.h.b16 %v2036
    %v2259 = vunpack.c.l.b16 %v2037
    %v2260 = vunpack.c.l.b16 %v2038
    %v2261 = vunpack.c.h.b16 %v2038
    %v2262 = vunpack.c.l.b16 %v2039
    %v2263 = vunpack.c.l.b16 %v2040
    %v2264 = vunpack.c.h.b16 %v2040
    %v2265 = vunpack.c.l.b16 %v2041
    %v2266 = vunpack.c.l.b16 %v2042
    %v2267 = vunpack.c.h.b16 %v2042
    %v2268 = vunpack.c.l.b16 %v2043
    %v2269 = vunpack.c.l.b16 %v2044
    %v2270 = vunpack.c.h.b16 %v2044
    %v2271 = vunpack.c.l.b16 %v2045
    %v2272 = vunpack.c.l.b16 %v2046
    %v2273 = vunpack.c.h.b16 %v2046
    %v2274 = vunpack.c.l.b16 %v2047
    %v2275 = vunpack.c.l.b16 %v2048
    %v2276 = vunpack.c.h.b16 %v2048
    %v2277 = vunpack.c.l.b16 %v2049
    %v2278 = vunpack.c.l.b16 %v2050
    %v2279 = vunpack.c.h.b16 %v2050
    %v2280 = vunpack.c.l.b16 %v2051
    %v2281 = vunpack.c.l.b16 %v2052
    %v2282 = vunpack.c.h.b16 %v2052
    %v2283 = vunpack.c.l.b16 %v2053
    %v2284 = vunpack.c.l.b16 %v2054
    %v2285 = vunpack.c.h.b16 %v2054
    %v2286 = vunpack.c.l.b16 %v2055
    %v2287 = vunpack.c.l.b16 %v2056
    %v2288 = vunpack.c.h.b16 %v2056
    %v2289 = vunpack.c.l.b16 %v2057
    %v2290 = vunpack.c.l.b16 %v2058
    %v2291 = vunpack.c.h.b16 %v2058
    %v2292 = vunpack.c.l.b16 %v2059
    %v2293 = vunpack.c.l.b16 %v2060
    %v2294 = vunpack.c.h.b16 %v2060
    %v2295 = vunpack.c.l.b16 %v2061
    %v2296 = vunpack.c.l.b16 %v2062
    %v2297 = vunpack.c.h.b16 %v2062
    %v2298 = vunpack.c.l.b16 %v2063
    %v2299 = vunpack.c.l.b16 %v2064
    %v2300 = vunpack.c.h.b16 %v2064
    %v2301 = vunpack.c.l.b16 %v2065
    %v2302 = vunpack.c.l.b16 %v2066
    %v2303 = vunpack.c.h.b16 %v2066
    %v2304 = vunpack.c.l.b16 %v2067
    %v2305 = vunpack.c.l.b16 %v2068
    %v2306 = vunpack.c.h.b16 %v2068
    %v2307 = vunpack.c.l.b16 %v2069
    %v2308 = vunpack.c.l.b16 %v2070
    %v2309 = vunpack.c.h.b16 %v2070
    %v2310 = vunpack.c.l.b16 %v2071
    %v2311 = vunpack.c.l.b16 %v2072
    %v2312 = vunpack.c.h.b16 %v2072
    %v2313 = vunpack.c.l.b16 %v2073
    %v2314 = vpack.c.b16 %v2197, %v2194
    %v2315 = vpack.c.b16 %v2198, %v2195
    %v2316 = vpack.c.b16 %v2199, %v2196
    %v2317 = vpack.c.b16 %v2203, %v2200
    %v2318 = vpack.c.b16 %v2204, %v2201
    %v2319 = vpack.c.b16 %v2205, %v2202
    %v2320 = vpack.c.b16 %v2209, %v2206
    %v2321 = vpack.c.b16 %v2210, %v2207
    %v2322 = vpack.c.b16 %v2211, %v2208
    %v2323 = vpack.c.b16 %v2215, %v2212
    %v2324 = vpack.c.b16 %v2216, %v2213
    %v2325 = vpack.c.b16 %v2217, %v2214
    %v2326 = vpack.c.b16 %v2221, %v2218
    %v2327 = vpack.c.b16 %v2222, %v2219
    %v2328 = vpack.c.b16 %v2223, %v2220
    %v2329 = vpack.c.b16 %v2227, %v2224
    %v2330 = vpack.c.b16 %v2228, %v2225
    %v2331 = vpack.c.b16 %v2229, %v2226
    %v2332 = vpack.c.b16 %v2233, %v2230
    %v2333 = vpack.c.b16 %v2234, %v2231
    %v2334 = vpack.c.b16 %v2235, %v2232
    %v2335 = vpack.c.b16 %v2239, %v2236
    %v2336 = vpack.c.b16 %v2240, %v2237
    %v2337 = vpack.c.b16 %v2241, %v2238
    %v2338 = vpack.c.b16 %v2245, %v2242
    %v2339 = vpack.c.b16 %v2246, %v2243
    %v2340 = vpack.c.b16 %v2247, %v2244
    %v2341 = vpack.c.b16 %v2251, %v2248
    %v2342 = vpack.c.b16 %v2252, %v2249
    %v2343 = vpack.c.b16 %v2253, %v2250
    %v2344 = vpack.c.b16 %v2257, %v2254
    %v2345 = vpack.c.b16 %v2258, %v2255
    %v2346 = vpack.c.b16 %v2259, %v2256
    %v2347 = vpack.c.b16 %v2263, %v2260
    %v2348 = vpack.c.b16 %v2264, %v2261
    %v2349 = vpack.c.b16 %v2265, %v2262
    %v2350 = vpack.c.b16 %v2269, %v2266
    %v2351 = vpack.c.b16 %v2270, %v2267
    %v2352 = vpack.c.b16 %v2271, %v2268
    %v2353 = vpack.c.b16 %v2275, %v2272
    %v2354 = vpack.c.b16 %v2276, %v2273
    %v2355 = vpack.c.b16 %v2277, %v2274
    %v2356 = vpack.c.b16 %v2281, %v2278
    %v2357 = vpack.c.b16 %v2282, %v2279
    %v2358 = vpack.c.b16 %v2283, %v2280
    %v2359 = vpack.c.b16 %v2287, %v2284
    %v2360 = vpack.c.b16 %v2288, %v2285
    %v2361 = vpack.c.b16 %v2289, %v2286
    %v2362 = vpack.c.b16 %v2293, %v2290
    %v2363 = vpack.c.b16 %v2294, %v2291
    %v2364 = vpack.c.b16 %v2295, %v2292
    %v2365 = vpack.c.b16 %v2299, %v2296
    %v2366 = vpack.c.b16 %v2300, %v2297
    %v2367 = vpack.c.b16 %v2301, %v2298
    %v2368 = vpack.c.b16 %v2305, %v2302
    %v2369 = vpack.c.b16 %v2306, %v2303
    %v2370 = vpack.c.b16 %v2307, %v2304
    %v2371 = vpack.c.b16 %v2311, %v2308
    %v2372 = vpack.c.b16 %v2312, %v2309
    %v2373 = vpack.c.b16 %v2313, %v2310
    %vm2434 = vcmask 523264
    %v2436 = vsel %vm2434, %v2095, 0
    %v2439 = vsel %vm2434, %v2101, 0
    %v2442 = vsel %vm2434, %v2107, 0
    %2444 = vmatprep.subr.bf16.mxu0 %v2315
    %2445 = vmatpush1.bf16.msra.mxu0 %v2314
    %2446 = vmatprep.subr.bf16.mxu0 %v2318
    %2447 = vmatpush1.bf16.msra.mxu0 %v2317
    %2448 = vmatprep.subr.bf16.mxu0 %v2321
    %2449 = vmatpush1.bf16.msra.mxu0 %v2320
    %2450 = vmatprep.subr.bf16.mxu0 %v2324
    %2451 = vmatpush1.bf16.msra.mxu0 %v2323
    %2452 = vmatprep.subr.bf16.mxu0 %v2327
    %2453 = vmatpush1.bf16.msra.mxu0 %v2326
    %2454 = vmatprep.subr.bf16.mxu0 %v2330
    %2455 = vmatpush1.bf16.msra.mxu0 %v2329
    %2456 = vmatprep.subr.bf16.mxu0 %v2333
    %2457 = vmatpush1.bf16.msra.mxu0 %v2332
    %2458 = vmatprep.subr.bf16.mxu0 %v2336
    %2459 = vmatpush1.bf16.msra.mxu0 %v2335
    %2460 = vmatprep.subr.bf16.mxu0 %v2339
    %2461 = vmatpush1.bf16.msra.mxu0 %v2338
    %2462 = vmatprep.subr.bf16.mxu0 %v2342
    %2463 = vmatpush1.bf16.msra.mxu0 %v2341
    %2464 = vmatprep.subr.bf16.mxu0 %v2345
    %2465 = vmatpush1.bf16.msra.mxu0 %v2344
    %2466 = vmatprep.subr.bf16.mxu0 %v2348
    %2467 = vmatpush1.bf16.msra.mxu0 %v2347
    %2468 = vmatprep.subr.bf16.mxu0 %v2351
    %2469 = vmatpush1.bf16.msra.mxu0 %v2350
    %2470 = vmatprep.subr.bf16.mxu0 %v2354
    %2471 = vmatpush1.bf16.msra.mxu0 %v2353
    %2472 = vmatprep.subr.bf16.mxu0 %v2357
    %2473 = vmatpush1.bf16.msra.mxu0 %v2356
    %2474 = vmatprep.subr.bf16.mxu0 %v2360
    %2475 = vmatpush1.bf16.msra.mxu0 %v2359
    %2476 = vmatprep.mubr.bf16.mxu0 %v2092
    %2477 = vmatmul.mubr.bf16.gmra.mrb[0].mxu0 %v2089
    %v2478 = vpop.f32.mrb[0].mxu0
    %v2479 = vadd.f32 0.0, %v2478
    %v2480 = vpop.f32.mrb[0].mxu0
    %v2481 = vadd.f32 0.0, %v2480
    %v2482 = vpop.f32.mrb[0].mxu0
    %v2483 = vadd.f32 0.0, %v2482
    %v2484 = vpop.f32.mrb[0].mxu0
    %v2485 = vadd.f32 0.0, %v2484
    %2486 = vmatprep.mubr.bf16.mxu0 %v2099
    %2487 = vmatmul.mubr.bf16.gmra.mrb[0].mxu0 %v2097
    %v2488 = vpop.f32.mrb[0].mxu0
    %v2489 = vadd.f32 0.0, %v2488
    %v2490 = vpop.f32.mrb[0].mxu0
    %v2491 = vadd.f32 0.0, %v2490
    %v2492 = vpop.f32.mrb[0].mxu0
    %v2493 = vadd.f32 0.0, %v2492
    %v2494 = vpop.f32.mrb[0].mxu0
    %v2495 = vadd.f32 0.0, %v2494
    %2496 = vmatprep.mubr.bf16.mxu0 %v2105
    %2497 = vmatmul.mubr.bf16.gmra.mrb[0].mxu0 %v2103
    %v2498 = vpop.f32.mrb[0].mxu0
    %v2499 = vadd.f32 0.0, %v2498
    %v2500 = vpop.f32.mrb[0].mxu0
    %v2501 = vadd.f32 0.0, %v2500
    %v2502 = vpop.f32.mrb[0].mxu0
    %v2503 = vadd.f32 0.0, %v2502
    %v2504 = vpop.f32.mrb[0].mxu0
    %v2505 = vadd.f32 0.0, %v2504
    %2506 = vdwg.mxu0
    %2507 = vmatprep.subr.bf16.mxu0 %v2363
    %2508 = vmatpush1.bf16.msra.mxu0 %v2362
    %2509 = vmatprep.subr.bf16.mxu0 %v2366
    %2510 = vmatpush1.bf16.msra.mxu0 %v2365
    %2511 = vmatprep.subr.bf16.mxu0 %v2369
    %2512 = vmatpush1.bf16.msra.mxu0 %v2368
    %2513 = vmatprep.subr.bf16.mxu0 %v2372
    %2514 = vmatpush1.bf16.msra.mxu0 %v2371
    %2515 = vmatprep.subr.bf16.mxu0 0
    %2516 = vmatpush1.bf16.msra.mxu0 0
    %2517 = vmatprep.subr.bf16.mxu0 0
    %2518 = vmatpush1.bf16.msra.mxu0 0
    %2519 = vmatprep.subr.bf16.mxu0 0
    %2520 = vmatpush1.bf16.msra.mxu0 0
    %2521 = vmatprep.subr.bf16.mxu0 0
    %2522 = vmatpush1.bf16.msra.mxu0 0
    %2523 = vmatprep.subr.bf16.mxu0 0
    %2524 = vmatpush1.bf16.msra.mxu0 0
    %2525 = vmatprep.subr.bf16.mxu0 0
    %2526 = vmatpush1.bf16.msra.mxu0 0
    %2527 = vmatprep.subr.bf16.mxu0 0
    %2528 = vmatpush1.bf16.msra.mxu0 0
    %2529 = vmatprep.subr.bf16.mxu0 0
    %2530 = vmatpush1.bf16.msra.mxu0 0
    %2531 = vmatprep.subr.bf16.mxu0 0
    %2532 = vmatpush1.bf16.msra.mxu0 0
    %2533 = vmatprep.subr.bf16.mxu0 0
    %2534 = vmatpush1.bf16.msra.mxu0 0
    %2535 = vmatprep.subr.bf16.mxu0 0
    %2536 = vmatpush1.bf16.msra.mxu0 0
    %2537 = vmatprep.subr.bf16.mxu0 0
    %2538 = vmatpush1.bf16.msra.mxu0 0
    %2539 = vmatprep.mubr.bf16.mxu0 0
    %2540 = vmatmul.mubr.bf16.gmra.mrb[0].mxu0 %v2436
    %v2541 = vpop.f32.mrb[0].mxu0
    %v2542 = vadd.f32 %v2479, %v2541
    %v2543 = vpop.f32.mrb[0].mxu0
    %v2544 = vadd.f32 %v2481, %v2543
    %v2545 = vpop.f32.mrb[0].mxu0
    %v2546 = vadd.f32 %v2483, %v2545
    %v2547 = vpop.f32.mrb[0].mxu0
    %v2548 = vadd.f32 %v2485, %v2547
    %2549 = vmatprep.mubr.bf16.mxu0 0
    %2550 = vmatmul.mubr.bf16.gmra.mrb[0].mxu0 %v2439
    %v2551 = vpop.f32.mrb[0].mxu0
    %v2552 = vadd.f32 %v2489, %v2551
    %v2553 = vpop.f32.mrb[0].mxu0
    %v2554 = vadd.f32 %v2491, %v2553
    %v2555 = vpop.f32.mrb[0].mxu0
    %v2556 = vadd.f32 %v2493, %v2555
    %v2557 = vpop.f32.mrb[0].mxu0
    %v2558 = vadd.f32 %v2495, %v2557
    %2559 = vmatprep.mubr.bf16.mxu0 0
    %2560 = vmatmul.mubr.bf16.gmra.mrb[0].mxu0 %v2442
    %v2561 = vpop.f32.mrb[0].mxu0
    %v2562 = vadd.f32 %v2499, %v2561
    %v2563 = vpop.f32.mrb[0].mxu0
    %v2564 = vadd.f32 %v2501, %v2563
    %v2565 = vpop.f32.mrb[0].mxu0
    %v2566 = vadd.f32 %v2503, %v2565
    %v2567 = vpop.f32.mrb[0].mxu0
    %v2568 = vadd.f32 %v2505, %v2567
    %2569 = vdwg.mxu0
    %2570 = vmatprep.subr.bf16.mxu0 0
    %2571 = vmatpush1.bf16.msra.mxu0 %v2316
    %2572 = vmatprep.subr.bf16.mxu0 0
    %2573 = vmatpush1.bf16.msra.mxu0 %v2319
    %2574 = vmatprep.subr.bf16.mxu0 0
    %2575 = vmatpush1.bf16.msra.mxu0 %v2322
    %2576 = vmatprep.subr.bf16.mxu0 0
    %2577 = vmatpush1.bf16.msra.mxu0 %v2325
    %2578 = vmatprep.subr.bf16.mxu0 0
    %2579 = vmatpush1.bf16.msra.mxu0 %v2328
    %2580 = vmatprep.subr.bf16.mxu0 0
    %2581 = vmatpush1.bf16.msra.mxu0 %v2331
    %2582 = vmatprep.subr.bf16.mxu0 0
    %2583 = vmatpush1.bf16.msra.mxu0 %v2334
    %2584 = vmatprep.subr.bf16.mxu0 0
    %2585 = vmatpush1.bf16.msra.mxu0 %v2337
    %2586 = vmatprep.subr.bf16.mxu0 0
    %2587 = vmatpush1.bf16.msra.mxu0 %v2340
    %2588 = vmatprep.subr.bf16.mxu0 0
    %2589 = vmatpush1.bf16.msra.mxu0 %v2343
    %2590 = vmatprep.subr.bf16.mxu0 0
    %2591 = vmatpush1.bf16.msra.mxu0 %v2346
    %2592 = vmatprep.subr.bf16.mxu0 0
    %2593 = vmatpush1.bf16.msra.mxu0 %v2349
    %2594 = vmatprep.subr.bf16.mxu0 0
    %2595 = vmatpush1.bf16.msra.mxu0 %v2352
    %2596 = vmatprep.subr.bf16.mxu0 0
    %2597 = vmatpush1.bf16.msra.mxu0 %v2355
    %2598 = vmatprep.subr.bf16.mxu0 0
    %2599 = vmatpush1.bf16.msra.mxu0 %v2358
    %2600 = vmatprep.subr.bf16.mxu0 0
    %2601 = vmatpush1.bf16.msra.mxu0 %v2361
    %2602 = vmatprep.mubr.bf16.mxu0 %v2092
    %2603 = vmatmul.mubr.bf16.gmra.mrb[0].mxu0 %v2089
    %v2604 = vpop.f32.mrb[0].mxu0
    %v2605 = vadd.f32 0.0, %v2604
    %v2606 = vpop.f32.mrb[0].mxu0
    %v2607 = vpop.f32.mrb[0].mxu0
    %v2608 = vadd.f32 0.0, %v2607
    %v2609 = vpop.f32.mrb[0].mxu0
    %2610 = vmatprep.mubr.bf16.mxu0 %v2099
    %2611 = vmatmul.mubr.bf16.gmra.mrb[0].mxu0 %v2097
    %v2612 = vpop.f32.mrb[0].mxu0
    %v2613 = vadd.f32 0.0, %v2612
    %v2614 = vpop.f32.mrb[0].mxu0
    %v2615 = vpop.f32.mrb[0].mxu0
    %v2616 = vadd.f32 0.0, %v2615
    %v2617 = vpop.f32.mrb[0].mxu0
    %2618 = vmatprep.mubr.bf16.mxu0 %v2105
    %2619 = vmatmul.mubr.bf16.gmra.mrb[0].mxu0 %v2103
    %v2620 = vpop.f32.mrb[0].mxu0
    %v2621 = vadd.f32 0.0, %v2620
    %v2622 = vpop.f32.mrb[0].mxu0
    %v2623 = vpop.f32.mrb[0].mxu0
    %v2624 = vadd.f32 0.0, %v2623
    %v2625 = vpop.f32.mrb[0].mxu0
    %2626 = vdwg.mxu0
    %2627 = vmatprep.subr.bf16.mxu0 0
    %2628 = vmatpush1.bf16.msra.mxu0 %v2364
    %2629 = vmatprep.subr.bf16.mxu0 0
    %2630 = vmatpush1.bf16.msra.mxu0 %v2367
    %2631 = vmatprep.subr.bf16.mxu0 0
    %2632 = vmatpush1.bf16.msra.mxu0 %v2370
    %2633 = vmatprep.subr.bf16.mxu0 0
    %2634 = vmatpush1.bf16.msra.mxu0 %v2373
    %2635 = vmatprep.subr.bf16.mxu0 0
    %2636 = vmatpush1.bf16.msra.mxu0 0
    %2637 = vmatprep.subr.bf16.mxu0 0
    %2638 = vmatpush1.bf16.msra.mxu0 0
    %2639 = vmatprep.subr.bf16.mxu0 0
    %2640 = vmatpush1.bf16.msra.mxu0 0
    %2641 = vmatprep.subr.bf16.mxu0 0
    %2642 = vmatpush1.bf16.msra.mxu0 0
    %2643 = vmatprep.subr.bf16.mxu0 0
    %2644 = vmatpush1.bf16.msra.mxu0 0
    %2645 = vmatprep.subr.bf16.mxu0 0
    %2646 = vmatpush1.bf16.msra.mxu0 0
    %2647 = vmatprep.subr.bf16.mxu0 0
    %2648 = vmatpush1.bf16.msra.mxu0 0
    %2649 = vmatprep.subr.bf16.mxu0 0
    %2650 = vmatpush1.bf16.msra.mxu0 0
    %2651 = vmatprep.subr.bf16.mxu0 0
    %2652 = vmatpush1.bf16.msra.mxu0 0
    %2653 = vmatprep.subr.bf16.mxu0 0
    %2654 = vmatpush1.bf16.msra.mxu0 0
    %2655 = vmatprep.subr.bf16.mxu0 0
    %2656 = vmatpush1.bf16.msra.mxu0 0
    %2657 = vmatprep.subr.bf16.mxu0 0
    %2658 = vmatpush1.bf16.msra.mxu0 0
    %2659 = vmatprep.mubr.bf16.mxu0 0
    %2660 = vmatmul.mubr.bf16.gmra.mrb[0].mxu0 %v2436
    %v2661 = vpop.f32.mrb[0].mxu0
    %v2662 = vadd.f32 %v2605, %v2661
    %v2663 = vpop.f32.mrb[0].mxu0
    %v2664 = vpop.f32.mrb[0].mxu0
    %v2665 = vadd.f32 %v2608, %v2664
    %v2666 = vpop.f32.mrb[0].mxu0
    %2667 = vmatprep.mubr.bf16.mxu0 0
    %2668 = vmatmul.mubr.bf16.gmra.mrb[0].mxu0 %v2439
    %v2669 = vpop.f32.mrb[0].mxu0
    %v2670 = vadd.f32 %v2613, %v2669
    %v2671 = vpop.f32.mrb[0].mxu0
    %v2672 = vpop.f32.mrb[0].mxu0
    %v2673 = vadd.f32 %v2616, %v2672
    %v2674 = vpop.f32.mrb[0].mxu0
    %2675 = vmatprep.mubr.bf16.mxu0 0
    %2676 = vmatmul.mubr.bf16.gmra.mrb[0].mxu0 %v2442
    %v2677 = vpop.f32.mrb[0].mxu0
    %v2678 = vadd.f32 %v2621, %v2677
    %v2679 = vpop.f32.mrb[0].mxu0
    %v2680 = vpop.f32.mrb[0].mxu0
    %v2681 = vadd.f32 %v2624, %v2680
    %v2682 = vpop.f32.mrb[0].mxu0
    %2683 = vdwg.mxu0
    %v2764 = vunpack.c.l.b16 %v1913
    %v2765 = vunpack.c.h.b16 %v1913
    %v2766 = vunpack.c.l.b16 %v1914
    %v2767 = vunpack.c.l.b16 %v1915
    %v2768 = vunpack.c.h.b16 %v1915
    %v2769 = vunpack.c.l.b16 %v1916
    %v2770 = vunpack.c.l.b16 %v1917
    %v2771 = vunpack.c.h.b16 %v1917
    %v2772 = vunpack.c.l.b16 %v1918
    %v2773 = vunpack.c.l.b16 %v1919
    %v2774 = vunpack.c.h.b16 %v1919
    %v2775 = vunpack.c.l.b16 %v1920
    %v2776 = vunpack.c.l.b16 %v1921
    %v2777 = vunpack.c.h.b16 %v1921
    %v2778 = vunpack.c.l.b16 %v1922
    %v2779 = vunpack.c.l.b16 %v1923
    %v2780 = vunpack.c.h.b16 %v1923
    %v2781 = vunpack.c.l.b16 %v1924
    %v2782 = vunpack.c.l.b16 %v1925
    %v2783 = vunpack.c.h.b16 %v1925
    %v2784 = vunpack.c.l.b16 %v1926
    %v2785 = vunpack.c.l.b16 %v1927
    %v2786 = vunpack.c.h.b16 %v1927
    %v2787 = vunpack.c.l.b16 %v1928
    %v2788 = vunpack.c.l.b16 %v1929
    %v2789 = vunpack.c.h.b16 %v1929
    %v2790 = vunpack.c.l.b16 %v1930
    %v2791 = vunpack.c.l.b16 %v1931
    %v2792 = vunpack.c.h.b16 %v1931
    %v2793 = vunpack.c.l.b16 %v1932
    %v2794 = vunpack.c.l.b16 %v1933
    %v2795 = vunpack.c.h.b16 %v1933
    %v2796 = vunpack.c.l.b16 %v1934
    %v2797 = vunpack.c.l.b16 %v1935
    %v2798 = vunpack.c.h.b16 %v1935
    %v2799 = vunpack.c.l.b16 %v1936
    %v2800 = vunpack.c.l.b16 %v1937
    %v2801 = vunpack.c.h.b16 %v1937
    %v2802 = vunpack.c.l.b16 %v1938
    %v2803 = vunpack.c.l.b16 %v1939
    %v2804 = vunpack.c.h.b16 %v1939
    %v2805 = vunpack.c.l.b16 %v1940
    %v2806 = vunpack.c.l.b16 %v1941
    %v2807 = vunpack.c.h.b16 %v1941
    %v2808 = vunpack.c.l.b16 %v1942
    %v2809 = vunpack.c.l.b16 %v1943
    %v2810 = vunpack.c.h.b16 %v1943
    %v2811 = vunpack.c.l.b16 %v1944
    %v2812 = vunpack.c.l.b16 %v1945
    %v2813 = vunpack.c.h.b16 %v1945
    %v2814 = vunpack.c.l.b16 %v1946
    %v2815 = vunpack.c.l.b16 %v1947
    %v2816 = vunpack.c.h.b16 %v1947
    %v2817 = vunpack.c.l.b16 %v1948
    %v2818 = vunpack.c.l.b16 %v1949
    %v2819 = vunpack.c.h.b16 %v1949
    %v2820 = vunpack.c.l.b16 %v1950
    %v2821 = vunpack.c.l.b16 %v1951
    %v2822 = vunpack.c.h.b16 %v1951
    %v2823 = vunpack.c.l.b16 %v1952
    %v2824 = vunpack.c.l.b16 %v1953
    %v2825 = vunpack.c.h.b16 %v1953
    %v2826 = vunpack.c.l.b16 %v1954
    %v2827 = vunpack.c.l.b16 %v1955
    %v2828 = vunpack.c.h.b16 %v1955
    %v2829 = vunpack.c.l.b16 %v1956
    %v2830 = vunpack.c.l.b16 %v1957
    %v2831 = vunpack.c.h.b16 %v1957
    %v2832 = vunpack.c.l.b16 %v1958
    %v2833 = vunpack.c.l.b16 %v1959
    %v2834 = vunpack.c.h.b16 %v1959
    %v2835 = vunpack.c.l.b16 %v1960
    %v2836 = vunpack.c.l.b16 %v1961
    %v2837 = vunpack.c.h.b16 %v1961
    %v2838 = vunpack.c.l.b16 %v1962
    %v2839 = vunpack.c.l.b16 %v1963
    %v2840 = vunpack.c.h.b16 %v1963
    %v2841 = vunpack.c.l.b16 %v1964
    %v2842 = vunpack.c.l.b16 %v1965
    %v2843 = vunpack.c.h.b16 %v1965
    %v2844 = vunpack.c.l.b16 %v1966
    %v2845 = vunpack.c.l.b16 %v1967
    %v2846 = vunpack.c.h.b16 %v1967
    %v2847 = vunpack.c.l.b16 %v1968
    %v2848 = vunpack.c.l.b16 %v1969
    %v2849 = vunpack.c.h.b16 %v1969
    %v2850 = vunpack.c.l.b16 %v1970
    %v2851 = vunpack.c.l.b16 %v1971
    %v2852 = vunpack.c.h.b16 %v1971
    %v2853 = vunpack.c.l.b16 %v1972
    %v2854 = vunpack.c.l.b16 %v1973
    %v2855 = vunpack.c.h.b16 %v1973
    %v2856 = vunpack.c.l.b16 %v1974
    %v2857 = vunpack.c.l.b16 %v1975
    %v2858 = vunpack.c.h.b16 %v1975
    %v2859 = vunpack.c.l.b16 %v1976
    %v2860 = vunpack.c.l.b16 %v1977
    %v2861 = vunpack.c.h.b16 %v1977
    %v2862 = vunpack.c.l.b16 %v1978
    %v2863 = vunpack.c.l.b16 %v1979
    %v2864 = vunpack.c.h.b16 %v1979
    %v2865 = vunpack.c.l.b16 %v1980
    %v2866 = vunpack.c.l.b16 %v1981
    %v2867 = vunpack.c.h.b16 %v1981
    %v2868 = vunpack.c.l.b16 %v1982
    %v2869 = vunpack.c.l.b16 %v1983
    %v2870 = vunpack.c.h.b16 %v1983
    %v2871 = vunpack.c.l.b16 %v1984
    %v2872 = vunpack.c.l.b16 %v1985
    %v2873 = vunpack.c.h.b16 %v1985
    %v2874 = vunpack.c.l.b16 %v1986
    %v2875 = vunpack.c.l.b16 %v1987
    %v2876 = vunpack.c.h.b16 %v1987
    %v2877 = vunpack.c.l.b16 %v1988
    %v2878 = vunpack.c.l.b16 %v1989
    %v2879 = vunpack.c.h.b16 %v1989
    %v2880 = vunpack.c.l.b16 %v1990
    %v2881 = vunpack.c.l.b16 %v1991
    %v2882 = vunpack.c.h.b16 %v1991
    %v2883 = vunpack.c.l.b16 %v1992
    %v2884 = vpack.c.b16 %v2767, %v2764
    %v2885 = vpack.c.b16 %v2768, %v2765
    %v2886 = vpack.c.b16 %v2769, %v2766
    %v2887 = vpack.c.b16 %v2773, %v2770
    %v2888 = vpack.c.b16 %v2774, %v2771
    %v2889 = vpack.c.b16 %v2775, %v2772
    %v2890 = vpack.c.b16 %v2779, %v2776
    %v2891 = vpack.c.b16 %v2780, %v2777
    %v2892 = vpack.c.b16 %v2781, %v2778
    %v2893 = vpack.c.b16 %v2785, %v2782
    %v2894 = vpack.c.b16 %v2786, %v2783
    %v2895 = vpack.c.b16 %v2787, %v2784
    %v2896 = vpack.c.b16 %v2791, %v2788
    %v2897 = vpack.c.b16 %v2792, %v2789
    %v2898 = vpack.c.b16 %v2793, %v2790
    %v2899 = vpack.c.b16 %v2797, %v2794
    %v2900 = vpack.c.b16 %v2798, %v2795
    %v2901 = vpack.c.b16 %v2799, %v2796
    %v2902 = vpack.c.b16 %v2803, %v2800
    %v2903 = vpack.c.b16 %v2804, %v2801
    %v2904 = vpack.c.b16 %v2805, %v2802
    %v2905 = vpack.c.b16 %v2809, %v2806
    %v2906 = vpack.c.b16 %v2810, %v2807
    %v2907 = vpack.c.b16 %v2811, %v2808
    %v2908 = vpack.c.b16 %v2815, %v2812
    %v2909 = vpack.c.b16 %v2816, %v2813
    %v2910 = vpack.c.b16 %v2817, %v2814
    %v2911 = vpack.c.b16 %v2821, %v2818
    %v2912 = vpack.c.b16 %v2822, %v2819
    %v2913 = vpack.c.b16 %v2823, %v2820
    %v2914 = vpack.c.b16 %v2827, %v2824
    %v2915 = vpack.c.b16 %v2828, %v2825
    %v2916 = vpack.c.b16 %v2829, %v2826
    %v2917 = vpack.c.b16 %v2833, %v2830
    %v2918 = vpack.c.b16 %v2834, %v2831
    %v2919 = vpack.c.b16 %v2835, %v2832
    %v2920 = vpack.c.b16 %v2839, %v2836
    %v2921 = vpack.c.b16 %v2840, %v2837
    %v2922 = vpack.c.b16 %v2841, %v2838
    %v2923 = vpack.c.b16 %v2845, %v2842
    %v2924 = vpack.c.b16 %v2846, %v2843
    %v2925 = vpack.c.b16 %v2847, %v2844
    %v2926 = vpack.c.b16 %v2851, %v2848
    %v2927 = vpack.c.b16 %v2852, %v2849
    %v2928 = vpack.c.b16 %v2853, %v2850
    %v2929 = vpack.c.b16 %v2857, %v2854
    %v2930 = vpack.c.b16 %v2858, %v2855
    %v2931 = vpack.c.b16 %v2859, %v2856
    %v2932 = vpack.c.b16 %v2863, %v2860
    %v2933 = vpack.c.b16 %v2864, %v2861
    %v2934 = vpack.c.b16 %v2865, %v2862
    %v2935 = vpack.c.b16 %v2869, %v2866
    %v2936 = vpack.c.b16 %v2870, %v2867
    %v2937 = vpack.c.b16 %v2871, %v2868
    %v2938 = vpack.c.b16 %v2875, %v2872
    %v2939 = vpack.c.b16 %v2876, %v2873
    %v2940 = vpack.c.b16 %v2877, %v2874
    %v2941 = vpack.c.b16 %v2881, %v2878
    %v2942 = vpack.c.b16 %v2882, %v2879
    %v2943 = vpack.c.b16 %v2883, %v2880
    %v3005 = vsel %vm2434, %v1900, 0
    %v3008 = vsel %vm2434, %v1903, 0
    %v3011 = vsel %vm2434, %v1906, 0
    %3013 = vmatprep.subr.bf16.mxu0 %v2885
    %3014 = vmatpush1.bf16.msra.mxu0 %v2884
    %3015 = vmatprep.subr.bf16.mxu0 %v2888
    %3016 = vmatpush1.bf16.msra.mxu0 %v2887
    %3017 = vmatprep.subr.bf16.mxu0 %v2891
    %3018 = vmatpush1.bf16.msra.mxu0 %v2890
    %3019 = vmatprep.subr.bf16.mxu0 %v2894
    %3020 = vmatpush1.bf16.msra.mxu0 %v2893
    %3021 = vmatprep.subr.bf16.mxu0 %v2897
    %3022 = vmatpush1.bf16.msra.mxu0 %v2896
    %3023 = vmatprep.subr.bf16.mxu0 %v2900
    %3024 = vmatpush1.bf16.msra.mxu0 %v2899
    %3025 = vmatprep.subr.bf16.mxu0 %v2903
    %3026 = vmatpush1.bf16.msra.mxu0 %v2902
    %3027 = vmatprep.subr.bf16.mxu0 %v2906
    %3028 = vmatpush1.bf16.msra.mxu0 %v2905
    %3029 = vmatprep.subr.bf16.mxu0 %v2909
    %3030 = vmatpush1.bf16.msra.mxu0 %v2908
    %3031 = vmatprep.subr.bf16.mxu0 %v2912
    %3032 = vmatpush1.bf16.msra.mxu0 %v2911
    %3033 = vmatprep.subr.bf16.mxu0 %v2915
    %3034 = vmatpush1.bf16.msra.mxu0 %v2914
    %3035 = vmatprep.subr.bf16.mxu0 %v2918
    %3036 = vmatpush1.bf16.msra.mxu0 %v2917
    %3037 = vmatprep.subr.bf16.mxu0 %v2921
    %3038 = vmatpush1.bf16.msra.mxu0 %v2920
    %3039 = vmatprep.subr.bf16.mxu0 %v2924
    %3040 = vmatpush1.bf16.msra.mxu0 %v2923
    %3041 = vmatprep.subr.bf16.mxu0 %v2927
    %3042 = vmatpush1.bf16.msra.mxu0 %v2926
    %3043 = vmatprep.subr.bf16.mxu0 %v2930
    %3044 = vmatpush1.bf16.msra.mxu0 %v2929
    %3045 = vmatprep.mubr.bf16.mxu0 %v1899
    %3046 = vmatmul.mubr.bf16.gmra.mrb[0].mxu0 %v1898
    %v3047 = vpop.f32.mrb[0].mxu0
    %v3048 = vadd.f32 %v2542, %v3047
    %v3049 = vpop.f32.mrb[0].mxu0
    %v3050 = vadd.f32 %v2544, %v3049
    %v3051 = vpop.f32.mrb[0].mxu0
    %v3052 = vadd.f32 %v2546, %v3051
    %v3053 = vpop.f32.mrb[0].mxu0
    %v3054 = vadd.f32 %v2548, %v3053
    %3055 = vmatprep.mubr.bf16.mxu0 %v1902
    %3056 = vmatmul.mubr.bf16.gmra.mrb[0].mxu0 %v1901
    %v3057 = vpop.f32.mrb[0].mxu0
    %v3058 = vadd.f32 %v2552, %v3057
    %v3059 = vpop.f32.mrb[0].mxu0
    %v3060 = vadd.f32 %v2554, %v3059
    %v3061 = vpop.f32.mrb[0].mxu0
    %v3062 = vadd.f32 %v2556, %v3061
    %v3063 = vpop.f32.mrb[0].mxu0
    %v3064 = vadd.f32 %v2558, %v3063
    %3065 = vmatprep.mubr.bf16.mxu0 %v1905
    %3066 = vmatmul.mubr.bf16.gmra.mrb[0].mxu0 %v1904
    %v3067 = vpop.f32.mrb[0].mxu0
    %v3068 = vadd.f32 %v2562, %v3067
    %v3069 = vpop.f32.mrb[0].mxu0
    %v3070 = vadd.f32 %v2564, %v3069
    %v3071 = vpop.f32.mrb[0].mxu0
    %v3072 = vadd.f32 %v2566, %v3071
    %v3073 = vpop.f32.mrb[0].mxu0
    %v3074 = vadd.f32 %v2568, %v3073
    %3075 = vdwg.mxu0
    %3076 = vmatprep.subr.bf16.mxu0 %v2933
    %3077 = vmatpush1.bf16.msra.mxu0 %v2932
    %3078 = vmatprep.subr.bf16.mxu0 %v2936
    %3079 = vmatpush1.bf16.msra.mxu0 %v2935
    %3080 = vmatprep.subr.bf16.mxu0 %v2939
    %3081 = vmatpush1.bf16.msra.mxu0 %v2938
    %3082 = vmatprep.subr.bf16.mxu0 %v2942
    %3083 = vmatpush1.bf16.msra.mxu0 %v2941
    %3084 = vmatprep.subr.bf16.mxu0 0
    %3085 = vmatpush1.bf16.msra.mxu0 0
    %3086 = vmatprep.subr.bf16.mxu0 0
    %3087 = vmatpush1.bf16.msra.mxu0 0
    %3088 = vmatprep.subr.bf16.mxu0 0
    %3089 = vmatpush1.bf16.msra.mxu0 0
    %3090 = vmatprep.subr.bf16.mxu0 0
    %3091 = vmatpush1.bf16.msra.mxu0 0
    %3092 = vmatprep.subr.bf16.mxu0 0
    %3093 = vmatpush1.bf16.msra.mxu0 0
    %3094 = vmatprep.subr.bf16.mxu0 0
    %3095 = vmatpush1.bf16.msra.mxu0 0
    %3096 = vmatprep.subr.bf16.mxu0 0
    %3097 = vmatpush1.bf16.msra.mxu0 0
    %3098 = vmatprep.subr.bf16.mxu0 0
    %3099 = vmatpush1.bf16.msra.mxu0 0
    %3100 = vmatprep.subr.bf16.mxu0 0
    %3101 = vmatpush1.bf16.msra.mxu0 0
    %3102 = vmatprep.subr.bf16.mxu0 0
    %3103 = vmatpush1.bf16.msra.mxu0 0
    %3104 = vmatprep.subr.bf16.mxu0 0
    %3105 = vmatpush1.bf16.msra.mxu0 0
    %3106 = vmatprep.subr.bf16.mxu0 0
    %3107 = vmatpush1.bf16.msra.mxu0 0
    %3108 = vmatprep.mubr.bf16.mxu0 0
    %3109 = vmatmul.mubr.bf16.gmra.mrb[0].mxu0 %v3005
    %v3110 = vpop.f32.mrb[0].mxu0
    %v3111 = vadd.f32 %v3048, %v3110
    %v3112 = vpop.f32.mrb[0].mxu0
    %v3113 = vadd.f32 %v3050, %v3112
    %v3114 = vpop.f32.mrb[0].mxu0
    %v3115 = vadd.f32 %v3052, %v3114
    %v3116 = vpop.f32.mrb[0].mxu0
    %v3117 = vadd.f32 %v3054, %v3116
    %3118 = vmatprep.mubr.bf16.mxu0 0
    %3119 = vmatmul.mubr.bf16.gmra.mrb[0].mxu0 %v3008
    %v3120 = vpop.f32.mrb[0].mxu0
    %v3121 = vadd.f32 %v3058, %v3120
    %v3122 = vpop.f32.mrb[0].mxu0
    %v3123 = vadd.f32 %v3060, %v3122
    %v3124 = vpop.f32.mrb[0].mxu0
    %v3125 = vadd.f32 %v3062, %v3124
    %v3126 = vpop.f32.mrb[0].mxu0
    %v3127 = vadd.f32 %v3064, %v3126
    %3128 = vmatprep.mubr.bf16.mxu0 0
    %3129 = vmatmul.mubr.bf16.gmra.mrb[0].mxu0 %v3011
    %v3130 = vpop.f32.mrb[0].mxu0
    %v3131 = vadd.f32 %v3068, %v3130
    %v3132 = vpop.f32.mrb[0].mxu0
    %v3133 = vadd.f32 %v3070, %v3132
    %v3134 = vpop.f32.mrb[0].mxu0
    %v3135 = vadd.f32 %v3072, %v3134
    %v3136 = vpop.f32.mrb[0].mxu0
    %v3137 = vadd.f32 %v3074, %v3136
    %3138 = vdwg.mxu0
    %3139 = vmatprep.subr.bf16.mxu0 0
    %3140 = vmatpush1.bf16.msra.mxu0 %v2886
    %3141 = vmatprep.subr.bf16.mxu0 0
    %3142 = vmatpush1.bf16.msra.mxu0 %v2889
    %3143 = vmatprep.subr.bf16.mxu0 0
    %3144 = vmatpush1.bf16.msra.mxu0 %v2892
    %3145 = vmatprep.subr.bf16.mxu0 0
    %3146 = vmatpush1.bf16.msra.mxu0 %v2895
    %3147 = vmatprep.subr.bf16.mxu0 0
    %3148 = vmatpush1.bf16.msra.mxu0 %v2898
    %3149 = vmatprep.subr.bf16.mxu0 0
    %3150 = vmatpush1.bf16.msra.mxu0 %v2901
    %3151 = vmatprep.subr.bf16.mxu0 0
    %3152 = vmatpush1.bf16.msra.mxu0 %v2904
    %3153 = vmatprep.subr.bf16.mxu0 0
    %3154 = vmatpush1.bf16.msra.mxu0 %v2907
    %3155 = vmatprep.subr.bf16.mxu0 0
    %3156 = vmatpush1.bf16.msra.mxu0 %v2910
    %3157 = vmatprep.subr.bf16.mxu0 0
    %3158 = vmatpush1.bf16.msra.mxu0 %v2913
    %3159 = vmatprep.subr.bf16.mxu0 0
    %3160 = vmatpush1.bf16.msra.mxu0 %v2916
    %3161 = vmatprep.subr.bf16.mxu0 0
    %3162 = vmatpush1.bf16.msra.mxu0 %v2919
    %3163 = vmatprep.subr.bf16.mxu0 0
    %3164 = vmatpush1.bf16.msra.mxu0 %v2922
    %3165 = vmatprep.subr.bf16.mxu0 0
    %3166 = vmatpush1.bf16.msra.mxu0 %v2925
    %3167 = vmatprep.subr.bf16.mxu0 0
    %3168 = vmatpush1.bf16.msra.mxu0 %v2928
    %3169 = vmatprep.subr.bf16.mxu0 0
    %3170 = vmatpush1.bf16.msra.mxu0 %v2931
    %3171 = vmatprep.mubr.bf16.mxu0 %v1899
    %3172 = vmatmul.mubr.bf16.gmra.mrb[0].mxu0 %v1898
    %v3173 = vpop.f32.mrb[0].mxu0
    %v3174 = vadd.f32 %v2662, %v3173
    %v3175 = vpop.f32.mrb[0].mxu0
    %v3176 = vpop.f32.mrb[0].mxu0
    %v3177 = vadd.f32 %v2665, %v3176
    %v3178 = vpop.f32.mrb[0].mxu0
    %3179 = vmatprep.mubr.bf16.mxu0 %v1902
    %3180 = vmatmul.mubr.bf16.gmra.mrb[0].mxu0 %v1901
    %v3181 = vpop.f32.mrb[0].mxu0
    %v3182 = vadd.f32 %v2670, %v3181
    %v3183 = vpop.f32.mrb[0].mxu0
    %v3184 = vpop.f32.mrb[0].mxu0
    %v3185 = vadd.f32 %v2673, %v3184
    %v3186 = vpop.f32.mrb[0].mxu0
    %3187 = vmatprep.mubr.bf16.mxu0 %v1905
    %3188 = vmatmul.mubr.bf16.gmra.mrb[0].mxu0 %v1904
    %v3189 = vpop.f32.mrb[0].mxu0
    %v3190 = vadd.f32 %v2678, %v3189
    %v3191 = vpop.f32.mrb[0].mxu0
    %v3192 = vpop.f32.mrb[0].mxu0
    %v3193 = vadd.f32 %v2681, %v3192
    %v3194 = vpop.f32.mrb[0].mxu0
    %3195 = vdwg.mxu0
    %3196 = vmatprep.subr.bf16.mxu0 0
    %3197 = vmatpush1.bf16.msra.mxu0 %v2934
    %3198 = vmatprep.subr.bf16.mxu0 0
    %3199 = vmatpush1.bf16.msra.mxu0 %v2937
    %3200 = vmatprep.subr.bf16.mxu0 0
    %3201 = vmatpush1.bf16.msra.mxu0 %v2940
    %3202 = vmatprep.subr.bf16.mxu0 0
    %3203 = vmatpush1.bf16.msra.mxu0 %v2943
    %3204 = vmatprep.subr.bf16.mxu0 0
    %3205 = vmatpush1.bf16.msra.mxu0 0
    %3206 = vmatprep.subr.bf16.mxu0 0
    %3207 = vmatpush1.bf16.msra.mxu0 0
    %3208 = vmatprep.subr.bf16.mxu0 0
    %3209 = vmatpush1.bf16.msra.mxu0 0
    %3210 = vmatprep.subr.bf16.mxu0 0
    %3211 = vmatpush1.bf16.msra.mxu0 0
    %3212 = vmatprep.subr.bf16.mxu0 0
    %3213 = vmatpush1.bf16.msra.mxu0 0
    %3214 = vmatprep.subr.bf16.mxu0 0
    %3215 = vmatpush1.bf16.msra.mxu0 0
    %3216 = vmatprep.subr.bf16.mxu0 0
    %3217 = vmatpush1.bf16.msra.mxu0 0
    %3218 = vmatprep.subr.bf16.mxu0 0
    %3219 = vmatpush1.bf16.msra.mxu0 0
    %3220 = vmatprep.subr.bf16.mxu0 0
    %3221 = vmatpush1.bf16.msra.mxu0 0
    %3222 = vmatprep.subr.bf16.mxu0 0
    %3223 = vmatpush1.bf16.msra.mxu0 0
    %3224 = vmatprep.subr.bf16.mxu0 0
    %3225 = vmatpush1.bf16.msra.mxu0 0
    %3226 = vmatprep.subr.bf16.mxu0 0
    %3227 = vmatpush1.bf16.msra.mxu0 0
    %3228 = vmatprep.mubr.bf16.mxu0 0
    %3229 = vmatmul.mubr.bf16.gmra.mrb[0].mxu0 %v3005
    %v3230 = vpop.f32.mrb[0].mxu0
    %v3231 = vadd.f32 %v3174, %v3230
    %v3232 = vpop.f32.mrb[0].mxu0
    %v3233 = vpop.f32.mrb[0].mxu0
    %v3234 = vadd.f32 %v3177, %v3233
    %v3235 = vpop.f32.mrb[0].mxu0
    %3236 = vmatprep.mubr.bf16.mxu0 0
    %3237 = vmatmul.mubr.bf16.gmra.mrb[0].mxu0 %v3008
    %v3238 = vpop.f32.mrb[0].mxu0
    %v3239 = vadd.f32 %v3182, %v3238
    %v3240 = vpop.f32.mrb[0].mxu0
    %v3241 = vpop.f32.mrb[0].mxu0
    %v3242 = vadd.f32 %v3185, %v3241
    %v3243 = vpop.f32.mrb[0].mxu0
    %3244 = vmatprep.mubr.bf16.mxu0 0
    %3245 = vmatmul.mubr.bf16.gmra.mrb[0].mxu0 %v3011
    %v3246 = vpop.f32.mrb[0].mxu0
    %v3247 = vadd.f32 %v3190, %v3246
    %v3248 = vpop.f32.mrb[0].mxu0
    %v3249 = vpop.f32.mrb[0].mxu0
    %v3250 = vadd.f32 %v3193, %v3249
    %v3251 = vpop.f32.mrb[0].mxu0
    %3252 = vdwg.mxu0
    %s3253 = scalar_lea.vmem [#allocation4], 960
    %v3254 = vld [vmem:[%s3253] sm:$0xff]
    %v3255 = vld [vmem:[%s3253 + $0x8] sm:$0xf]
    %v3256 = vld [vmem:[%s3253 + $0xc] sm:$0xff]
    %v3257 = vld [vmem:[%s3253 + $0x14] sm:$0xf]
    %v3258 = vld [vmem:[%s3253 + $0x18] sm:$0xff]
    %v3259 = vld [vmem:[%s3253 + $0x20] sm:$0xf]
    %v3260 = vld [vmem:[%s3253 + $0x24] sm:$0xff]
    %v3261 = vld [vmem:[%s3253 + $0x2c] sm:$0xf]
    %v3262 = vld [vmem:[%s3253 + $0x30] sm:$0xff]
    %v3263 = vld [vmem:[%s3253 + $0x38] sm:$0xf]
    %v3264 = vld [vmem:[%s3253 + $0x3c] sm:$0xff]
    %v3265 = vld [vmem:[%s3253 + $0x44] sm:$0xf]
    %v3266 = vld [vmem:[%s3253 + $0x48] sm:$0xff]
    %v3267 = vld [vmem:[%s3253 + $0x50] sm:$0xf]
    %v3268 = vld [vmem:[%s3253 + $0x54] sm:$0xff]
    %v3269 = vld [vmem:[%s3253 + $0x5c] sm:$0xf]
    %v3270 = vld [vmem:[%s3253 + $0x60] sm:$0xff]
    %v3271 = vld [vmem:[%s3253 + $0x68] sm:$0xf]
    %v3272 = vld [vmem:[%s3253 + $0x6c] sm:$0xff]
    %v3273 = vld [vmem:[%s3253 + $0x74] sm:$0xf]
    %v3274 = vld [vmem:[%s3253 + $0x78] sm:$0xff]
    %v3275 = vld [vmem:[%s3253 + $0x80] sm:$0xf]
    %v3276 = vld [vmem:[%s3253 + $0x84] sm:$0xff]
    %v3277 = vld [vmem:[%s3253 + $0x8c] sm:$0xf]
    %v3278 = vld [vmem:[%s3253 + $0x90] sm:$0xff]
    %v3279 = vld [vmem:[%s3253 + $0x98] sm:$0xf]
    %v3280 = vld [vmem:[%s3253 + $0x9c] sm:$0xff]
    %v3281 = vld [vmem:[%s3253 + $0xa4] sm:$0xf]
    %v3282 = vld [vmem:[%s3253 + $0xa8] sm:$0xff]
    %v3283 = vld [vmem:[%s3253 + $0xb0] sm:$0xf]
    %v3284 = vld [vmem:[%s3253 + $0xb4] sm:$0xff]
    %v3285 = vld [vmem:[%s3253 + $0xbc] sm:$0xf]
    %v3286 = vld [vmem:[%s3253 + $0xc0] sm:$0xff]
    %v3287 = vld [vmem:[%s3253 + $0xc8] sm:$0xf]
    %v3288 = vld [vmem:[%s3253 + $0xcc] sm:$0xff]
    %v3289 = vld [vmem:[%s3253 + $0xd4] sm:$0xf]
    %v3290 = vld [vmem:[%s3253 + $0xd8] sm:$0xff]
    %v3291 = vld [vmem:[%s3253 + $0xe0] sm:$0xf]
    %v3292 = vld [vmem:[%s3253 + $0xe4] sm:$0xff]
    %v3293 = vld [vmem:[%s3253 + $0xec] sm:$0xf]
    %v3294 = vld [vmem:[%s3253 + $0xf0] sm:$0xff]
    %v3295 = vld [vmem:[%s3253 + $0xf8] sm:$0xf]
    %v3296 = vld [vmem:[%s3253 + $0xfc] sm:$0xff]
    %v3297 = vld [vmem:[%s3253 + $0x104] sm:$0xf]
    %v3298 = vld [vmem:[%s3253 + $0x108] sm:$0xff]
    %v3299 = vld [vmem:[%s3253 + $0x110] sm:$0xf]
    %v3300 = vld [vmem:[%s3253 + $0x114] sm:$0xff]
    %v3301 = vld [vmem:[%s3253 + $0x11c] sm:$0xf]
    %v3302 = vld [vmem:[%s3253 + $0x120] sm:$0xff]
    %v3303 = vld [vmem:[%s3253 + $0x128] sm:$0xf]
    %v3304 = vld [vmem:[%s3253 + $0x12c] sm:$0xff]
    %v3305 = vld [vmem:[%s3253 + $0x134] sm:$0xf]
    %v3306 = vld [vmem:[%s3253 + $0x138] sm:$0xff]
    %v3307 = vld [vmem:[%s3253 + $0x140] sm:$0xf]
    %v3308 = vld [vmem:[%s3253 + $0x144] sm:$0xff]
    %v3309 = vld [vmem:[%s3253 + $0x14c] sm:$0xf]
    %v3310 = vld [vmem:[%s3253 + $0x150] sm:$0xff]
    %v3311 = vld [vmem:[%s3253 + $0x158] sm:$0xf]
    %v3312 = vld [vmem:[%s3253 + $0x15c] sm:$0xff]
    %v3313 = vld [vmem:[%s3253 + $0x164] sm:$0xf]
    %v3314 = vld [vmem:[%s3253 + $0x168] sm:$0xff]
    %v3315 = vld [vmem:[%s3253 + $0x170] sm:$0xf]
    %v3316 = vld [vmem:[%s3253 + $0x174] sm:$0xff]
    %v3317 = vld [vmem:[%s3253 + $0x17c] sm:$0xf]
    %v3318 = vld [vmem:[%s3253 + $0x180] sm:$0xff]
    %v3319 = vld [vmem:[%s3253 + $0x188] sm:$0xf]
    %v3320 = vld [vmem:[%s3253 + $0x18c] sm:$0xff]
    %v3321 = vld [vmem:[%s3253 + $0x194] sm:$0xf]
    %v3322 = vld [vmem:[%s3253 + $0x198] sm:$0xff]
    %v3323 = vld [vmem:[%s3253 + $0x1a0] sm:$0xf]
    %v3324 = vld [vmem:[%s3253 + $0x1a4] sm:$0xff]
    %v3325 = vld [vmem:[%s3253 + $0x1ac] sm:$0xf]
    %v3326 = vld [vmem:[%s3253 + $0x1b0] sm:$0xff]
    %v3327 = vld [vmem:[%s3253 + $0x1b8] sm:$0xf]
    %v3328 = vld [vmem:[%s3253 + $0x1bc] sm:$0xff]
    %v3329 = vld [vmem:[%s3253 + $0x1c4] sm:$0xf]
    %v3330 = vld [vmem:[%s3253 + $0x1c8] sm:$0xff]
    %v3331 = vld [vmem:[%s3253 + $0x1d0] sm:$0xf]
    %v3332 = vld [vmem:[%s3253 + $0x1d4] sm:$0xff]
    %v3333 = vld [vmem:[%s3253 + $0x1dc] sm:$0xf]
    %v3414 = vunpack.c.l.b16 %v3254
    %v3415 = vunpack.c.h.b16 %v3254
    %v3416 = vunpack.c.l.b16 %v3255
    %v3417 = vunpack.c.l.b16 %v3256
    %v3418 = vunpack.c.h.b16 %v3256
    %v3419 = vunpack.c.l.b16 %v3257
    %v3420 = vunpack.c.l.b16 %v3258
    %v3421 = vunpack.c.h.b16 %v3258
    %v3422 = vunpack.c.l.b16 %v3259
    %v3423 = vunpack.c.l.b16 %v3260
    %v3424 = vunpack.c.h.b16 %v3260
    %v3425 = vunpack.c.l.b16 %v3261
    %v3426 = vunpack.c.l.b16 %v3262
    %v3427 = vunpack.c.h.b16 %v3262
    %v3428 = vunpack.c.l.b16 %v3263
    %v3429 = vunpack.c.l.b16 %v3264
    %v3430 = vunpack.c.h.b16 %v3264
    %v3431 = vunpack.c.l.b16 %v3265
    %v3432 = vunpack.c.l.b16 %v3266
    %v3433 = vunpack.c.h.b16 %v3266
    %v3434 = vunpack.c.l.b16 %v3267
    %v3435 = vunpack.c.l.b16 %v3268
    %v3436 = vunpack.c.h.b16 %v3268
    %v3437 = vunpack.c.l.b16 %v3269
    %v3438 = vunpack.c.l.b16 %v3270
    %v3439 = vunpack.c.h.b16 %v3270
    %v3440 = vunpack.c.l.b16 %v3271
    %v3441 = vunpack.c.l.b16 %v3272
    %v3442 = vunpack.c.h.b16 %v3272
    %v3443 = vunpack.c.l.b16 %v3273
    %v3444 = vunpack.c.l.b16 %v3274
    %v3445 = vunpack.c.h.b16 %v3274
    %v3446 = vunpack.c.l.b16 %v3275
    %v3447 = vunpack.c.l.b16 %v3276
    %v3448 = vunpack.c.h.b16 %v3276
    %v3449 = vunpack.c.l.b16 %v3277
    %v3450 = vunpack.c.l.b16 %v3278
    %v3451 = vunpack.c.h.b16 %v3278
    %v3452 = vunpack.c.l.b16 %v3279
    %v3453 = vunpack.c.l.b16 %v3280
    %v3454 = vunpack.c.h.b16 %v3280
    %v3455 = vunpack.c.l.b16 %v3281
    %v3456 = vunpack.c.l.b16 %v3282
    %v3457 = vunpack.c.h.b16 %v3282
    %v3458 = vunpack.c.l.b16 %v3283
    %v3459 = vunpack.c.l.b16 %v3284
    %v3460 = vunpack.c.h.b16 %v3284
    %v3461 = vunpack.c.l.b16 %v3285
    %v3462 = vunpack.c.l.b16 %v3286
    %v3463 = vunpack.c.h.b16 %v3286
    %v3464 = vunpack.c.l.b16 %v3287
    %v3465 = vunpack.c.l.b16 %v3288
    %v3466 = vunpack.c.h.b16 %v3288
    %v3467 = vunpack.c.l.b16 %v3289
    %v3468 = vunpack.c.l.b16 %v3290
    %v3469 = vunpack.c.h.b16 %v3290
    %v3470 = vunpack.c.l.b16 %v3291
    %v3471 = vunpack.c.l.b16 %v3292
    %v3472 = vunpack.c.h.b16 %v3292
    %v3473 = vunpack.c.l.b16 %v3293
    %v3474 = vunpack.c.l.b16 %v3294
    %v3475 = vunpack.c.h.b16 %v3294
    %v3476 = vunpack.c.l.b16 %v3295
    %v3477 = vunpack.c.l.b16 %v3296
    %v3478 = vunpack.c.h.b16 %v3296
    %v3479 = vunpack.c.l.b16 %v3297
    %v3480 = vunpack.c.l.b16 %v3298
    %v3481 = vunpack.c.h.b16 %v3298
    %v3482 = vunpack.c.l.b16 %v3299
    %v3483 = vunpack.c.l.b16 %v3300
    %v3484 = vunpack.c.h.b16 %v3300
    %v3485 = vunpack.c.l.b16 %v3301
    %v3486 = vunpack.c.l.b16 %v3302
    %v3487 = vunpack.c.h.b16 %v3302
    %v3488 = vunpack.c.l.b16 %v3303
    %v3489 = vunpack.c.l.b16 %v3304
    %v3490 = vunpack.c.h.b16 %v3304
    %v3491 = vunpack.c.l.b16 %v3305
    %v3492 = vunpack.c.l.b16 %v3306
    %v3493 = vunpack.c.h.b16 %v3306
    %v3494 = vunpack.c.l.b16 %v3307
    %v3495 = vunpack.c.l.b16 %v3308
    %v3496 = vunpack.c.h.b16 %v3308
    %v3497 = vunpack.c.l.b16 %v3309
    %v3498 = vunpack.c.l.b16 %v3310
    %v3499 = vunpack.c.h.b16 %v3310
    %v3500 = vunpack.c.l.b16 %v3311
    %v3501 = vunpack.c.l.b16 %v3312
    %v3502 = vunpack.c.h.b16 %v3312
    %v3503 = vunpack.c.l.b16 %v3313
    %v3504 = vunpack.c.l.b16 %v3314
    %v3505 = vunpack.c.h.b16 %v3314
    %v3506 = vunpack.c.l.b16 %v3315
    %v3507 = vunpack.c.l.b16 %v3316
    %v3508 = vunpack.c.h.b16 %v3316
    %v3509 = vunpack.c.l.b16 %v3317
    %v3510 = vunpack.c.l.b16 %v3318
    %v3511 = vunpack.c.h.b16 %v3318
    %v3512 = vunpack.c.l.b16 %v3319
    %v3513 = vunpack.c.l.b16 %v3320
    %v3514 = vunpack.c.h.b16 %v3320
    %v3515 = vunpack.c.l.b16 %v3321
    %v3516 = vunpack.c.l.b16 %v3322
    %v3517 = vunpack.c.h.b16 %v3322
    %v3518 = vunpack.c.l.b16 %v3323
    %v3519 = vunpack.c.l.b16 %v3324
    %v3520 = vunpack.c.h.b16 %v3324
    %v3521 = vunpack.c.l.b16 %v3325
    %v3522 = vunpack.c.l.b16 %v3326
    %v3523 = vunpack.c.h.b16 %v3326
    %v3524 = vunpack.c.l.b16 %v3327
    %v3525 = vunpack.c.l.b16 %v3328
    %v3526 = vunpack.c.h.b16 %v3328
    %v3527 = vunpack.c.l.b16 %v3329
    %v3528 = vunpack.c.l.b16 %v3330
    %v3529 = vunpack.c.h.b16 %v3330
    %v3530 = vunpack.c.l.b16 %v3331
    %v3531 = vunpack.c.l.b16 %v3332
    %v3532 = vunpack.c.h.b16 %v3332
    %v3533 = vunpack.c.l.b16 %v3333
    %v3534 = vpack.c.b16 %v3417, %v3414
    %v3535 = vpack.c.b16 %v3418, %v3415
    %v3536 = vpack.c.b16 %v3419, %v3416
    %v3537 = vpack.c.b16 %v3423, %v3420
    %v3538 = vpack.c.b16 %v3424, %v3421
    %v3539 = vpack.c.b16 %v3425, %v3422
    %v3540 = vpack.c.b16 %v3429, %v3426
    %v3541 = vpack.c.b16 %v3430, %v3427
    %v3542 = vpack.c.b16 %v3431, %v3428
    %v3543 = vpack.c.b16 %v3435, %v3432
    %v3544 = vpack.c.b16 %v3436, %v3433
    %v3545 = vpack.c.b16 %v3437, %v3434
    %v3546 = vpack.c.b16 %v3441, %v3438
    %v3547 = vpack.c.b16 %v3442, %v3439
    %v3548 = vpack.c.b16 %v3443, %v3440
    %v3549 = vpack.c.b16 %v3447, %v3444
    %v3550 = vpack.c.b16 %v3448, %v3445
    %v3551 = vpack.c.b16 %v3449, %v3446
    %v3552 = vpack.c.b16 %v3453, %v3450
    %v3553 = vpack.c.b16 %v3454, %v3451
    %v3554 = vpack.c.b16 %v3455, %v3452
    %v3555 = vpack.c.b16 %v3459, %v3456
    %v3556 = vpack.c.b16 %v3460, %v3457
    %v3557 = vpack.c.b16 %v3461, %v3458
    %v3558 = vpack.c.b16 %v3465, %v3462
    %v3559 = vpack.c.b16 %v3466, %v3463
    %v3560 = vpack.c.b16 %v3467, %v3464
    %v3561 = vpack.c.b16 %v3471, %v3468
    %v3562 = vpack.c.b16 %v3472, %v3469
    %v3563 = vpack.c.b16 %v3473, %v3470
    %v3564 = vpack.c.b16 %v3477, %v3474
    %v3565 = vpack.c.b16 %v3478, %v3475
    %v3566 = vpack.c.b16 %v3479, %v3476
    %v3567 = vpack.c.b16 %v3483, %v3480
    %v3568 = vpack.c.b16 %v3484, %v3481
    %v3569 = vpack.c.b16 %v3485, %v3482
    %v3570 = vpack.c.b16 %v3489, %v3486
    %v3571 = vpack.c.b16 %v3490, %v3487
    %v3572 = vpack.c.b16 %v3491, %v3488
    %v3573 = vpack.c.b16 %v3495, %v3492
    %v3574 = vpack.c.b16 %v3496, %v3493
    %v3575 = vpack.c.b16 %v3497, %v3494
    %v3576 = vpack.c.b16 %v3501, %v3498
    %v3577 = vpack.c.b16 %v3502, %v3499
    %v3578 = vpack.c.b16 %v3503, %v3500
    %v3579 = vpack.c.b16 %v3507, %v3504
    %v3580 = vpack.c.b16 %v3508, %v3505
    %v3581 = vpack.c.b16 %v3509, %v3506
    %v3582 = vpack.c.b16 %v3513, %v3510
    %v3583 = vpack.c.b16 %v3514, %v3511
    %v3584 = vpack.c.b16 %v3515, %v3512
    %v3585 = vpack.c.b16 %v3519, %v3516
    %v3586 = vpack.c.b16 %v3520, %v3517
    %v3587 = vpack.c.b16 %v3521, %v3518
    %v3588 = vpack.c.b16 %v3525, %v3522
    %v3589 = vpack.c.b16 %v3526, %v3523
    %v3590 = vpack.c.b16 %v3527, %v3524
    %v3591 = vpack.c.b16 %v3531, %v3528
    %v3592 = vpack.c.b16 %v3532, %v3529
    %v3593 = vpack.c.b16 %v3533, %v3530
    %v3655 = vsel %vm2434, %v1909, 0
    %3657 = vmatprep.subr.bf16.mxu0 %v3535
    %3658 = vmatpush1.bf16.msra.mxu0 %v3534
    %3659 = vmatprep.subr.bf16.mxu0 %v3538
    %3660 = vmatpush1.bf16.msra.mxu0 %v3537
    %3661 = vmatprep.subr.bf16.mxu0 %v3541
    %3662 = vmatpush1.bf16.msra.mxu0 %v3540
    %3663 = vmatprep.subr.bf16.mxu0 %v3544
    %3664 = vmatpush1.bf16.msra.mxu0 %v3543
    %3665 = vmatprep.subr.bf16.mxu0 %v3547
    %3666 = vmatpush1.bf16.msra.mxu0 %v3546
    %3667 = vmatprep.subr.bf16.mxu0 %v3550
    %3668 = vmatpush1.bf16.msra.mxu0 %v3549
    %3669 = vmatprep.subr.bf16.mxu0 %v3553
    %3670 = vmatpush1.bf16.msra.mxu0 %v3552
    %3671 = vmatprep.subr.bf16.mxu0 %v3556
    %3672 = vmatpush1.bf16.msra.mxu0 %v3555
    %3673 = vmatprep.subr.bf16.mxu0 %v3559
    %3674 = vmatpush1.bf16.msra.mxu0 %v3558
    %3675 = vmatprep.subr.bf16.mxu0 %v3562
    %3676 = vmatpush1.bf16.msra.mxu0 %v3561
    %3677 = vmatprep.subr.bf16.mxu0 %v3565
    %3678 = vmatpush1.bf16.msra.mxu0 %v3564
    %3679 = vmatprep.subr.bf16.mxu0 %v3568
    %3680 = vmatpush1.bf16.msra.mxu0 %v3567
    %3681 = vmatprep.subr.bf16.mxu0 %v3571
    %3682 = vmatpush1.bf16.msra.mxu0 %v3570
    %3683 = vmatprep.subr.bf16.mxu0 %v3574
    %3684 = vmatpush1.bf16.msra.mxu0 %v3573
    %3685 = vmatprep.subr.bf16.mxu0 %v3577
    %3686 = vmatpush1.bf16.msra.mxu0 %v3576
    %3687 = vmatprep.subr.bf16.mxu0 %v3580
    %3688 = vmatpush1.bf16.msra.mxu0 %v3579
    %3689 = vmatprep.mubr.bf16.mxu0 %v1902
    %3690 = vmatmul.mubr.bf16.gmra.mrb[0].mxu0 %v1901
    %v3691 = vpop.f32.mrb[0].mxu0
    %v3692 = vadd.f32 0.0, %v3691
    %v3693 = vpop.f32.mrb[0].mxu0
    %v3694 = vadd.f32 0.0, %v3693
    %v3695 = vpop.f32.mrb[0].mxu0
    %v3696 = vadd.f32 0.0, %v3695
    %v3697 = vpop.f32.mrb[0].mxu0
    %v3698 = vadd.f32 0.0, %v3697
    %3699 = vmatprep.mubr.bf16.mxu0 %v1905
    %3700 = vmatmul.mubr.bf16.gmra.mrb[0].mxu0 %v1904
    %v3701 = vpop.f32.mrb[0].mxu0
    %v3702 = vadd.f32 0.0, %v3701
    %v3703 = vpop.f32.mrb[0].mxu0
    %v3704 = vadd.f32 0.0, %v3703
    %v3705 = vpop.f32.mrb[0].mxu0
    %v3706 = vadd.f32 0.0, %v3705
    %v3707 = vpop.f32.mrb[0].mxu0
    %v3708 = vadd.f32 0.0, %v3707
    %3709 = vmatprep.mubr.bf16.mxu0 %v1908
    %3710 = vmatmul.mubr.bf16.gmra.mrb[0].mxu0 %v1907
    %v3711 = vpop.f32.mrb[0].mxu0
    %v3712 = vadd.f32 0.0, %v3711
    %v3713 = vpop.f32.mrb[0].mxu0
    %v3714 = vadd.f32 0.0, %v3713
    %v3715 = vpop.f32.mrb[0].mxu0
    %v3716 = vadd.f32 0.0, %v3715
    %v3717 = vpop.f32.mrb[0].mxu0
    %v3718 = vadd.f32 0.0, %v3717
    %3719 = vdwg.mxu0
    %3720 = vmatprep.subr.bf16.mxu0 %v3583
    %3721 = vmatpush1.bf16.msra.mxu0 %v3582
    %3722 = vmatprep.subr.bf16.mxu0 %v3586
    %3723 = vmatpush1.bf16.msra.mxu0 %v3585
    %3724 = vmatprep.subr.bf16.mxu0 %v3589
    %3725 = vmatpush1.bf16.msra.mxu0 %v3588
    %3726 = vmatprep.subr.bf16.mxu0 %v3592
    %3727 = vmatpush1.bf16.msra.mxu0 %v3591
    %3728 = vmatprep.subr.bf16.mxu0 0
    %3729 = vmatpush1.bf16.msra.mxu0 0
    %3730 = vmatprep.subr.bf16.mxu0 0
    %3731 = vmatpush1.bf16.msra.mxu0 0
    %3732 = vmatprep.subr.bf16.mxu0 0
    %3733 = vmatpush1.bf16.msra.mxu0 0
    %3734 = vmatprep.subr.bf16.mxu0 0
    %3735 = vmatpush1.bf16.msra.mxu0 0
    %3736 = vmatprep.subr.bf16.mxu0 0
    %3737 = vmatpush1.bf16.msra.mxu0 0
    %3738 = vmatprep.subr.bf16.mxu0 0
    %3739 = vmatpush1.bf16.msra.mxu0 0
    %3740 = vmatprep.subr.bf16.mxu0 0
    %3741 = vmatpush1.bf16.msra.mxu0 0
    %3742 = vmatprep.subr.bf16.mxu0 0
    %3743 = vmatpush1.bf16.msra.mxu0 0
    %3744 = vmatprep.subr.bf16.mxu0 0
    %3745 = vmatpush1.bf16.msra.mxu0 0
    %3746 = vmatprep.subr.bf16.mxu0 0
    %3747 = vmatpush1.bf16.msra.mxu0 0
    %3748 = vmatprep.subr.bf16.mxu0 0
    %3749 = vmatpush1.bf16.msra.mxu0 0
    %3750 = vmatprep.subr.bf16.mxu0 0
    %3751 = vmatpush1.bf16.msra.mxu0 0
    %3752 = vmatprep.mubr.bf16.mxu0 0
    %3753 = vmatmul.mubr.bf16.gmra.mrb[0].mxu0 %v3008
    %v3754 = vpop.f32.mrb[0].mxu0
    %v3755 = vadd.f32 %v3692, %v3754
    %v3756 = vpop.f32.mrb[0].mxu0
    %v3757 = vadd.f32 %v3694, %v3756
    %v3758 = vpop.f32.mrb[0].mxu0
    %v3759 = vadd.f32 %v3696, %v3758
    %v3760 = vpop.f32.mrb[0].mxu0
    %v3761 = vadd.f32 %v3698, %v3760
    %3762 = vmatprep.mubr.bf16.mxu0 0
    %3763 = vmatmul.mubr.bf16.gmra.mrb[0].mxu0 %v3011
    %v3764 = vpop.f32.mrb[0].mxu0
    %v3765 = vadd.f32 %v3702, %v3764
    %v3766 = vpop.f32.mrb[0].mxu0
    %v3767 = vadd.f32 %v3704, %v3766
    %v3768 = vpop.f32.mrb[0].mxu0
    %v3769 = vadd.f32 %v3706, %v3768
    %v3770 = vpop.f32.mrb[0].mxu0
    %v3771 = vadd.f32 %v3708, %v3770
    %3772 = vmatprep.mubr.bf16.mxu0 0
    %3773 = vmatmul.mubr.bf16.gmra.mrb[0].mxu0 %v3655
    %v3774 = vpop.f32.mrb[0].mxu0
    %v3775 = vadd.f32 %v3712, %v3774
    %v3776 = vpop.f32.mrb[0].mxu0
    %v3777 = vadd.f32 %v3714, %v3776
    %v3778 = vpop.f32.mrb[0].mxu0
    %v3779 = vadd.f32 %v3716, %v3778
    %v3780 = vpop.f32.mrb[0].mxu0
    %v3781 = vadd.f32 %v3718, %v3780
    %3782 = vdwg.mxu0
    %3783 = vmatprep.subr.bf16.mxu0 0
    %3784 = vmatpush1.bf16.msra.mxu0 %v3536
    %3785 = vmatprep.subr.bf16.mxu0 0
    %3786 = vmatpush1.bf16.msra.mxu0 %v3539
    %3787 = vmatprep.subr.bf16.mxu0 0
    %3788 = vmatpush1.bf16.msra.mxu0 %v3542
    %3789 = vmatprep.subr.bf16.mxu0 0
    %3790 = vmatpush1.bf16.msra.mxu0 %v3545
    %3791 = vmatprep.subr.bf16.mxu0 0
    %3792 = vmatpush1.bf16.msra.mxu0 %v3548
    %3793 = vmatprep.subr.bf16.mxu0 0
    %3794 = vmatpush1.bf16.msra.mxu0 %v3551
    %3795 = vmatprep.subr.bf16.mxu0 0
    %3796 = vmatpush1.bf16.msra.mxu0 %v3554
    %3797 = vmatprep.subr.bf16.mxu0 0
    %3798 = vmatpush1.bf16.msra.mxu0 %v3557
    %3799 = vmatprep.subr.bf16.mxu0 0
    %3800 = vmatpush1.bf16.msra.mxu0 %v3560
    %3801 = vmatprep.subr.bf16.mxu0 0
    %3802 = vmatpush1.bf16.msra.mxu0 %v3563
    %3803 = vmatprep.subr.bf16.mxu0 0
    %3804 = vmatpush1.bf16.msra.mxu0 %v3566
    %3805 = vmatprep.subr.bf16.mxu0 0
    %3806 = vmatpush1.bf16.msra.mxu0 %v3569
    %3807 = vmatprep.subr.bf16.mxu0 0
    %3808 = vmatpush1.bf16.msra.mxu0 %v3572
    %3809 = vmatprep.subr.bf16.mxu0 0
    %3810 = vmatpush1.bf16.msra.mxu0 %v3575
    %3811 = vmatprep.subr.bf16.mxu0 0
    %3812 = vmatpush1.bf16.msra.mxu0 %v3578
    %3813 = vmatprep.subr.bf16.mxu0 0
    %3814 = vmatpush1.bf16.msra.mxu0 %v3581
    %3815 = vmatprep.mubr.bf16.mxu0 %v1902
    %3816 = vmatmul.mubr.bf16.gmra.mrb[0].mxu0 %v1901
    %v3817 = vpop.f32.mrb[0].mxu0
    %v3818 = vadd.f32 0.0, %v3817
    %v3819 = vpop.f32.mrb[0].mxu0
    %v3820 = vpop.f32.mrb[0].mxu0
    %v3821 = vadd.f32 0.0, %v3820
    %v3822 = vpop.f32.mrb[0].mxu0
    %3823 = vmatprep.mubr.bf16.mxu0 %v1905
    %3824 = vmatmul.mubr.bf16.gmra.mrb[0].mxu0 %v1904
    %v3825 = vpop.f32.mrb[0].mxu0
    %v3826 = vadd.f32 0.0, %v3825
    %v3827 = vpop.f32.mrb[0].mxu0
    %v3828 = vpop.f32.mrb[0].mxu0
    %v3829 = vadd.f32 0.0, %v3828
    %v3830 = vpop.f32.mrb[0].mxu0
    %3831 = vmatprep.mubr.bf16.mxu0 %v1908
    %3832 = vmatmul.mubr.bf16.gmra.mrb[0].mxu0 %v1907
    %v3833 = vpop.f32.mrb[0].mxu0
    %v3834 = vadd.f32 0.0, %v3833
    %v3835 = vpop.f32.mrb[0].mxu0
    %v3836 = vpop.f32.mrb[0].mxu0
    %v3837 = vadd.f32 0.0, %v3836
    %v3838 = vpop.f32.mrb[0].mxu0
    %3839 = vdwg.mxu0
    %3840 = vmatprep.subr.bf16.mxu0 0
    %3841 = vmatpush1.bf16.msra.mxu0 %v3584
    %3842 = vmatprep.subr.bf16.mxu0 0
    %3843 = vmatpush1.bf16.msra.mxu0 %v3587
    %3844 = vmatprep.subr.bf16.mxu0 0
    %3845 = vmatpush1.bf16.msra.mxu0 %v3590
    %3846 = vmatprep.subr.bf16.mxu0 0
    %3847 = vmatpush1.bf16.msra.mxu0 %v3593
    %3848 = vmatprep.subr.bf16.mxu0 0
    %3849 = vmatpush1.bf16.msra.mxu0 0
    %3850 = vmatprep.subr.bf16.mxu0 0
    %3851 = vmatpush1.bf16.msra.mxu0 0
    %3852 = vmatprep.subr.bf16.mxu0 0
    %3853 = vmatpush1.bf16.msra.mxu0 0
    %3854 = vmatprep.subr.bf16.mxu0 0
    %3855 = vmatpush1.bf16.msra.mxu0 0
    %3856 = vmatprep.subr.bf16.mxu0 0
    %3857 = vmatpush1.bf16.msra.mxu0 0
    %3858 = vmatprep.subr.bf16.mxu0 0
    %3859 = vmatpush1.bf16.msra.mxu0 0
    %3860 = vmatprep.subr.bf16.mxu0 0
    %3861 = vmatpush1.bf16.msra.mxu0 0
    %3862 = vmatprep.subr.bf16.mxu0 0
    %3863 = vmatpush1.bf16.msra.mxu0 0
    %3864 = vmatprep.subr.bf16.mxu0 0
    %3865 = vmatpush1.bf16.msra.mxu0 0
    %3866 = vmatprep.subr.bf16.mxu0 0
    %3867 = vmatpush1.bf16.msra.mxu0 0
    %3868 = vmatprep.subr.bf16.mxu0 0
    %3869 = vmatpush1.bf16.msra.mxu0 0
    %3870 = vmatprep.subr.bf16.mxu0 0
    %3871 = vmatpush1.bf16.msra.mxu0 0
    %3872 = vmatprep.mubr.bf16.mxu0 0
    %3873 = vmatmul.mubr.bf16.gmra.mrb[0].mxu0 %v3008
    %v3874 = vpop.f32.mrb[0].mxu0
    %v3875 = vadd.f32 %v3818, %v3874
    %v3876 = vpop.f32.mrb[0].mxu0
    %v3877 = vpop.f32.mrb[0].mxu0
    %v3878 = vadd.f32 %v3821, %v3877
    %v3879 = vpop.f32.mrb[0].mxu0
    %3880 = vmatprep.mubr.bf16.mxu0 0
    %3881 = vmatmul.mubr.bf16.gmra.mrb[0].mxu0 %v3011
    %v3882 = vpop.f32.mrb[0].mxu0
    %v3883 = vadd.f32 %v3826, %v3882
    %v3884 = vpop.f32.mrb[0].mxu0
    %v3885 = vpop.f32.mrb[0].mxu0
    %v3886 = vadd.f32 %v3829, %v3885
    %v3887 = vpop.f32.mrb[0].mxu0
    %3888 = vmatprep.mubr.bf16.mxu0 0
    %3889 = vmatmul.mubr.bf16.gmra.mrb[0].mxu0 %v3655
    %v3890 = vpop.f32.mrb[0].mxu0
    %v3891 = vadd.f32 %v3834, %v3890
    %v3892 = vpop.f32.mrb[0].mxu0
    %v3893 = vpop.f32.mrb[0].mxu0
    %v3894 = vadd.f32 %v3837, %v3893
    %v3895 = vpop.f32.mrb[0].mxu0
    %3896 = vdwg.mxu0
    %v3897 = vadd.f32 %v3111, %v3755
    %v3898 = vadd.f32 %v3113, %v3757
    %v3899 = vadd.f32 %v3231, %v3875
    %v3900 = vadd.f32 %v3115, %v3759
    %v3901 = vadd.f32 %v3117, %v3761
    %v3902 = vadd.f32 %v3234, %v3878
    %v3903 = vadd.f32 %v3121, %v3765
    %v3904 = vadd.f32 %v3123, %v3767
    %v3905 = vadd.f32 %v3239, %v3883
    %v3906 = vadd.f32 %v3125, %v3769
    %v3907 = vadd.f32 %v3127, %v3771
    %v3908 = vadd.f32 %v3242, %v3886
    %v3909 = vadd.f32 %v3131, %v3775
    %v3910 = vadd.f32 %v3133, %v3777
    %v3911 = vadd.f32 %v3247, %v3891
    %v3912 = vadd.f32 %v3135, %v3779
    %v3913 = vadd.f32 %v3137, %v3781
    %v3914 = vadd.f32 %v3250, %v3894
    %s3915 = scalar_lea.vmem [#allocation4], 1440
    %v3916 = vld [vmem:[%s3915] sm:$0xff]
    %v3917 = vld [vmem:[%s3915 + $0x8] sm:$0xf]
    %v3918 = vld [vmem:[%s3915 + $0xc] sm:$0xff]
    %v3919 = vld [vmem:[%s3915 + $0x14] sm:$0xf]
    %v3920 = vld [vmem:[%s3915 + $0x18] sm:$0xff]
    %v3921 = vld [vmem:[%s3915 + $0x20] sm:$0xf]
    %v3922 = vld [vmem:[%s3915 + $0x24] sm:$0xff]
    %v3923 = vld [vmem:[%s3915 + $0x2c] sm:$0xf]
    %v3924 = vld [vmem:[%s3915 + $0x30] sm:$0xff]
    %v3925 = vld [vmem:[%s3915 + $0x38] sm:$0xf]
    %v3926 = vld [vmem:[%s3915 + $0x3c] sm:$0xff]
    %v3927 = vld [vmem:[%s3915 + $0x44] sm:$0xf]
    %v3928 = vld [vmem:[%s3915 + $0x48] sm:$0xff]
    %v3929 = vld [vmem:[%s3915 + $0x50] sm:$0xf]
    %v3930 = vld [vmem:[%s3915 + $0x54] sm:$0xff]
    %v3931 = vld [vmem:[%s3915 + $0x5c] sm:$0xf]
    %v3932 = vld [vmem:[%s3915 + $0x60] sm:$0xff]
    %v3933 = vld [vmem:[%s3915 + $0x68] sm:$0xf]
    %v3934 = vld [vmem:[%s3915 + $0x6c] sm:$0xff]
    %v3935 = vld [vmem:[%s3915 + $0x74] sm:$0xf]
    %v3936 = vld [vmem:[%s3915 + $0x78] sm:$0xff]
    %v3937 = vld [vmem:[%s3915 + $0x80] sm:$0xf]
    %v3938 = vld [vmem:[%s3915 + $0x84] sm:$0xff]
    %v3939 = vld [vmem:[%s3915 + $0x8c] sm:$0xf]
    %v3940 = vld [vmem:[%s3915 + $0x90] sm:$0xff]
    %v3941 = vld [vmem:[%s3915 + $0x98] sm:$0xf]
    %v3942 = vld [vmem:[%s3915 + $0x9c] sm:$0xff]
    %v3943 = vld [vmem:[%s3915 + $0xa4] sm:$0xf]
    %v3944 = vld [vmem:[%s3915 + $0xa8] sm:$0xff]
    %v3945 = vld [vmem:[%s3915 + $0xb0] sm:$0xf]
    %v3946 = vld [vmem:[%s3915 + $0xb4] sm:$0xff]
    %v3947 = vld [vmem:[%s3915 + $0xbc] sm:$0xf]
    %v3948 = vld [vmem:[%s3915 + $0xc0] sm:$0xff]
    %v3949 = vld [vmem:[%s3915 + $0xc8] sm:$0xf]
    %v3950 = vld [vmem:[%s3915 + $0xcc] sm:$0xff]
    %v3951 = vld [vmem:[%s3915 + $0xd4] sm:$0xf]
    %v3952 = vld [vmem:[%s3915 + $0xd8] sm:$0xff]
    %v3953 = vld [vmem:[%s3915 + $0xe0] sm:$0xf]
    %v3954 = vld [vmem:[%s3915 + $0xe4] sm:$0xff]
    %v3955 = vld [vmem:[%s3915 + $0xec] sm:$0xf]
    %v3956 = vld [vmem:[%s3915 + $0xf0] sm:$0xff]
    %v3957 = vld [vmem:[%s3915 + $0xf8] sm:$0xf]
    %v3958 = vld [vmem:[%s3915 + $0xfc] sm:$0xff]
    %v3959 = vld [vmem:[%s3915 + $0x104] sm:$0xf]
    %v3960 = vld [vmem:[%s3915 + $0x108] sm:$0xff]
    %v3961 = vld [vmem:[%s3915 + $0x110] sm:$0xf]
    %v3962 = vld [vmem:[%s3915 + $0x114] sm:$0xff]
    %v3963 = vld [vmem:[%s3915 + $0x11c] sm:$0xf]
    %v3964 = vld [vmem:[%s3915 + $0x120] sm:$0xff]
    %v3965 = vld [vmem:[%s3915 + $0x128] sm:$0xf]
    %v3966 = vld [vmem:[%s3915 + $0x12c] sm:$0xff]
    %v3967 = vld [vmem:[%s3915 + $0x134] sm:$0xf]
    %v3968 = vld [vmem:[%s3915 + $0x138] sm:$0xff]
    %v3969 = vld [vmem:[%s3915 + $0x140] sm:$0xf]
    %v3970 = vld [vmem:[%s3915 + $0x144] sm:$0xff]
    %v3971 = vld [vmem:[%s3915 + $0x14c] sm:$0xf]
    %v3972 = vld [vmem:[%s3915 + $0x150] sm:$0xff]
    %v3973 = vld [vmem:[%s3915 + $0x158] sm:$0xf]
    %v3974 = vld [vmem:[%s3915 + $0x15c] sm:$0xff]
    %v3975 = vld [vmem:[%s3915 + $0x164] sm:$0xf]
    %v3976 = vld [vmem:[%s3915 + $0x168] sm:$0xff]
    %v3977 = vld [vmem:[%s3915 + $0x170] sm:$0xf]
    %v3978 = vld [vmem:[%s3915 + $0x174] sm:$0xff]
    %v3979 = vld [vmem:[%s3915 + $0x17c] sm:$0xf]
    %v3980 = vld [vmem:[%s3915 + $0x180] sm:$0xff]
    %v3981 = vld [vmem:[%s3915 + $0x188] sm:$0xf]
    %v3982 = vld [vmem:[%s3915 + $0x18c] sm:$0xff]
    %v3983 = vld [vmem:[%s3915 + $0x194] sm:$0xf]
    %v3984 = vld [vmem:[%s3915 + $0x198] sm:$0xff]
    %v3985 = vld [vmem:[%s3915 + $0x1a0] sm:$0xf]
    %v3986 = vld [vmem:[%s3915 + $0x1a4] sm:$0xff]
    %v3987 = vld [vmem:[%s3915 + $0x1ac] sm:$0xf]
    %v3988 = vld [vmem:[%s3915 + $0x1b0] sm:$0xff]
    %v3989 = vld [vmem:[%s3915 + $0x1b8] sm:$0xf]
    %v3990 = vld [vmem:[%s3915 + $0x1bc] sm:$0xff]
    %v3991 = vld [vmem:[%s3915 + $0x1c4] sm:$0xf]
    %v3992 = vld [vmem:[%s3915 + $0x1c8] sm:$0xff]
    %v3993 = vld [vmem:[%s3915 + $0x1d0] sm:$0xf]
    %v3994 = vld [vmem:[%s3915 + $0x1d4] sm:$0xff]
    %v3995 = vld [vmem:[%s3915 + $0x1dc] sm:$0xf]
    %v3999 = vrot.slane %v1910, 4
    %v4000 = vsel %vm2086, %v2102, %v3999
    %v4001 = vrot.slane %v1911, 4
    %v4002 = vsel %vm2086, %v2104, %v4001
    %v4003 = vrot.slane %v1912, 4
    %v4004 = vsel %vm2086, %v2106, %v4003
    %v4087 = vunpack.c.l.b16 %v3916
    %v4088 = vunpack.c.h.b16 %v3916
    %v4089 = vunpack.c.l.b16 %v3917
    %v4090 = vunpack.c.l.b16 %v3918
    %v4091 = vunpack.c.h.b16 %v3918
    %v4092 = vunpack.c.l.b16 %v3919
    %v4093 = vunpack.c.l.b16 %v3920
    %v4094 = vunpack.c.h.b16 %v3920
    %v4095 = vunpack.c.l.b16 %v3921
    %v4096 = vunpack.c.l.b16 %v3922
    %v4097 = vunpack.c.h.b16 %v3922
    %v4098 = vunpack.c.l.b16 %v3923
    %v4099 = vunpack.c.l.b16 %v3924
    %v4100 = vunpack.c.h.b16 %v3924
    %v4101 = vunpack.c.l.b16 %v3925
    %v4102 = vunpack.c.l.b16 %v3926
    %v4103 = vunpack.c.h.b16 %v3926
    %v4104 = vunpack.c.l.b16 %v3927
    %v4105 = vunpack.c.l.b16 %v3928
    %v4106 = vunpack.c.h.b16 %v3928
    %v4107 = vunpack.c.l.b16 %v3929
    %v4108 = vunpack.c.l.b16 %v3930
    %v4109 = vunpack.c.h.b16 %v3930
    %v4110 = vunpack.c.l.b16 %v3931
    %v4111 = vunpack.c.l.b16 %v3932
    %v4112 = vunpack.c.h.b16 %v3932
    %v4113 = vunpack.c.l.b16 %v3933
    %v4114 = vunpack.c.l.b16 %v3934
    %v4115 = vunpack.c.h.b16 %v3934
    %v4116 = vunpack.c.l.b16 %v3935
    %v4117 = vunpack.c.l.b16 %v3936
    %v4118 = vunpack.c.h.b16 %v3936
    %v4119 = vunpack.c.l.b16 %v3937
    %v4120 = vunpack.c.l.b16 %v3938
    %v4121 = vunpack.c.h.b16 %v3938
    %v4122 = vunpack.c.l.b16 %v3939
    %v4123 = vunpack.c.l.b16 %v3940
    %v4124 = vunpack.c.h.b16 %v3940
    %v4125 = vunpack.c.l.b16 %v3941
    %v4126 = vunpack.c.l.b16 %v3942
    %v4127 = vunpack.c.h.b16 %v3942
    %v4128 = vunpack.c.l.b16 %v3943
    %v4129 = vunpack.c.l.b16 %v3944
    %v4130 = vunpack.c.h.b16 %v3944
    %v4131 = vunpack.c.l.b16 %v3945
    %v4132 = vunpack.c.l.b16 %v3946
    %v4133 = vunpack.c.h.b16 %v3946
    %v4134 = vunpack.c.l.b16 %v3947
    %v4135 = vunpack.c.l.b16 %v3948
    %v4136 = vunpack.c.h.b16 %v3948
    %v4137 = vunpack.c.l.b16 %v3949
    %v4138 = vunpack.c.l.b16 %v3950
    %v4139 = vunpack.c.h.b16 %v3950
    %v4140 = vunpack.c.l.b16 %v3951
    %v4141 = vunpack.c.l.b16 %v3952
    %v4142 = vunpack.c.h.b16 %v3952
    %v4143 = vunpack.c.l.b16 %v3953
    %v4144 = vunpack.c.l.b16 %v3954
    %v4145 = vunpack.c.h.b16 %v3954
    %v4146 = vunpack.c.l.b16 %v3955
    %v4147 = vunpack.c.l.b16 %v3956
    %v4148 = vunpack.c.h.b16 %v3956
    %v4149 = vunpack.c.l.b16 %v3957
    %v4150 = vunpack.c.l.b16 %v3958
    %v4151 = vunpack.c.h.b16 %v3958
    %v4152 = vunpack.c.l.b16 %v3959
    %v4153 = vunpack.c.l.b16 %v3960
    %v4154 = vunpack.c.h.b16 %v3960
    %v4155 = vunpack.c.l.b16 %v3961
    %v4156 = vunpack.c.l.b16 %v3962
    %v4157 = vunpack.c.h.b16 %v3962
    %v4158 = vunpack.c.l.b16 %v3963
    %v4159 = vunpack.c.l.b16 %v3964
    %v4160 = vunpack.c.h.b16 %v3964
    %v4161 = vunpack.c.l.b16 %v3965
    %v4162 = vunpack.c.l.b16 %v3966
    %v4163 = vunpack.c.h.b16 %v3966
    %v4164 = vunpack.c.l.b16 %v3967
    %v4165 = vunpack.c.l.b16 %v3968
    %v4166 = vunpack.c.h.b16 %v3968
    %v4167 = vunpack.c.l.b16 %v3969
    %v4168 = vunpack.c.l.b16 %v3970
    %v4169 = vunpack.c.h.b16 %v3970
    %v4170 = vunpack.c.l.b16 %v3971
    %v4171 = vunpack.c.l.b16 %v3972
    %v4172 = vunpack.c.h.b16 %v3972
    %v4173 = vunpack.c.l.b16 %v3973
    %v4174 = vunpack.c.l.b16 %v3974
    %v4175 = vunpack.c.h.b16 %v3974
    %v4176 = vunpack.c.l.b16 %v3975
    %v4177 = vunpack.c.l.b16 %v3976
    %v4178 = vunpack.c.h.b16 %v3976
    %v4179 = vunpack.c.l.b16 %v3977
    %v4180 = vunpack.c.l.b16 %v3978
    %v4181 = vunpack.c.h.b16 %v3978
    %v4182 = vunpack.c.l.b16 %v3979
    %v4183 = vunpack.c.l.b16 %v3980
    %v4184 = vunpack.c.h.b16 %v3980
    %v4185 = vunpack.c.l.b16 %v3981
    %v4186 = vunpack.c.l.b16 %v3982
    %v4187 = vunpack.c.h.b16 %v3982
    %v4188 = vunpack.c.l.b16 %v3983
    %v4189 = vunpack.c.l.b16 %v3984
    %v4190 = vunpack.c.h.b16 %v3984
    %v4191 = vunpack.c.l.b16 %v3985
    %v4192 = vunpack.c.l.b16 %v3986
    %v4193 = vunpack.c.h.b16 %v3986
    %v4194 = vunpack.c.l.b16 %v3987
    %v4195 = vunpack.c.l.b16 %v3988
    %v4196 = vunpack.c.h.b16 %v3988
    %v4197 = vunpack.c.l.b16 %v3989
    %v4198 = vunpack.c.l.b16 %v3990
    %v4199 = vunpack.c.h.b16 %v3990
    %v4200 = vunpack.c.l.b16 %v3991
    %v4201 = vunpack.c.l.b16 %v3992
    %v4202 = vunpack.c.h.b16 %v3992
    %v4203 = vunpack.c.l.b16 %v3993
    %v4204 = vunpack.c.l.b16 %v3994
    %v4205 = vunpack.c.h.b16 %v3994
    %v4206 = vunpack.c.l.b16 %v3995
    %v4207 = vpack.c.b16 %v4090, %v4087
    %v4208 = vpack.c.b16 %v4091, %v4088
    %v4209 = vpack.c.b16 %v4092, %v4089
    %v4210 = vpack.c.b16 %v4096, %v4093
    %v4211 = vpack.c.b16 %v4097, %v4094
    %v4212 = vpack.c.b16 %v4098, %v4095
    %v4213 = vpack.c.b16 %v4102, %v4099
    %v4214 = vpack.c.b16 %v4103, %v4100
    %v4215 = vpack.c.b16 %v4104, %v4101
    %v4216 = vpack.c.b16 %v4108, %v4105
    %v4217 = vpack.c.b16 %v4109, %v4106
    %v4218 = vpack.c.b16 %v4110, %v4107
    %v4219 = vpack.c.b16 %v4114, %v4111
    %v4220 = vpack.c.b16 %v4115, %v4112
    %v4221 = vpack.c.b16 %v4116, %v4113
    %v4222 = vpack.c.b16 %v4120, %v4117
    %v4223 = vpack.c.b16 %v4121, %v4118
    %v4224 = vpack.c.b16 %v4122, %v4119
    %v4225 = vpack.c.b16 %v4126, %v4123
    %v4226 = vpack.c.b16 %v4127, %v4124
    %v4227 = vpack.c.b16 %v4128, %v4125
    %v4228 = vpack.c.b16 %v4132, %v4129
    %v4229 = vpack.c.b16 %v4133, %v4130
    %v4230 = vpack.c.b16 %v4134, %v4131
    %v4231 = vpack.c.b16 %v4138, %v4135
    %v4232 = vpack.c.b16 %v4139, %v4136
    %v4233 = vpack.c.b16 %v4140, %v4137
    %v4234 = vpack.c.b16 %v4144, %v4141
    %v4235 = vpack.c.b16 %v4145, %v4142
    %v4236 = vpack.c.b16 %v4146, %v4143
    %v4237 = vpack.c.b16 %v4150, %v4147
    %v4238 = vpack.c.b16 %v4151, %v4148
    %v4239 = vpack.c.b16 %v4152, %v4149
    %v4240 = vpack.c.b16 %v4156, %v4153
    %v4241 = vpack.c.b16 %v4157, %v4154
    %v4242 = vpack.c.b16 %v4158, %v4155
    %v4243 = vpack.c.b16 %v4162, %v4159
    %v4244 = vpack.c.b16 %v4163, %v4160
    %v4245 = vpack.c.b16 %v4164, %v4161
    %v4246 = vpack.c.b16 %v4168, %v4165
    %v4247 = vpack.c.b16 %v4169, %v4166
    %v4248 = vpack.c.b16 %v4170, %v4167
    %v4249 = vpack.c.b16 %v4174, %v4171
    %v4250 = vpack.c.b16 %v4175, %v4172
    %v4251 = vpack.c.b16 %v4176, %v4173
    %v4252 = vpack.c.b16 %v4180, %v4177
    %v4253 = vpack.c.b16 %v4181, %v4178
    %v4254 = vpack.c.b16 %v4182, %v4179
    %v4255 = vpack.c.b16 %v4186, %v4183
    %v4256 = vpack.c.b16 %v4187, %v4184
    %v4257 = vpack.c.b16 %v4188, %v4185
    %v4258 = vpack.c.b16 %v4192, %v4189
    %v4259 = vpack.c.b16 %v4193, %v4190
    %v4260 = vpack.c.b16 %v4194, %v4191
    %v4261 = vpack.c.b16 %v4198, %v4195
    %v4262 = vpack.c.b16 %v4199, %v4196
    %v4263 = vpack.c.b16 %v4200, %v4197
    %v4264 = vpack.c.b16 %v4204, %v4201
    %v4265 = vpack.c.b16 %v4205, %v4202
    %v4266 = vpack.c.b16 %v4206, %v4203
    %v4328 = vsel %vm2434, %v4004, 0
    %4330 = vmatprep.subr.bf16.mxu0 %v4208
    %4331 = vmatpush1.bf16.msra.mxu0 %v4207
    %4332 = vmatprep.subr.bf16.mxu0 %v4211
    %4333 = vmatpush1.bf16.msra.mxu0 %v4210
    %4334 = vmatprep.subr.bf16.mxu0 %v4214
    %4335 = vmatpush1.bf16.msra.mxu0 %v4213
    %4336 = vmatprep.subr.bf16.mxu0 %v4217
    %4337 = vmatpush1.bf16.msra.mxu0 %v4216
    %4338 = vmatprep.subr.bf16.mxu0 %v4220
    %4339 = vmatpush1.bf16.msra.mxu0 %v4219
    %4340 = vmatprep.subr.bf16.mxu0 %v4223
    %4341 = vmatpush1.bf16.msra.mxu0 %v4222
    %4342 = vmatprep.subr.bf16.mxu0 %v4226
    %4343 = vmatpush1.bf16.msra.mxu0 %v4225
    %4344 = vmatprep.subr.bf16.mxu0 %v4229
    %4345 = vmatpush1.bf16.msra.mxu0 %v4228
    %4346 = vmatprep.subr.bf16.mxu0 %v4232
    %4347 = vmatpush1.bf16.msra.mxu0 %v4231
    %4348 = vmatprep.subr.bf16.mxu0 %v4235
    %4349 = vmatpush1.bf16.msra.mxu0 %v4234
    %4350 = vmatprep.subr.bf16.mxu0 %v4238
    %4351 = vmatpush1.bf16.msra.mxu0 %v4237
    %4352 = vmatprep.subr.bf16.mxu0 %v4241
    %4353 = vmatpush1.bf16.msra.mxu0 %v4240
    %4354 = vmatprep.subr.bf16.mxu0 %v4244
    %4355 = vmatpush1.bf16.msra.mxu0 %v4243
    %4356 = vmatprep.subr.bf16.mxu0 %v4247
    %4357 = vmatpush1.bf16.msra.mxu0 %v4246
    %4358 = vmatprep.subr.bf16.mxu0 %v4250
    %4359 = vmatpush1.bf16.msra.mxu0 %v4249
    %4360 = vmatprep.subr.bf16.mxu0 %v4253
    %4361 = vmatpush1.bf16.msra.mxu0 %v4252
    %4362 = vmatprep.mubr.bf16.mxu0 %v2099
    %4363 = vmatmul.mubr.bf16.gmra.mrb[0].mxu0 %v2097
    %v4364 = vpop.f32.mrb[0].mxu0
    %v4365 = vadd.f32 0.0, %v4364
    %v4366 = vpop.f32.mrb[0].mxu0
    %v4367 = vadd.f32 0.0, %v4366
    %v4368 = vpop.f32.mrb[0].mxu0
    %v4369 = vadd.f32 0.0, %v4368
    %v4370 = vpop.f32.mrb[0].mxu0
    %v4371 = vadd.f32 0.0, %v4370
    %4372 = vmatprep.mubr.bf16.mxu0 %v2105
    %4373 = vmatmul.mubr.bf16.gmra.mrb[0].mxu0 %v2103
    %v4374 = vpop.f32.mrb[0].mxu0
    %v4375 = vadd.f32 0.0, %v4374
    %v4376 = vpop.f32.mrb[0].mxu0
    %v4377 = vadd.f32 0.0, %v4376
    %v4378 = vpop.f32.mrb[0].mxu0
    %v4379 = vadd.f32 0.0, %v4378
    %v4380 = vpop.f32.mrb[0].mxu0
    %v4381 = vadd.f32 0.0, %v4380
    %4382 = vmatprep.mubr.bf16.mxu0 %v4002
    %4383 = vmatmul.mubr.bf16.gmra.mrb[0].mxu0 %v4000
    %v4384 = vpop.f32.mrb[0].mxu0
    %v4385 = vadd.f32 0.0, %v4384
    %v4386 = vpop.f32.mrb[0].mxu0
    %v4387 = vadd.f32 0.0, %v4386
    %v4388 = vpop.f32.mrb[0].mxu0
    %v4389 = vadd.f32 0.0, %v4388
    %v4390 = vpop.f32.mrb[0].mxu0
    %v4391 = vadd.f32 0.0, %v4390
    %4392 = vdwg.mxu0
    %4393 = vmatprep.subr.bf16.mxu0 %v4256
    %4394 = vmatpush1.bf16.msra.mxu0 %v4255
    %4395 = vmatprep.subr.bf16.mxu0 %v4259
    %4396 = vmatpush1.bf16.msra.mxu0 %v4258
    %4397 = vmatprep.subr.bf16.mxu0 %v4262
    %4398 = vmatpush1.bf16.msra.mxu0 %v4261
    %4399 = vmatprep.subr.bf16.mxu0 %v4265
    %4400 = vmatpush1.bf16.msra.mxu0 %v4264
    %4401 = vmatprep.subr.bf16.mxu0 0
    %4402 = vmatpush1.bf16.msra.mxu0 0
    %4403 = vmatprep.subr.bf16.mxu0 0
    %4404 = vmatpush1.bf16.msra.mxu0 0
    %4405 = vmatprep.subr.bf16.mxu0 0
    %4406 = vmatpush1.bf16.msra.mxu0 0
    %4407 = vmatprep.subr.bf16.mxu0 0
    %4408 = vmatpush1.bf16.msra.mxu0 0
    %4409 = vmatprep.subr.bf16.mxu0 0
    %4410 = vmatpush1.bf16.msra.mxu0 0
    %4411 = vmatprep.subr.bf16.mxu0 0
    %4412 = vmatpush1.bf16.msra.mxu0 0
    %4413 = vmatprep.subr.bf16.mxu0 0
    %4414 = vmatpush1.bf16.msra.mxu0 0
    %4415 = vmatprep.subr.bf16.mxu0 0
    %4416 = vmatpush1.bf16.msra.mxu0 0
    %4417 = vmatprep.subr.bf16.mxu0 0
    %4418 = vmatpush1.bf16.msra.mxu0 0
    %4419 = vmatprep.subr.bf16.mxu0 0
    %4420 = vmatpush1.bf16.msra.mxu0 0
    %4421 = vmatprep.subr.bf16.mxu0 0
    %4422 = vmatpush1.bf16.msra.mxu0 0
    %4423 = vmatprep.subr.bf16.mxu0 0
    %4424 = vmatpush1.bf16.msra.mxu0 0
    %4425 = vmatprep.mubr.bf16.mxu0 0
    %4426 = vmatmul.mubr.bf16.gmra.mrb[0].mxu0 %v2439
    %v4427 = vpop.f32.mrb[0].mxu0
    %v4428 = vadd.f32 %v4365, %v4427
    %v4429 = vpop.f32.mrb[0].mxu0
    %v4430 = vadd.f32 %v4367, %v4429
    %v4431 = vpop.f32.mrb[0].mxu0
    %v4432 = vadd.f32 %v4369, %v4431
    %v4433 = vpop.f32.mrb[0].mxu0
    %v4434 = vadd.f32 %v4371, %v4433
    %4435 = vmatprep.mubr.bf16.mxu0 0
    %4436 = vmatmul.mubr.bf16.gmra.mrb[0].mxu0 %v2442
    %v4437 = vpop.f32.mrb[0].mxu0
    %v4438 = vadd.f32 %v4375, %v4437
    %v4439 = vpop.f32.mrb[0].mxu0
    %v4440 = vadd.f32 %v4377, %v4439
    %v4441 = vpop.f32.mrb[0].mxu0
    %v4442 = vadd.f32 %v4379, %v4441
    %v4443 = vpop.f32.mrb[0].mxu0
    %v4444 = vadd.f32 %v4381, %v4443
    %4445 = vmatprep.mubr.bf16.mxu0 0
    %4446 = vmatmul.mubr.bf16.gmra.mrb[0].mxu0 %v4328
    %v4447 = vpop.f32.mrb[0].mxu0
    %v4448 = vadd.f32 %v4385, %v4447
    %v4449 = vpop.f32.mrb[0].mxu0
    %v4450 = vadd.f32 %v4387, %v4449
    %v4451 = vpop.f32.mrb[0].mxu0
    %v4452 = vadd.f32 %v4389, %v4451
    %v4453 = vpop.f32.mrb[0].mxu0
    %v4454 = vadd.f32 %v4391, %v4453
    %4455 = vdwg.mxu0
    %4456 = vmatprep.subr.bf16.mxu0 0
    %4457 = vmatpush1.bf16.msra.mxu0 %v4209
    %4458 = vmatprep.subr.bf16.mxu0 0
    %4459 = vmatpush1.bf16.msra.mxu0 %v4212
    %4460 = vmatprep.subr.bf16.mxu0 0
    %4461 = vmatpush1.bf16.msra.mxu0 %v4215
    %4462 = vmatprep.subr.bf16.mxu0 0
    %4463 = vmatpush1.bf16.msra.mxu0 %v4218
    %4464 = vmatprep.subr.bf16.mxu0 0
    %4465 = vmatpush1.bf16.msra.mxu0 %v4221
    %4466 = vmatprep.subr.bf16.mxu0 0
    %4467 = vmatpush1.bf16.msra.mxu0 %v4224
    %4468 = vmatprep.subr.bf16.mxu0 0
    %4469 = vmatpush1.bf16.msra.mxu0 %v4227
    %4470 = vmatprep.subr.bf16.mxu0 0
    %4471 = vmatpush1.bf16.msra.mxu0 %v4230
    %4472 = vmatprep.subr.bf16.mxu0 0
    %4473 = vmatpush1.bf16.msra.mxu0 %v4233
    %4474 = vmatprep.subr.bf16.mxu0 0
    %4475 = vmatpush1.bf16.msra.mxu0 %v4236
    %4476 = vmatprep.subr.bf16.mxu0 0
    %4477 = vmatpush1.bf16.msra.mxu0 %v4239
    %4478 = vmatprep.subr.bf16.mxu0 0
    %4479 = vmatpush1.bf16.msra.mxu0 %v4242
    %4480 = vmatprep.subr.bf16.mxu0 0
    %4481 = vmatpush1.bf16.msra.mxu0 %v4245
    %4482 = vmatprep.subr.bf16.mxu0 0
    %4483 = vmatpush1.bf16.msra.mxu0 %v4248
    %4484 = vmatprep.subr.bf16.mxu0 0
    %4485 = vmatpush1.bf16.msra.mxu0 %v4251
    %4486 = vmatprep.subr.bf16.mxu0 0
    %4487 = vmatpush1.bf16.msra.mxu0 %v4254
    %4488 = vmatprep.mubr.bf16.mxu0 %v2099
    %4489 = vmatmul.mubr.bf16.gmra.mrb[0].mxu0 %v2097
    %v4490 = vpop.f32.mrb[0].mxu0
    %v4491 = vadd.f32 0.0, %v4490
    %v4492 = vpop.f32.mrb[0].mxu0
    %v4493 = vpop.f32.mrb[0].mxu0
    %v4494 = vadd.f32 0.0, %v4493
    %v4495 = vpop.f32.mrb[0].mxu0
    %4496 = vmatprep.mubr.bf16.mxu0 %v2105
    %4497 = vmatmul.mubr.bf16.gmra.mrb[0].mxu0 %v2103
    %v4498 = vpop.f32.mrb[0].mxu0
    %v4499 = vadd.f32 0.0, %v4498
    %v4500 = vpop.f32.mrb[0].mxu0
    %v4501 = vpop.f32.mrb[0].mxu0
    %v4502 = vadd.f32 0.0, %v4501
    %v4503 = vpop.f32.mrb[0].mxu0
    %4504 = vmatprep.mubr.bf16.mxu0 %v4002
    %4505 = vmatmul.mubr.bf16.gmra.mrb[0].mxu0 %v4000
    %v4506 = vpop.f32.mrb[0].mxu0
    %v4507 = vadd.f32 0.0, %v4506
    %v4508 = vpop.f32.mrb[0].mxu0
    %v4509 = vpop.f32.mrb[0].mxu0
    %v4510 = vadd.f32 0.0, %v4509
    %v4511 = vpop.f32.mrb[0].mxu0
    %4512 = vdwg.mxu0
    %4513 = vmatprep.subr.bf16.mxu0 0
    %4514 = vmatpush1.bf16.msra.mxu0 %v4257
    %4515 = vmatprep.subr.bf16.mxu0 0
    %4516 = vmatpush1.bf16.msra.mxu0 %v4260
    %4517 = vmatprep.subr.bf16.mxu0 0
    %4518 = vmatpush1.bf16.msra.mxu0 %v4263
    %4519 = vmatprep.subr.bf16.mxu0 0
    %4520 = vmatpush1.bf16.msra.mxu0 %v4266
    %4521 = vmatprep.subr.bf16.mxu0 0
    %4522 = vmatpush1.bf16.msra.mxu0 0
    %4523 = vmatprep.subr.bf16.mxu0 0
    %4524 = vmatpush1.bf16.msra.mxu0 0
    %4525 = vmatprep.subr.bf16.mxu0 0
    %4526 = vmatpush1.bf16.msra.mxu0 0
    %4527 = vmatprep.subr.bf16.mxu0 0
    %4528 = vmatpush1.bf16.msra.mxu0 0
    %4529 = vmatprep.subr.bf16.mxu0 0
    %4530 = vmatpush1.bf16.msra.mxu0 0
    %4531 = vmatprep.subr.bf16.mxu0 0
    %4532 = vmatpush1.bf16.msra.mxu0 0
    %4533 = vmatprep.subr.bf16.mxu0 0
    %4534 = vmatpush1.bf16.msra.mxu0 0
    %4535 = vmatprep.subr.bf16.mxu0 0
    %4536 = vmatpush1.bf16.msra.mxu0 0
    %4537 = vmatprep.subr.bf16.mxu0 0
    %4538 = vmatpush1.bf16.msra.mxu0 0
    %4539 = vmatprep.subr.bf16.mxu0 0
    %4540 = vmatpush1.bf16.msra.mxu0 0
    %4541 = vmatprep.subr.bf16.mxu0 0
    %4542 = vmatpush1.bf16.msra.mxu0 0
    %4543 = vmatprep.subr.bf16.mxu0 0
    %4544 = vmatpush1.bf16.msra.mxu0 0
    %4545 = vmatprep.mubr.bf16.mxu0 0
    %4546 = vmatmul.mubr.bf16.gmra.mrb[0].mxu0 %v2439
    %v4547 = vpop.f32.mrb[0].mxu0
    %v4548 = vadd.f32 %v4491, %v4547
    %v4549 = vpop.f32.mrb[0].mxu0
    %v4550 = vpop.f32.mrb[0].mxu0
    %v4551 = vadd.f32 %v4494, %v4550
    %v4552 = vpop.f32.mrb[0].mxu0
    %4553 = vmatprep.mubr.bf16.mxu0 0
    %4554 = vmatmul.mubr.bf16.gmra.mrb[0].mxu0 %v2442
    %v4555 = vpop.f32.mrb[0].mxu0
    %v4556 = vadd.f32 %v4499, %v4555
    %v4557 = vpop.f32.mrb[0].mxu0
    %v4558 = vpop.f32.mrb[0].mxu0
    %v4559 = vadd.f32 %v4502, %v4558
    %v4560 = vpop.f32.mrb[0].mxu0
    %4561 = vmatprep.mubr.bf16.mxu0 0
    %4562 = vmatmul.mubr.bf16.gmra.mrb[0].mxu0 %v4328
    %v4563 = vpop.f32.mrb[0].mxu0
    %v4564 = vadd.f32 %v4507, %v4563
    %v4565 = vpop.f32.mrb[0].mxu0
    %v4566 = vpop.f32.mrb[0].mxu0
    %v4567 = vadd.f32 %v4510, %v4566
    %v4568 = vpop.f32.mrb[0].mxu0
    %4569 = vdwg.mxu0
    %v4570 = vadd.f32 %v3897, %v4428
    %v4571 = vadd.f32 %v3898, %v4430
    %v4572 = vadd.f32 %v3899, %v4548
    %v4573 = vadd.f32 %v3900, %v4432
    %v4574 = vadd.f32 %v3901, %v4434
    %v4575 = vadd.f32 %v3902, %v4551
    %v4576 = vadd.f32 %v3903, %v4438
    %v4577 = vadd.f32 %v3904, %v4440
    %v4578 = vadd.f32 %v3905, %v4556
    %v4579 = vadd.f32 %v3906, %v4442
    %v4580 = vadd.f32 %v3907, %v4444
    %v4581 = vadd.f32 %v3908, %v4559
    %v4582 = vadd.f32 %v3909, %v4448
    %v4583 = vadd.f32 %v3910, %v4450
    %v4584 = vadd.f32 %v3911, %v4564
    %v4585 = vadd.f32 %v3912, %v4452
    %v4586 = vadd.f32 %v3913, %v4454
    %v4587 = vadd.f32 %v3914, %v4567
    %s4588 = scalar_lea.vmem [#allocation4], 1920
    %v4589 = vld [vmem:[%s4588] sm:$0xff]
    %v4590 = vld [vmem:[%s4588 + $0x8] sm:$0xf]
    %v4591 = vld [vmem:[%s4588 + $0xc] sm:$0xff]
    %v4592 = vld [vmem:[%s4588 + $0x14] sm:$0xf]
    %v4593 = vld [vmem:[%s4588 + $0x18] sm:$0xff]
    %v4594 = vld [vmem:[%s4588 + $0x20] sm:$0xf]
    %v4595 = vld [vmem:[%s4588 + $0x24] sm:$0xff]
    %v4596 = vld [vmem:[%s4588 + $0x2c] sm:$0xf]
    %v4597 = vld [vmem:[%s4588 + $0x30] sm:$0xff]
    %v4598 = vld [vmem:[%s4588 + $0x38] sm:$0xf]
    %v4599 = vld [vmem:[%s4588 + $0x3c] sm:$0xff]
    %v4600 = vld [vmem:[%s4588 + $0x44] sm:$0xf]
    %v4601 = vld [vmem:[%s4588 + $0x48] sm:$0xff]
    %v4602 = vld [vmem:[%s4588 + $0x50] sm:$0xf]
    %v4603 = vld [vmem:[%s4588 + $0x54] sm:$0xff]
    %v4604 = vld [vmem:[%s4588 + $0x5c] sm:$0xf]
    %v4605 = vld [vmem:[%s4588 + $0x60] sm:$0xff]
    %v4606 = vld [vmem:[%s4588 + $0x68] sm:$0xf]
    %v4607 = vld [vmem:[%s4588 + $0x6c] sm:$0xff]
    %v4608 = vld [vmem:[%s4588 + $0x74] sm:$0xf]
    %v4609 = vld [vmem:[%s4588 + $0x78] sm:$0xff]
    %v4610 = vld [vmem:[%s4588 + $0x80] sm:$0xf]
    %v4611 = vld [vmem:[%s4588 + $0x84] sm:$0xff]
    %v4612 = vld [vmem:[%s4588 + $0x8c] sm:$0xf]
    %v4613 = vld [vmem:[%s4588 + $0x90] sm:$0xff]
    %v4614 = vld [vmem:[%s4588 + $0x98] sm:$0xf]
    %v4615 = vld [vmem:[%s4588 + $0x9c] sm:$0xff]
    %v4616 = vld [vmem:[%s4588 + $0xa4] sm:$0xf]
    %v4617 = vld [vmem:[%s4588 + $0xa8] sm:$0xff]
    %v4618 = vld [vmem:[%s4588 + $0xb0] sm:$0xf]
    %v4619 = vld [vmem:[%s4588 + $0xb4] sm:$0xff]
    %v4620 = vld [vmem:[%s4588 + $0xbc] sm:$0xf]
    %v4621 = vld [vmem:[%s4588 + $0xc0] sm:$0xff]
    %v4622 = vld [vmem:[%s4588 + $0xc8] sm:$0xf]
    %v4623 = vld [vmem:[%s4588 + $0xcc] sm:$0xff]
    %v4624 = vld [vmem:[%s4588 + $0xd4] sm:$0xf]
    %v4625 = vld [vmem:[%s4588 + $0xd8] sm:$0xff]
    %v4626 = vld [vmem:[%s4588 + $0xe0] sm:$0xf]
    %v4627 = vld [vmem:[%s4588 + $0xe4] sm:$0xff]
    %v4628 = vld [vmem:[%s4588 + $0xec] sm:$0xf]
    %v4629 = vld [vmem:[%s4588 + $0xf0] sm:$0xff]
    %v4630 = vld [vmem:[%s4588 + $0xf8] sm:$0xf]
    %v4631 = vld [vmem:[%s4588 + $0xfc] sm:$0xff]
    %v4632 = vld [vmem:[%s4588 + $0x104] sm:$0xf]
    %v4633 = vld [vmem:[%s4588 + $0x108] sm:$0xff]
    %v4634 = vld [vmem:[%s4588 + $0x110] sm:$0xf]
    %v4635 = vld [vmem:[%s4588 + $0x114] sm:$0xff]
    %v4636 = vld [vmem:[%s4588 + $0x11c] sm:$0xf]
    %v4637 = vld [vmem:[%s4588 + $0x120] sm:$0xff]
    %v4638 = vld [vmem:[%s4588 + $0x128] sm:$0xf]
    %v4639 = vld [vmem:[%s4588 + $0x12c] sm:$0xff]
    %v4640 = vld [vmem:[%s4588 + $0x134] sm:$0xf]
    %v4641 = vld [vmem:[%s4588 + $0x138] sm:$0xff]
    %v4642 = vld [vmem:[%s4588 + $0x140] sm:$0xf]
    %v4643 = vld [vmem:[%s4588 + $0x144] sm:$0xff]
    %v4644 = vld [vmem:[%s4588 + $0x14c] sm:$0xf]
    %v4645 = vld [vmem:[%s4588 + $0x150] sm:$0xff]
    %v4646 = vld [vmem:[%s4588 + $0x158] sm:$0xf]
    %v4647 = vld [vmem:[%s4588 + $0x15c] sm:$0xff]
    %v4648 = vld [vmem:[%s4588 + $0x164] sm:$0xf]
    %v4649 = vld [vmem:[%s4588 + $0x168] sm:$0xff]
    %v4650 = vld [vmem:[%s4588 + $0x170] sm:$0xf]
    %v4651 = vld [vmem:[%s4588 + $0x174] sm:$0xff]
    %v4652 = vld [vmem:[%s4588 + $0x17c] sm:$0xf]
    %v4653 = vld [vmem:[%s4588 + $0x180] sm:$0xff]
    %v4654 = vld [vmem:[%s4588 + $0x188] sm:$0xf]
    %v4655 = vld [vmem:[%s4588 + $0x18c] sm:$0xff]
    %v4656 = vld [vmem:[%s4588 + $0x194] sm:$0xf]
    %v4657 = vld [vmem:[%s4588 + $0x198] sm:$0xff]
    %v4658 = vld [vmem:[%s4588 + $0x1a0] sm:$0xf]
    %v4659 = vld [vmem:[%s4588 + $0x1a4] sm:$0xff]
    %v4660 = vld [vmem:[%s4588 + $0x1ac] sm:$0xf]
    %v4661 = vld [vmem:[%s4588 + $0x1b0] sm:$0xff]
    %v4662 = vld [vmem:[%s4588 + $0x1b8] sm:$0xf]
    %v4663 = vld [vmem:[%s4588 + $0x1bc] sm:$0xff]
    %v4664 = vld [vmem:[%s4588 + $0x1c4] sm:$0xf]
    %v4665 = vld [vmem:[%s4588 + $0x1c8] sm:$0xff]
    %v4666 = vld [vmem:[%s4588 + $0x1d0] sm:$0xf]
    %v4667 = vld [vmem:[%s4588 + $0x1d4] sm:$0xff]
    %v4668 = vld [vmem:[%s4588 + $0x1dc] sm:$0xf]
    %v4749 = vunpack.c.l.b16 %v4589
    %v4750 = vunpack.c.h.b16 %v4589
    %v4751 = vunpack.c.l.b16 %v4590
    %v4752 = vunpack.c.l.b16 %v4591
    %v4753 = vunpack.c.h.b16 %v4591
    %v4754 = vunpack.c.l.b16 %v4592
    %v4755 = vunpack.c.l.b16 %v4593
    %v4756 = vunpack.c.h.b16 %v4593
    %v4757 = vunpack.c.l.b16 %v4594
    %v4758 = vunpack.c.l.b16 %v4595
    %v4759 = vunpack.c.h.b16 %v4595
    %v4760 = vunpack.c.l.b16 %v4596
    %v4761 = vunpack.c.l.b16 %v4597
    %v4762 = vunpack.c.h.b16 %v4597
    %v4763 = vunpack.c.l.b16 %v4598
    %v4764 = vunpack.c.l.b16 %v4599
    %v4765 = vunpack.c.h.b16 %v4599
    %v4766 = vunpack.c.l.b16 %v4600
    %v4767 = vunpack.c.l.b16 %v4601
    %v4768 = vunpack.c.h.b16 %v4601
    %v4769 = vunpack.c.l.b16 %v4602
    %v4770 = vunpack.c.l.b16 %v4603
    %v4771 = vunpack.c.h.b16 %v4603
    %v4772 = vunpack.c.l.b16 %v4604
    %v4773 = vunpack.c.l.b16 %v4605
    %v4774 = vunpack.c.h.b16 %v4605
    %v4775 = vunpack.c.l.b16 %v4606
    %v4776 = vunpack.c.l.b16 %v4607
    %v4777 = vunpack.c.h.b16 %v4607
    %v4778 = vunpack.c.l.b16 %v4608
    %v4779 = vunpack.c.l.b16 %v4609
    %v4780 = vunpack.c.h.b16 %v4609
    %v4781 = vunpack.c.l.b16 %v4610
    %v4782 = vunpack.c.l.b16 %v4611
    %v4783 = vunpack.c.h.b16 %v4611
    %v4784 = vunpack.c.l.b16 %v4612
    %v4785 = vunpack.c.l.b16 %v4613
    %v4786 = vunpack.c.h.b16 %v4613
    %v4787 = vunpack.c.l.b16 %v4614
    %v4788 = vunpack.c.l.b16 %v4615
    %v4789 = vunpack.c.h.b16 %v4615
    %v4790 = vunpack.c.l.b16 %v4616
    %v4791 = vunpack.c.l.b16 %v4617
    %v4792 = vunpack.c.h.b16 %v4617
    %v4793 = vunpack.c.l.b16 %v4618
    %v4794 = vunpack.c.l.b16 %v4619
    %v4795 = vunpack.c.h.b16 %v4619
    %v4796 = vunpack.c.l.b16 %v4620
    %v4797 = vunpack.c.l.b16 %v4621
    %v4798 = vunpack.c.h.b16 %v4621
    %v4799 = vunpack.c.l.b16 %v4622
    %v4800 = vunpack.c.l.b16 %v4623
    %v4801 = vunpack.c.h.b16 %v4623
    %v4802 = vunpack.c.l.b16 %v4624
    %v4803 = vunpack.c.l.b16 %v4625
    %v4804 = vunpack.c.h.b16 %v4625
    %v4805 = vunpack.c.l.b16 %v4626
    %v4806 = vunpack.c.l.b16 %v4627
    %v4807 = vunpack.c.h.b16 %v4627
    %v4808 = vunpack.c.l.b16 %v4628
    %v4809 = vunpack.c.l.b16 %v4629
    %v4810 = vunpack.c.h.b16 %v4629
    %v4811 = vunpack.c.l.b16 %v4630
    %v4812 = vunpack.c.l.b16 %v4631
    %v4813 = vunpack.c.h.b16 %v4631
    %v4814 = vunpack.c.l.b16 %v4632
    %v4815 = vunpack.c.l.b16 %v4633
    %v4816 = vunpack.c.h.b16 %v4633
    %v4817 = vunpack.c.l.b16 %v4634
    %v4818 = vunpack.c.l.b16 %v4635
    %v4819 = vunpack.c.h.b16 %v4635
    %v4820 = vunpack.c.l.b16 %v4636
    %v4821 = vunpack.c.l.b16 %v4637
    %v4822 = vunpack.c.h.b16 %v4637
    %v4823 = vunpack.c.l.b16 %v4638
    %v4824 = vunpack.c.l.b16 %v4639
    %v4825 = vunpack.c.h.b16 %v4639
    %v4826 = vunpack.c.l.b16 %v4640
    %v4827 = vunpack.c.l.b16 %v4641
    %v4828 = vunpack.c.h.b16 %v4641
    %v4829 = vunpack.c.l.b16 %v4642
    %v4830 = vunpack.c.l.b16 %v4643
    %v4831 = vunpack.c.h.b16 %v4643
    %v4832 = vunpack.c.l.b16 %v4644
    %v4833 = vunpack.c.l.b16 %v4645
    %v4834 = vunpack.c.h.b16 %v4645
    %v4835 = vunpack.c.l.b16 %v4646
    %v4836 = vunpack.c.l.b16 %v4647
    %v4837 = vunpack.c.h.b16 %v4647
    %v4838 = vunpack.c.l.b16 %v4648
    %v4839 = vunpack.c.l.b16 %v4649
    %v4840 = vunpack.c.h.b16 %v4649
    %v4841 = vunpack.c.l.b16 %v4650
    %v4842 = vunpack.c.l.b16 %v4651
    %v4843 = vunpack.c.h.b16 %v4651
    %v4844 = vunpack.c.l.b16 %v4652
    %v4845 = vunpack.c.l.b16 %v4653
    %v4846 = vunpack.c.h.b16 %v4653
    %v4847 = vunpack.c.l.b16 %v4654
    %v4848 = vunpack.c.l.b16 %v4655
    %v4849 = vunpack.c.h.b16 %v4655
    %v4850 = vunpack.c.l.b16 %v4656
    %v4851 = vunpack.c.l.b16 %v4657
    %v4852 = vunpack.c.h.b16 %v4657
    %v4853 = vunpack.c.l.b16 %v4658
    %v4854 = vunpack.c.l.b16 %v4659
    %v4855 = vunpack.c.h.b16 %v4659
    %v4856 = vunpack.c.l.b16 %v4660
    %v4857 = vunpack.c.l.b16 %v4661
    %v4858 = vunpack.c.h.b16 %v4661
    %v4859 = vunpack.c.l.b16 %v4662
    %v4860 = vunpack.c.l.b16 %v4663
    %v4861 = vunpack.c.h.b16 %v4663
    %v4862 = vunpack.c.l.b16 %v4664
    %v4863 = vunpack.c.l.b16 %v4665
    %v4864 = vunpack.c.h.b16 %v4665
    %v4865 = vunpack.c.l.b16 %v4666
    %v4866 = vunpack.c.l.b16 %v4667
    %v4867 = vunpack.c.h.b16 %v4667
    %v4868 = vunpack.c.l.b16 %v4668
    %v4869 = vpack.c.b16 %v4752, %v4749
    %v4870 = vpack.c.b16 %v4753, %v4750
    %v4871 = vpack.c.b16 %v4754, %v4751
    %v4872 = vpack.c.b16 %v4758, %v4755
    %v4873 = vpack.c.b16 %v4759, %v4756
    %v4874 = vpack.c.b16 %v4760, %v4757
    %v4875 = vpack.c.b16 %v4764, %v4761
    %v4876 = vpack.c.b16 %v4765, %v4762
    %v4877 = vpack.c.b16 %v4766, %v4763
    %v4878 = vpack.c.b16 %v4770, %v4767
    %v4879 = vpack.c.b16 %v4771, %v4768
    %v4880 = vpack.c.b16 %v4772, %v4769
    %v4881 = vpack.c.b16 %v4776, %v4773
    %v4882 = vpack.c.b16 %v4777, %v4774
    %v4883 = vpack.c.b16 %v4778, %v4775
    %v4884 = vpack.c.b16 %v4782, %v4779
    %v4885 = vpack.c.b16 %v4783, %v4780
    %v4886 = vpack.c.b16 %v4784, %v4781
    %v4887 = vpack.c.b16 %v4788, %v4785
    %v4888 = vpack.c.b16 %v4789, %v4786
    %v4889 = vpack.c.b16 %v4790, %v4787
    %v4890 = vpack.c.b16 %v4794, %v4791
    %v4891 = vpack.c.b16 %v4795, %v4792
    %v4892 = vpack.c.b16 %v4796, %v4793
    %v4893 = vpack.c.b16 %v4800, %v4797
    %v4894 = vpack.c.b16 %v4801, %v4798
    %v4895 = vpack.c.b16 %v4802, %v4799
    %v4896 = vpack.c.b16 %v4806, %v4803
    %v4897 = vpack.c.b16 %v4807, %v4804
    %v4898 = vpack.c.b16 %v4808, %v4805
    %v4899 = vpack.c.b16 %v4812, %v4809
    %v4900 = vpack.c.b16 %v4813, %v4810
    %v4901 = vpack.c.b16 %v4814, %v4811
    %v4902 = vpack.c.b16 %v4818, %v4815
    %v4903 = vpack.c.b16 %v4819, %v4816
    %v4904 = vpack.c.b16 %v4820, %v4817
    %v4905 = vpack.c.b16 %v4824, %v4821
    %v4906 = vpack.c.b16 %v4825, %v4822
    %v4907 = vpack.c.b16 %v4826, %v4823
    %v4908 = vpack.c.b16 %v4830, %v4827
    %v4909 = vpack.c.b16 %v4831, %v4828
    %v4910 = vpack.c.b16 %v4832, %v4829
    %v4911 = vpack.c.b16 %v4836, %v4833
    %v4912 = vpack.c.b16 %v4837, %v4834
    %v4913 = vpack.c.b16 %v4838, %v4835
    %v4914 = vpack.c.b16 %v4842, %v4839
    %v4915 = vpack.c.b16 %v4843, %v4840
    %v4916 = vpack.c.b16 %v4844, %v4841
    %v4917 = vpack.c.b16 %v4848, %v4845
    %v4918 = vpack.c.b16 %v4849, %v4846
    %v4919 = vpack.c.b16 %v4850, %v4847
    %v4920 = vpack.c.b16 %v4854, %v4851
    %v4921 = vpack.c.b16 %v4855, %v4852
    %v4922 = vpack.c.b16 %v4856, %v4853
    %v4923 = vpack.c.b16 %v4860, %v4857
    %v4924 = vpack.c.b16 %v4861, %v4858
    %v4925 = vpack.c.b16 %v4862, %v4859
    %v4926 = vpack.c.b16 %v4866, %v4863
    %v4927 = vpack.c.b16 %v4867, %v4864
    %v4928 = vpack.c.b16 %v4868, %v4865
    %v4990 = vsel %vm2434, %v1912, 0
    %4992 = vmatprep.subr.bf16.mxu0 %v4870
    %4993 = vmatpush1.bf16.msra.mxu0 %v4869
    %4994 = vmatprep.subr.bf16.mxu0 %v4873
    %4995 = vmatpush1.bf16.msra.mxu0 %v4872
    %4996 = vmatprep.subr.bf16.mxu0 %v4876
    %4997 = vmatpush1.bf16.msra.mxu0 %v4875
    %4998 = vmatprep.subr.bf16.mxu0 %v4879
    %4999 = vmatpush1.bf16.msra.mxu0 %v4878
    %5000 = vmatprep.subr.bf16.mxu0 %v4882
    %5001 = vmatpush1.bf16.msra.mxu0 %v4881
    %5002 = vmatprep.subr.bf16.mxu0 %v4885
    %5003 = vmatpush1.bf16.msra.mxu0 %v4884
    %5004 = vmatprep.subr.bf16.mxu0 %v4888
    %5005 = vmatpush1.bf16.msra.mxu0 %v4887
    %5006 = vmatprep.subr.bf16.mxu0 %v4891
    %5007 = vmatpush1.bf16.msra.mxu0 %v4890
    %5008 = vmatprep.subr.bf16.mxu0 %v4894
    %5009 = vmatpush1.bf16.msra.mxu0 %v4893
    %5010 = vmatprep.subr.bf16.mxu0 %v4897
    %5011 = vmatpush1.bf16.msra.mxu0 %v4896
    %5012 = vmatprep.subr.bf16.mxu0 %v4900
    %5013 = vmatpush1.bf16.msra.mxu0 %v4899
    %5014 = vmatprep.subr.bf16.mxu0 %v4903
    %5015 = vmatpush1.bf16.msra.mxu0 %v4902
    %5016 = vmatprep.subr.bf16.mxu0 %v4906
    %5017 = vmatpush1.bf16.msra.mxu0 %v4905
    %5018 = vmatprep.subr.bf16.mxu0 %v4909
    %5019 = vmatpush1.bf16.msra.mxu0 %v4908
    %5020 = vmatprep.subr.bf16.mxu0 %v4912
    %5021 = vmatpush1.bf16.msra.mxu0 %v4911
    %5022 = vmatprep.subr.bf16.mxu0 %v4915
    %5023 = vmatpush1.bf16.msra.mxu0 %v4914
    %5024 = vmatprep.mubr.bf16.mxu0 %v1905
    %5025 = vmatmul.mubr.bf16.gmra.mrb[0].mxu0 %v1904
    %v5026 = vpop.f32.mrb[0].mxu0
    %v5027 = vadd.f32 0.0, %v5026
    %v5028 = vpop.f32.mrb[0].mxu0
    %v5029 = vadd.f32 0.0, %v5028
    %v5030 = vpop.f32.mrb[0].mxu0
    %v5031 = vadd.f32 0.0, %v5030
    %v5032 = vpop.f32.mrb[0].mxu0
    %v5033 = vadd.f32 0.0, %v5032
    %5034 = vmatprep.mubr.bf16.mxu0 %v1908
    %5035 = vmatmul.mubr.bf16.gmra.mrb[0].mxu0 %v1907
    %v5036 = vpop.f32.mrb[0].mxu0
    %v5037 = vadd.f32 0.0, %v5036
    %v5038 = vpop.f32.mrb[0].mxu0
    %v5039 = vadd.f32 0.0, %v5038
    %v5040 = vpop.f32.mrb[0].mxu0
    %v5041 = vadd.f32 0.0, %v5040
    %v5042 = vpop.f32.mrb[0].mxu0
    %v5043 = vadd.f32 0.0, %v5042
    %5044 = vmatprep.mubr.bf16.mxu0 %v1911
    %5045 = vmatmul.mubr.bf16.gmra.mrb[0].mxu0 %v1910
    %v5046 = vpop.f32.mrb[0].mxu0
    %v5047 = vadd.f32 0.0, %v5046
    %v5048 = vpop.f32.mrb[0].mxu0
    %v5049 = vadd.f32 0.0, %v5048
    %v5050 = vpop.f32.mrb[0].mxu0
    %v5051 = vadd.f32 0.0, %v5050
    %v5052 = vpop.f32.mrb[0].mxu0
    %v5053 = vadd.f32 0.0, %v5052
    %5054 = vdwg.mxu0
    %5055 = vmatprep.subr.bf16.mxu0 %v4918
    %5056 = vmatpush1.bf16.msra.mxu0 %v4917
    %5057 = vmatprep.subr.bf16.mxu0 %v4921
    %5058 = vmatpush1.bf16.msra.mxu0 %v4920
    %5059 = vmatprep.subr.bf16.mxu0 %v4924
    %5060 = vmatpush1.bf16.msra.mxu0 %v4923
    %5061 = vmatprep.subr.bf16.mxu0 %v4927
    %5062 = vmatpush1.bf16.msra.mxu0 %v4926
    %5063 = vmatprep.subr.bf16.mxu0 0
    %5064 = vmatpush1.bf16.msra.mxu0 0
    %5065 = vmatprep.subr.bf16.mxu0 0
    %5066 = vmatpush1.bf16.msra.mxu0 0
    %5067 = vmatprep.subr.bf16.mxu0 0
    %5068 = vmatpush1.bf16.msra.mxu0 0
    %5069 = vmatprep.subr.bf16.mxu0 0
    %5070 = vmatpush1.bf16.msra.mxu0 0
    %5071 = vmatprep.subr.bf16.mxu0 0
    %5072 = vmatpush1.bf16.msra.mxu0 0
    %5073 = vmatprep.subr.bf16.mxu0 0
    %5074 = vmatpush1.bf16.msra.mxu0 0
    %5075 = vmatprep.subr.bf16.mxu0 0
    %5076 = vmatpush1.bf16.msra.mxu0 0
    %5077 = vmatprep.subr.bf16.mxu0 0
    %5078 = vmatpush1.bf16.msra.mxu0 0
    %5079 = vmatprep.subr.bf16.mxu0 0
    %5080 = vmatpush1.bf16.msra.mxu0 0
    %5081 = vmatprep.subr.bf16.mxu0 0
    %5082 = vmatpush1.bf16.msra.mxu0 0
    %5083 = vmatprep.subr.bf16.mxu0 0
    %5084 = vmatpush1.bf16.msra.mxu0 0
    %5085 = vmatprep.subr.bf16.mxu0 0
    %5086 = vmatpush1.bf16.msra.mxu0 0
    %5087 = vmatprep.mubr.bf16.mxu0 0
    %5088 = vmatmul.mubr.bf16.gmra.mrb[0].mxu0 %v3011
    %v5089 = vpop.f32.mrb[0].mxu0
    %v5090 = vadd.f32 %v5027, %v5089
    %v5091 = vpop.f32.mrb[0].mxu0
    %v5092 = vadd.f32 %v5029, %v5091
    %v5093 = vpop.f32.mrb[0].mxu0
    %v5094 = vadd.f32 %v5031, %v5093
    %v5095 = vpop.f32.mrb[0].mxu0
    %v5096 = vadd.f32 %v5033, %v5095
    %5097 = vmatprep.mubr.bf16.mxu0 0
    %5098 = vmatmul.mubr.bf16.gmra.mrb[0].mxu0 %v3655
    %v5099 = vpop.f32.mrb[0].mxu0
    %v5100 = vadd.f32 %v5037, %v5099
    %v5101 = vpop.f32.mrb[0].mxu0
    %v5102 = vadd.f32 %v5039, %v5101
    %v5103 = vpop.f32.mrb[0].mxu0
    %v5104 = vadd.f32 %v5041, %v5103
    %v5105 = vpop.f32.mrb[0].mxu0
    %v5106 = vadd.f32 %v5043, %v5105
    %5107 = vmatprep.mubr.bf16.mxu0 0
    %5108 = vmatmul.mubr.bf16.gmra.mrb[0].mxu0 %v4990
    %v5109 = vpop.f32.mrb[0].mxu0
    %v5110 = vadd.f32 %v5047, %v5109
    %v5111 = vpop.f32.mrb[0].mxu0
    %v5112 = vadd.f32 %v5049, %v5111
    %v5113 = vpop.f32.mrb[0].mxu0
    %v5114 = vadd.f32 %v5051, %v5113
    %v5115 = vpop.f32.mrb[0].mxu0
    %v5116 = vadd.f32 %v5053, %v5115
    %5117 = vdwg.mxu0
    %5118 = vmatprep.subr.bf16.mxu0 0
    %5119 = vmatpush1.bf16.msra.mxu0 %v4871
    %5120 = vmatprep.subr.bf16.mxu0 0
    %5121 = vmatpush1.bf16.msra.mxu0 %v4874
    %5122 = vmatprep.subr.bf16.mxu0 0
    %5123 = vmatpush1.bf16.msra.mxu0 %v4877
    %5124 = vmatprep.subr.bf16.mxu0 0
    %5125 = vmatpush1.bf16.msra.mxu0 %v4880
    %5126 = vmatprep.subr.bf16.mxu0 0
    %5127 = vmatpush1.bf16.msra.mxu0 %v4883
    %5128 = vmatprep.subr.bf16.mxu0 0
    %5129 = vmatpush1.bf16.msra.mxu0 %v4886
    %5130 = vmatprep.subr.bf16.mxu0 0
    %5131 = vmatpush1.bf16.msra.mxu0 %v4889
    %5132 = vmatprep.subr.bf16.mxu0 0
    %5133 = vmatpush1.bf16.msra.mxu0 %v4892
    %5134 = vmatprep.subr.bf16.mxu0 0
    %5135 = vmatpush1.bf16.msra.mxu0 %v4895
    %5136 = vmatprep.subr.bf16.mxu0 0
    %5137 = vmatpush1.bf16.msra.mxu0 %v4898
    %5138 = vmatprep.subr.bf16.mxu0 0
    %5139 = vmatpush1.bf16.msra.mxu0 %v4901
    %5140 = vmatprep.subr.bf16.mxu0 0
    %5141 = vmatpush1.bf16.msra.mxu0 %v4904
    %5142 = vmatprep.subr.bf16.mxu0 0
    %5143 = vmatpush1.bf16.msra.mxu0 %v4907
    %5144 = vmatprep.subr.bf16.mxu0 0
    %5145 = vmatpush1.bf16.msra.mxu0 %v4910
    %5146 = vmatprep.subr.bf16.mxu0 0
    %5147 = vmatpush1.bf16.msra.mxu0 %v4913
    %5148 = vmatprep.subr.bf16.mxu0 0
    %5149 = vmatpush1.bf16.msra.mxu0 %v4916
    %5150 = vmatprep.mubr.bf16.mxu0 %v1905
    %5151 = vmatmul.mubr.bf16.gmra.mrb[0].mxu0 %v1904
    %v5152 = vpop.f32.mrb[0].mxu0
    %v5153 = vadd.f32 0.0, %v5152
    %v5154 = vpop.f32.mrb[0].mxu0
    %v5155 = vpop.f32.mrb[0].mxu0
    %v5156 = vadd.f32 0.0, %v5155
    %v5157 = vpop.f32.mrb[0].mxu0
    %5158 = vmatprep.mubr.bf16.mxu0 %v1908
    %5159 = vmatmul.mubr.bf16.gmra.mrb[0].mxu0 %v1907
    %v5160 = vpop.f32.mrb[0].mxu0
    %v5161 = vadd.f32 0.0, %v5160
    %v5162 = vpop.f32.mrb[0].mxu0
    %v5163 = vpop.f32.mrb[0].mxu0
    %v5164 = vadd.f32 0.0, %v5163
    %v5165 = vpop.f32.mrb[0].mxu0
    %5166 = vmatprep.mubr.bf16.mxu0 %v1911
    %5167 = vmatmul.mubr.bf16.gmra.mrb[0].mxu0 %v1910
    %v5168 = vpop.f32.mrb[0].mxu0
    %v5169 = vadd.f32 0.0, %v5168
    %v5170 = vpop.f32.mrb[0].mxu0
    %v5171 = vpop.f32.mrb[0].mxu0
    %v5172 = vadd.f32 0.0, %v5171
    %v5173 = vpop.f32.mrb[0].mxu0
    %5174 = vdwg.mxu0
    %5175 = vmatprep.subr.bf16.mxu0 0
    %5176 = vmatpush1.bf16.msra.mxu0 %v4919
    %5177 = vmatprep.subr.bf16.mxu0 0
    %5178 = vmatpush1.bf16.msra.mxu0 %v4922
    %5179 = vmatprep.subr.bf16.mxu0 0
    %5180 = vmatpush1.bf16.msra.mxu0 %v4925
    %5181 = vmatprep.subr.bf16.mxu0 0
    %5182 = vmatpush1.bf16.msra.mxu0 %v4928
    %5183 = vmatprep.subr.bf16.mxu0 0
    %5184 = vmatpush1.bf16.msra.mxu0 0
    %5185 = vmatprep.subr.bf16.mxu0 0
    %5186 = vmatpush1.bf16.msra.mxu0 0
    %5187 = vmatprep.subr.bf16.mxu0 0
    %5188 = vmatpush1.bf16.msra.mxu0 0
    %5189 = vmatprep.subr.bf16.mxu0 0
    %5190 = vmatpush1.bf16.msra.mxu0 0
    %5191 = vmatprep.subr.bf16.mxu0 0
    %5192 = vmatpush1.bf16.msra.mxu0 0
    %5193 = vmatprep.subr.bf16.mxu0 0
    %5194 = vmatpush1.bf16.msra.mxu0 0
    %5195 = vmatprep.subr.bf16.mxu0 0
    %5196 = vmatpush1.bf16.msra.mxu0 0
    %5197 = vmatprep.subr.bf16.mxu0 0
    %5198 = vmatpush1.bf16.msra.mxu0 0
    %5199 = vmatprep.subr.bf16.mxu0 0
    %5200 = vmatpush1.bf16.msra.mxu0 0
    %5201 = vmatprep.subr.bf16.mxu0 0
    %5202 = vmatpush1.bf16.msra.mxu0 0
    %5203 = vmatprep.subr.bf16.mxu0 0
    %5204 = vmatpush1.bf16.msra.mxu0 0
    %5205 = vmatprep.subr.bf16.mxu0 0
    %5206 = vmatpush1.bf16.msra.mxu0 0
    %5207 = vmatprep.mubr.bf16.mxu0 0
    %5208 = vmatmul.mubr.bf16.gmra.mrb[0].mxu0 %v3011
    %v5209 = vpop.f32.mrb[0].mxu0
    %v5210 = vadd.f32 %v5153, %v5209
    %v5211 = vpop.f32.mrb[0].mxu0
    %v5212 = vpop.f32.mrb[0].mxu0
    %v5213 = vadd.f32 %v5156, %v5212
    %v5214 = vpop.f32.mrb[0].mxu0
    %5215 = vmatprep.mubr.bf16.mxu0 0
    %5216 = vmatmul.mubr.bf16.gmra.mrb[0].mxu0 %v3655
    %v5217 = vpop.f32.mrb[0].mxu0
    %v5218 = vadd.f32 %v5161, %v5217
    %v5219 = vpop.f32.mrb[0].mxu0
    %v5220 = vpop.f32.mrb[0].mxu0
    %v5221 = vadd.f32 %v5164, %v5220
    %v5222 = vpop.f32.mrb[0].mxu0
    %5223 = vmatprep.mubr.bf16.mxu0 0
    %5224 = vmatmul.mubr.bf16.gmra.mrb[0].mxu0 %v4990
    %v5225 = vpop.f32.mrb[0].mxu0
    %v5226 = vadd.f32 %v5169, %v5225
    %v5227 = vpop.f32.mrb[0].mxu0
    %v5228 = vpop.f32.mrb[0].mxu0
    %v5229 = vadd.f32 %v5172, %v5228
    %v5230 = vpop.f32.mrb[0].mxu0
    %5231 = vdwg.mxu0
    %v5232 = vadd.f32 %v4570, %v5090
    %v5233 = vadd.f32 %v4571, %v5092
    %v5234 = vadd.f32 %v4572, %v5210
    %v5235 = vadd.f32 %v4573, %v5094
    %v5236 = vadd.f32 %v4574, %v5096
    %v5237 = vadd.f32 %v4575, %v5213
    %v5238 = vadd.f32 %v4576, %v5100
    %v5239 = vadd.f32 %v4577, %v5102
    %v5240 = vadd.f32 %v4578, %v5218
    %v5241 = vadd.f32 %v4579, %v5104
    %v5242 = vadd.f32 %v4580, %v5106
    %v5243 = vadd.f32 %v4581, %v5221
    %v5244 = vadd.f32 %v4582, %v5110
    %v5245 = vadd.f32 %v4583, %v5112
    %v5246 = vadd.f32 %v4584, %v5226
    %v5247 = vadd.f32 %v4585, %v5114
    %v5248 = vadd.f32 %v4586, %v5116
    %v5249 = vadd.f32 %v4587, %v5229
    %v5250 = vld [vmem:[#allocation6] sm:$0x7]
    %v5252 = vlaneseq
    %v5253 = vshrl.u32 %v5252, 7
    %v5254 = vsub.s32 0, %v5253
    %v5255 = vrot.slane %v5250, %v5254
    %v5256 = vlaneseq
    %v5257 = vshrl.u32 %v5256, 7
    %v5258 = vsub.s32 1, %v5257
    %v5259 = vrot.slane %v5250, %v5258
    %v5260 = vlaneseq
    %v5261 = vshrl.u32 %v5260, 7
    %v5262 = vsub.s32 2, %v5261
    %v5263 = vrot.slane %v5250, %v5262
    %v5267 = vadd.f32 %v5232, %v5255
    %v5268 = vadd.f32 %v5233, %v5259
    %v5269 = vadd.f32 %v5234, %v5263
    %v5270 = vadd.f32 %v5235, %v5255
    %v5271 = vadd.f32 %v5236, %v5259
    %v5272 = vadd.f32 %v5237, %v5263
    %v5273 = vadd.f32 %v5238, %v5255
    %v5274 = vadd.f32 %v5239, %v5259
    %v5275 = vadd.f32 %v5240, %v5263
    %v5276 = vadd.f32 %v5241, %v5255
    %v5277 = vadd.f32 %v5242, %v5259
    %v5278 = vadd.f32 %v5243, %v5263
    %v5279 = vadd.f32 %v5244, %v5255
    %v5280 = vadd.f32 %v5245, %v5259
    %v5281 = vadd.f32 %v5246, %v5263
    %v5282 = vadd.f32 %v5247, %v5255
    %v5283 = vadd.f32 %v5248, %v5259
    %v5284 = vadd.f32 %v5249, %v5263
    %vm5285 = vcmp.ge.f32.partialorder %v5267, 0.0
    %vm5286 = vcmp.ge.f32.partialorder %v5268, 0.0
    %vm5287 = vcmp.ge.f32.partialorder %v5269, 0.0
    %vm5288 = vcmp.ge.f32.partialorder %v5270, 0.0
    %vm5289 = vcmp.ge.f32.partialorder %v5271, 0.0
    %vm5290 = vcmp.ge.f32.partialorder %v5272, 0.0
    %vm5291 = vcmp.ge.f32.partialorder %v5273, 0.0
    %vm5292 = vcmp.ge.f32.partialorder %v5274, 0.0
    %vm5293 = vcmp.ge.f32.partialorder %v5275, 0.0
    %vm5294 = vcmp.ge.f32.partialorder %v5276, 0.0
    %vm5295 = vcmp.ge.f32.partialorder %v5277, 0.0
    %vm5296 = vcmp.ge.f32.partialorder %v5278, 0.0
    %vm5297 = vcmp.ge.f32.partialorder %v5279, 0.0
    %vm5298 = vcmp.ge.f32.partialorder %v5280, 0.0
    %vm5299 = vcmp.ge.f32.partialorder %v5281, 0.0
    %vm5300 = vcmp.ge.f32.partialorder %v5282, 0.0
    %vm5301 = vcmp.ge.f32.partialorder %v5283, 0.0
    %vm5302 = vcmp.ge.f32.partialorder %v5284, 0.0
    %v5303 = vmul.f32 %v5267, 0.01
    %v5304 = vmul.f32 %v5268, 0.01
    %v5305 = vmul.f32 %v5269, 0.01
    %v5306 = vmul.f32 %v5270, 0.01
    %v5307 = vmul.f32 %v5271, 0.01
    %v5308 = vmul.f32 %v5272, 0.01
    %v5309 = vmul.f32 %v5273, 0.01
    %v5310 = vmul.f32 %v5274, 0.01
    %v5311 = vmul.f32 %v5275, 0.01
    %v5312 = vmul.f32 %v5276, 0.01
    %v5313 = vmul.f32 %v5277, 0.01
    %v5314 = vmul.f32 %v5278, 0.01
    %v5315 = vmul.f32 %v5279, 0.01
    %v5316 = vmul.f32 %v5280, 0.01
    %v5317 = vmul.f32 %v5281, 0.01
    %v5318 = vmul.f32 %v5282, 0.01
    %v5319 = vmul.f32 %v5283, 0.01
    %v5320 = vmul.f32 %v5284, 0.01
    %v5321 = vsel %vm5285, %v5267, %v5303
    %v5322 = vsel %vm5286, %v5268, %v5304
    %v5323 = vsel %vm5287, %v5269, %v5305
    %v5324 = vsel %vm5288, %v5270, %v5306
    %v5325 = vsel %vm5289, %v5271, %v5307
    %v5326 = vsel %vm5290, %v5272, %v5308
    %v5327 = vsel %vm5291, %v5273, %v5309
    %v5328 = vsel %vm5292, %v5274, %v5310
    %v5329 = vsel %vm5293, %v5275, %v5311
    %v5330 = vsel %vm5294, %v5276, %v5312
    %v5331 = vsel %vm5295, %v5277, %v5313
    %v5332 = vsel %vm5296, %v5278, %v5314
    %v5333 = vsel %vm5297, %v5279, %v5315
    %v5334 = vsel %vm5298, %v5280, %v5316
    %v5335 = vsel %vm5299, %v5281, %v5317
    %v5336 = vsel %vm5300, %v5282, %v5318
    %v5337 = vsel %vm5301, %v5283, %v5319
    %v5338 = vsel %vm5302, %v5284, %v5320
    %v5339 = vpack.c.bf16 %v5324, %v5321
    %v5340 = vpack.c.bf16 %v5325, %v5322
    %v5341 = vpack.c.bf16 %v5326, %v5323
    %v5342 = vpack.c.bf16 %v5330, %v5327
    %v5343 = vpack.c.bf16 %v5331, %v5328
    %v5344 = vpack.c.bf16 %v5332, %v5329
    %v5345 = vpack.c.bf16 %v5336, %v5333
    %v5346 = vpack.c.bf16 %v5337, %v5334
    %v5347 = vpack.c.bf16 %v5338, %v5335
    %v5348 = vld [vmem:[%s5] sm:$0xf]
    %v5349 = vld [vmem:[%s5 + $0x4] sm:$0xf]
    %v5350 = vld [vmem:[%s5 + $0x8] sm:$0xf]
    %v5351 = vld [vmem:[%s5 + $0xc] sm:$0xf]
    %v5352 = vld [vmem:[%s5 + $0x10] sm:$0xf]
    %v5353 = vld [vmem:[%s5 + $0x14] sm:$0xf]
    %v5354 = vld [vmem:[%s5 + $0x18] sm:$0xf]
    %v5355 = vld [vmem:[%s5 + $0x1c] sm:$0xf]
    %v5356 = vld [vmem:[%s5 + $0x20] sm:$0xf]
    %v5357 = vld [vmem:[%s5 + $0x24] sm:$0xf]
    %v5358 = vld [vmem:[%s5 + $0x28] sm:$0xf]
    %v5359 = vld [vmem:[%s5 + $0x2c] sm:$0xf]
    %v5360 = vld [vmem:[%s5 + $0x30] sm:$0xf]
    %v5361 = vld [vmem:[%s5 + $0x34] sm:$0xf]
    %v5362 = vld [vmem:[%s5 + $0x38] sm:$0xf]
    %v5363 = vld [vmem:[%s5 + $0x3c] sm:$0xf]
    %v5364 = vld [vmem:[%s5 + $0x40] sm:$0xf]
    %v5365 = vld [vmem:[%s5 + $0x44] sm:$0xf]
    %v5366 = vld [vmem:[%s5 + $0x48] sm:$0xf]
    %v5367 = vld [vmem:[%s5 + $0x4c] sm:$0xf]
    %v5368 = vld [vmem:[%s5 + $0x50] sm:$0xf]
    %v5369 = vld [vmem:[%s5 + $0x54] sm:$0xf]
    %v5370 = vld [vmem:[%s5 + $0x58] sm:$0xf]
    %v5371 = vld [vmem:[%s5 + $0x5c] sm:$0xf]
    %v5372 = vld [vmem:[%s5 + $0x60] sm:$0xf]
    %v5373 = vld [vmem:[%s5 + $0x64] sm:$0xf]
    %v5374 = vld [vmem:[%s5 + $0x68] sm:$0xf]
    %v5375 = vld [vmem:[%s5 + $0x6c] sm:$0xf]
    %v5376 = vld [vmem:[%s5 + $0x70] sm:$0xf]
    %v5377 = vld [vmem:[%s5 + $0x74] sm:$0xf]
    %v5378 = vld [vmem:[%s5 + $0x78] sm:$0xf]
    %v5379 = vld [vmem:[%s5 + $0x7c] sm:$0xf]
    %v5380 = vld [vmem:[%s5 + $0x80] sm:$0xf]
    %v5381 = vld [vmem:[%s5 + $0x84] sm:$0xf]
    %v5382 = vld [vmem:[%s5 + $0x88] sm:$0xf]
    %v5383 = vld [vmem:[%s5 + $0x8c] sm:$0xf]
    %v5384 = vld [vmem:[%s5 + $0x90] sm:$0xf]
    %v5385 = vld [vmem:[%s5 + $0x94] sm:$0xf]
    %v5386 = vld [vmem:[%s5 + $0x98] sm:$0xf]
    %v5387 = vld [vmem:[%s5 + $0x9c] sm:$0xf]
    %v5388 = vld [vmem:[%s5 + $0xa0] sm:$0xf]
    %v5389 = vld [vmem:[%s5 + $0xa4] sm:$0xf]
    %v5390 = vld [vmem:[%s5 + $0xa8] sm:$0xf]
    %v5391 = vld [vmem:[%s5 + $0xac] sm:$0xf]
    %v5392 = vld [vmem:[%s5 + $0xb0] sm:$0xf]
    %v5393 = vld [vmem:[%s5 + $0xb4] sm:$0xf]
    %v5394 = vld [vmem:[%s5 + $0xb8] sm:$0xf]
    %v5395 = vld [vmem:[%s5 + $0xbc] sm:$0xf]
    %s5396 = scalar_lea.vmem %s5, 192
    %v5397 = vld [vmem:[%s5396] sm:$0xf]
    %v5398 = vld [vmem:[%s5396 + $0x4] sm:$0xf]
    %v5399 = vld [vmem:[%s5396 + $0x8] sm:$0xf]
    %v5400 = vld [vmem:[%s5396 + $0xc] sm:$0xf]
    %v5401 = vld [vmem:[%s5396 + $0x10] sm:$0xf]
    %v5402 = vld [vmem:[%s5396 + $0x14] sm:$0xf]
    %v5403 = vld [vmem:[%s5396 + $0x18] sm:$0xf]
    %v5404 = vld [vmem:[%s5396 + $0x1c] sm:$0xf]
    %v5405 = vld [vmem:[%s5396 + $0x20] sm:$0xf]
    %v5406 = vld [vmem:[%s5396 + $0x24] sm:$0xf]
    %v5407 = vld [vmem:[%s5396 + $0x28] sm:$0xf]
    %v5408 = vld [vmem:[%s5396 + $0x2c] sm:$0xf]
    %v5409 = vld [vmem:[%s5396 + $0x30] sm:$0xf]
    %v5410 = vld [vmem:[%s5396 + $0x34] sm:$0xf]
    %v5411 = vld [vmem:[%s5396 + $0x38] sm:$0xf]
    %v5412 = vld [vmem:[%s5396 + $0x3c] sm:$0xf]
    %v5413 = vld [vmem:[%s5396 + $0x40] sm:$0xf]
    %v5414 = vld [vmem:[%s5396 + $0x44] sm:$0xf]
    %v5415 = vld [vmem:[%s5396 + $0x48] sm:$0xf]
    %v5416 = vld [vmem:[%s5396 + $0x4c] sm:$0xf]
    %v5417 = vld [vmem:[%s5396 + $0x50] sm:$0xf]
    %v5418 = vld [vmem:[%s5396 + $0x54] sm:$0xf]
    %v5419 = vld [vmem:[%s5396 + $0x58] sm:$0xf]
    %v5420 = vld [vmem:[%s5396 + $0x5c] sm:$0xf]
    %v5421 = vld [vmem:[%s5396 + $0x60] sm:$0xf]
    %v5422 = vld [vmem:[%s5396 + $0x64] sm:$0xf]
    %v5423 = vld [vmem:[%s5396 + $0x68] sm:$0xf]
    %v5424 = vld [vmem:[%s5396 + $0x6c] sm:$0xf]
    %v5425 = vld [vmem:[%s5396 + $0x70] sm:$0xf]
    %v5426 = vld [vmem:[%s5396 + $0x74] sm:$0xf]
    %v5427 = vld [vmem:[%s5396 + $0x78] sm:$0xf]
    %v5428 = vld [vmem:[%s5396 + $0x7c] sm:$0xf]
    %v5429 = vld [vmem:[%s5396 + $0x80] sm:$0xf]
    %v5430 = vld [vmem:[%s5396 + $0x84] sm:$0xf]
    %v5431 = vld [vmem:[%s5396 + $0x88] sm:$0xf]
    %v5432 = vld [vmem:[%s5396 + $0x8c] sm:$0xf]
    %v5433 = vld [vmem:[%s5396 + $0x90] sm:$0xf]
    %v5434 = vld [vmem:[%s5396 + $0x94] sm:$0xf]
    %v5435 = vld [vmem:[%s5396 + $0x98] sm:$0xf]
    %v5436 = vld [vmem:[%s5396 + $0x9c] sm:$0xf]
    %v5437 = vld [vmem:[%s5396 + $0xa0] sm:$0xf]
    %v5438 = vld [vmem:[%s5396 + $0xa4] sm:$0xf]
    %v5439 = vld [vmem:[%s5396 + $0xa8] sm:$0xf]
    %v5440 = vld [vmem:[%s5396 + $0xac] sm:$0xf]
    %v5441 = vld [vmem:[%s5396 + $0xb0] sm:$0xf]
    %v5442 = vld [vmem:[%s5396 + $0xb4] sm:$0xf]
    %v5443 = vld [vmem:[%s5396 + $0xb8] sm:$0xf]
    %v5444 = vld [vmem:[%s5396 + $0xbc] sm:$0xf]
    %v5454 = vrot.slane %v5339, 4
    %v5455 = vrot.slane %v5342, 4
    %v5456 = vsel %vm2086, %v5454, %v5455
    %v5457 = vrot.slane %v5340, 4
    %v5458 = vrot.slane %v5343, 4
    %v5459 = vsel %vm2086, %v5457, %v5458
    %v5460 = vrot.slane %v5341, 4
    %v5461 = vrot.slane %v5344, 4
    %v5462 = vsel %vm2086, %v5460, %v5461
    %v5463 = vrot.slane %v5345, 4
    %v5464 = vsel %vm2086, %v5455, %v5463
    %v5465 = vrot.slane %v5346, 4
    %v5466 = vsel %vm2086, %v5458, %v5465
    %v5467 = vrot.slane %v5347, 4
    %v5468 = vsel %vm2086, %v5461, %v5467
    %v5523 = vunpack.c.l.b16 %v5397
    %v5524 = vunpack.c.l.b16 %v5398
    %v5525 = vunpack.c.l.b16 %v5399
    %v5526 = vunpack.c.l.b16 %v5400
    %v5527 = vunpack.c.l.b16 %v5401
    %v5528 = vunpack.c.l.b16 %v5402
    %v5529 = vunpack.c.l.b16 %v5403
    %v5530 = vunpack.c.l.b16 %v5404
    %v5531 = vunpack.c.l.b16 %v5405
    %v5532 = vunpack.c.l.b16 %v5406
    %v5533 = vunpack.c.l.b16 %v5407
    %v5534 = vunpack.c.l.b16 %v5408
    %v5535 = vunpack.c.l.b16 %v5409
    %v5536 = vunpack.c.l.b16 %v5410
    %v5537 = vunpack.c.l.b16 %v5411
    %v5538 = vunpack.c.l.b16 %v5412
    %v5539 = vunpack.c.l.b16 %v5413
    %v5540 = vunpack.c.l.b16 %v5414
    %v5541 = vunpack.c.l.b16 %v5415
    %v5542 = vunpack.c.l.b16 %v5416
    %v5543 = vunpack.c.l.b16 %v5417
    %v5544 = vunpack.c.l.b16 %v5418
    %v5545 = vunpack.c.l.b16 %v5419
    %v5546 = vunpack.c.l.b16 %v5420
    %v5547 = vunpack.c.l.b16 %v5421
    %v5548 = vunpack.c.l.b16 %v5422
    %v5549 = vunpack.c.l.b16 %v5423
    %v5550 = vunpack.c.l.b16 %v5424
    %v5551 = vunpack.c.l.b16 %v5425
    %v5552 = vunpack.c.l.b16 %v5426
    %v5553 = vunpack.c.l.b16 %v5427
    %v5554 = vunpack.c.l.b16 %v5428
    %v5555 = vunpack.c.l.b16 %v5429
    %v5556 = vunpack.c.l.b16 %v5430
    %v5557 = vunpack.c.l.b16 %v5431
    %v5558 = vunpack.c.l.b16 %v5432
    %v5559 = vunpack.c.l.b16 %v5433
    %v5560 = vunpack.c.l.b16 %v5434
    %v5561 = vunpack.c.l.b16 %v5435
    %v5562 = vunpack.c.l.b16 %v5436
    %v5563 = vunpack.c.l.b16 %v5437
    %v5564 = vunpack.c.l.b16 %v5438
    %v5565 = vunpack.c.l.b16 %v5439
    %v5566 = vunpack.c.l.b16 %v5440
    %v5567 = vunpack.c.l.b16 %v5441
    %v5568 = vunpack.c.l.b16 %v5442
    %v5569 = vunpack.c.l.b16 %v5443
    %v5570 = vunpack.c.l.b16 %v5444
    %v5571 = vpack.c.b16 %v5524, %v5523
    %v5572 = vpack.c.b16 %v5526, %v5525
    %v5573 = vpack.c.b16 %v5528, %v5527
    %v5574 = vpack.c.b16 %v5530, %v5529
    %v5575 = vpack.c.b16 %v5532, %v5531
    %v5576 = vpack.c.b16 %v5534, %v5533
    %v5577 = vpack.c.b16 %v5536, %v5535
    %v5578 = vpack.c.b16 %v5538, %v5537
    %v5579 = vpack.c.b16 %v5540, %v5539
    %v5580 = vpack.c.b16 %v5542, %v5541
    %v5581 = vpack.c.b16 %v5544, %v5543
    %v5582 = vpack.c.b16 %v5546, %v5545
    %v5583 = vpack.c.b16 %v5548, %v5547
    %v5584 = vpack.c.b16 %v5550, %v5549
    %v5585 = vpack.c.b16 %v5552, %v5551
    %v5586 = vpack.c.b16 %v5554, %v5553
    %v5587 = vpack.c.b16 %v5556, %v5555
    %v5588 = vpack.c.b16 %v5558, %v5557
    %v5589 = vpack.c.b16 %v5560, %v5559
    %v5590 = vpack.c.b16 %v5562, %v5561
    %v5591 = vpack.c.b16 %v5564, %v5563
    %v5592 = vpack.c.b16 %v5566, %v5565
    %v5593 = vpack.c.b16 %v5568, %v5567
    %v5594 = vpack.c.b16 %v5570, %v5569
    %5619 = vmatprep.subr.bf16.mxu0 0
    %5620 = vmatpush1.bf16.msra.mxu0 %v5571
    %5621 = vmatprep.subr.bf16.mxu0 0
    %5622 = vmatpush1.bf16.msra.mxu0 %v5572
    %5623 = vmatprep.subr.bf16.mxu0 0
    %5624 = vmatpush1.bf16.msra.mxu0 %v5573
    %5625 = vmatprep.subr.bf16.mxu0 0
    %5626 = vmatpush1.bf16.msra.mxu0 %v5574
    %5627 = vmatprep.subr.bf16.mxu0 0
    %5628 = vmatpush1.bf16.msra.mxu0 %v5575
    %5629 = vmatprep.subr.bf16.mxu0 0
    %5630 = vmatpush1.bf16.msra.mxu0 %v5576
    %5631 = vmatprep.subr.bf16.mxu0 0
    %5632 = vmatpush1.bf16.msra.mxu0 %v5577
    %5633 = vmatprep.subr.bf16.mxu0 0
    %5634 = vmatpush1.bf16.msra.mxu0 %v5578
    %5635 = vmatprep.subr.bf16.mxu0 0
    %5636 = vmatpush1.bf16.msra.mxu0 %v5579
    %5637 = vmatprep.subr.bf16.mxu0 0
    %5638 = vmatpush1.bf16.msra.mxu0 %v5580
    %5639 = vmatprep.subr.bf16.mxu0 0
    %5640 = vmatpush1.bf16.msra.mxu0 %v5581
    %5641 = vmatprep.subr.bf16.mxu0 0
    %5642 = vmatpush1.bf16.msra.mxu0 %v5582
    %5643 = vmatprep.subr.bf16.mxu0 0
    %5644 = vmatpush1.bf16.msra.mxu0 %v5583
    %5645 = vmatprep.subr.bf16.mxu0 0
    %5646 = vmatpush1.bf16.msra.mxu0 %v5584
    %5647 = vmatprep.subr.bf16.mxu0 0
    %5648 = vmatpush1.bf16.msra.mxu0 %v5585
    %5649 = vmatprep.subr.bf16.mxu0 0
    %5650 = vmatpush1.bf16.msra.mxu0 %v5586
    %5651 = vmatprep.mubr.bf16.mxu0 %v5459
    %5652 = vmatmul.mubr.bf16.gmra.mrb[0].mxu0 %v5456
    %v5653 = vpop.f32.mrb[0].mxu0
    %v5654 = vadd.f32 0.0, %v5653
    %v5655 = vpop.f32.mrb[0].mxu0
    %v5656 = vpop.f32.mrb[0].mxu0
    %v5657 = vadd.f32 0.0, %v5656
    %v5658 = vpop.f32.mrb[0].mxu0
    %5659 = vmatprep.mubr.bf16.mxu0 %v5466
    %5660 = vmatmul.mubr.bf16.gmra.mrb[0].mxu0 %v5464
    %v5661 = vpop.f32.mrb[0].mxu0
    %v5662 = vadd.f32 0.0, %v5661
    %v5663 = vpop.f32.mrb[0].mxu0
    %v5664 = vpop.f32.mrb[0].mxu0
    %v5665 = vadd.f32 0.0, %v5664
    %v5666 = vpop.f32.mrb[0].mxu0
    %5667 = vdwg.mxu0
    %5668 = vmatprep.subr.bf16.mxu0 0
    %5669 = vmatpush1.bf16.msra.mxu0 %v5587
    %5670 = vmatprep.subr.bf16.mxu0 0
    %5671 = vmatpush1.bf16.msra.mxu0 %v5588
    %5672 = vmatprep.subr.bf16.mxu0 0
    %5673 = vmatpush1.bf16.msra.mxu0 %v5589
    %5674 = vmatprep.subr.bf16.mxu0 0
    %5675 = vmatpush1.bf16.msra.mxu0 %v5590
    %5676 = vmatprep.subr.bf16.mxu0 0
    %5677 = vmatpush1.bf16.msra.mxu0 %v5591
    %5678 = vmatprep.subr.bf16.mxu0 0
    %5679 = vmatpush1.bf16.msra.mxu0 %v5592
    %5680 = vmatprep.subr.bf16.mxu0 0
    %5681 = vmatpush1.bf16.msra.mxu0 %v5593
    %5682 = vmatprep.subr.bf16.mxu0 0
    %5683 = vmatpush1.bf16.msra.mxu0 %v5594
    %5684 = vmatprep.subr.bf16.mxu0 0
    %5685 = vmatpush1.bf16.msra.mxu0 0
    %5686 = vmatprep.subr.bf16.mxu0 0
    %5687 = vmatpush1.bf16.msra.mxu0 0
    %5688 = vmatprep.subr.bf16.mxu0 0
    %5689 = vmatpush1.bf16.msra.mxu0 0
    %5690 = vmatprep.subr.bf16.mxu0 0
    %5691 = vmatpush1.bf16.msra.mxu0 0
    %5692 = vmatprep.subr.bf16.mxu0 0
    %5693 = vmatpush1.bf16.msra.mxu0 0
    %5694 = vmatprep.subr.bf16.mxu0 0
    %5695 = vmatpush1.bf16.msra.mxu0 0
    %5696 = vmatprep.subr.bf16.mxu0 0
    %5697 = vmatpush1.bf16.msra.mxu0 0
    %5698 = vmatprep.subr.bf16.mxu0 0
    %5699 = vmatpush1.bf16.msra.mxu0 0
    %5700 = vmatprep.mubr.bf16.mxu0 0
    %5701 = vmatmul.mubr.bf16.gmra.mrb[0].mxu0 %v5462
    %v5702 = vpop.f32.mrb[0].mxu0
    %v5703 = vadd.f32 %v5654, %v5702
    %v5704 = vpop.f32.mrb[0].mxu0
    %v5705 = vpop.f32.mrb[0].mxu0
    %v5706 = vadd.f32 %v5657, %v5705
    %v5707 = vpop.f32.mrb[0].mxu0
    %5708 = vmatprep.mubr.bf16.mxu0 0
    %5709 = vmatmul.mubr.bf16.gmra.mrb[0].mxu0 %v5468
    %v5710 = vpop.f32.mrb[0].mxu0
    %v5711 = vadd.f32 %v5662, %v5710
    %v5712 = vpop.f32.mrb[0].mxu0
    %v5713 = vpop.f32.mrb[0].mxu0
    %v5714 = vadd.f32 %v5665, %v5713
    %v5715 = vpop.f32.mrb[0].mxu0
    %5716 = vdwg.mxu0
    %v5765 = vunpack.c.l.b16 %v5348
    %v5766 = vunpack.c.l.b16 %v5349
    %v5767 = vunpack.c.l.b16 %v5350
    %v5768 = vunpack.c.l.b16 %v5351
    %v5769 = vunpack.c.l.b16 %v5352
    %v5770 = vunpack.c.l.b16 %v5353
    %v5771 = vunpack.c.l.b16 %v5354
    %v5772 = vunpack.c.l.b16 %v5355
    %v5773 = vunpack.c.l.b16 %v5356
    %v5774 = vunpack.c.l.b16 %v5357
    %v5775 = vunpack.c.l.b16 %v5358
    %v5776 = vunpack.c.l.b16 %v5359
    %v5777 = vunpack.c.l.b16 %v5360
    %v5778 = vunpack.c.l.b16 %v5361
    %v5779 = vunpack.c.l.b16 %v5362
    %v5780 = vunpack.c.l.b16 %v5363
    %v5781 = vunpack.c.l.b16 %v5364
    %v5782 = vunpack.c.l.b16 %v5365
    %v5783 = vunpack.c.l.b16 %v5366
    %v5784 = vunpack.c.l.b16 %v5367
    %v5785 = vunpack.c.l.b16 %v5368
    %v5786 = vunpack.c.l.b16 %v5369
    %v5787 = vunpack.c.l.b16 %v5370
    %v5788 = vunpack.c.l.b16 %v5371
    %v5789 = vunpack.c.l.b16 %v5372
    %v5790 = vunpack.c.l.b16 %v5373
    %v5791 = vunpack.c.l.b16 %v5374
    %v5792 = vunpack.c.l.b16 %v5375
    %v5793 = vunpack.c.l.b16 %v5376
    %v5794 = vunpack.c.l.b16 %v5377
    %v5795 = vunpack.c.l.b16 %v5378
    %v5796 = vunpack.c.l.b16 %v5379
    %v5797 = vunpack.c.l.b16 %v5380
    %v5798 = vunpack.c.l.b16 %v5381
    %v5799 = vunpack.c.l.b16 %v5382
    %v5800 = vunpack.c.l.b16 %v5383
    %v5801 = vunpack.c.l.b16 %v5384
    %v5802 = vunpack.c.l.b16 %v5385
    %v5803 = vunpack.c.l.b16 %v5386
    %v5804 = vunpack.c.l.b16 %v5387
    %v5805 = vunpack.c.l.b16 %v5388
    %v5806 = vunpack.c.l.b16 %v5389
    %v5807 = vunpack.c.l.b16 %v5390
    %v5808 = vunpack.c.l.b16 %v5391
    %v5809 = vunpack.c.l.b16 %v5392
    %v5810 = vunpack.c.l.b16 %v5393
    %v5811 = vunpack.c.l.b16 %v5394
    %v5812 = vunpack.c.l.b16 %v5395
    %v5813 = vpack.c.b16 %v5766, %v5765
    %v5814 = vpack.c.b16 %v5768, %v5767
    %v5815 = vpack.c.b16 %v5770, %v5769
    %v5816 = vpack.c.b16 %v5772, %v5771
    %v5817 = vpack.c.b16 %v5774, %v5773
    %v5818 = vpack.c.b16 %v5776, %v5775
    %v5819 = vpack.c.b16 %v5778, %v5777
    %v5820 = vpack.c.b16 %v5780, %v5779
    %v5821 = vpack.c.b16 %v5782, %v5781
    %v5822 = vpack.c.b16 %v5784, %v5783
    %v5823 = vpack.c.b16 %v5786, %v5785
    %v5824 = vpack.c.b16 %v5788, %v5787
    %v5825 = vpack.c.b16 %v5790, %v5789
    %v5826 = vpack.c.b16 %v5792, %v5791
    %v5827 = vpack.c.b16 %v5794, %v5793
    %v5828 = vpack.c.b16 %v5796, %v5795
    %v5829 = vpack.c.b16 %v5798, %v5797
    %v5830 = vpack.c.b16 %v5800, %v5799
    %v5831 = vpack.c.b16 %v5802, %v5801
    %v5832 = vpack.c.b16 %v5804, %v5803
    %v5833 = vpack.c.b16 %v5806, %v5805
    %v5834 = vpack.c.b16 %v5808, %v5807
    %v5835 = vpack.c.b16 %v5810, %v5809
    %v5836 = vpack.c.b16 %v5812, %v5811
    %5861 = vmatprep.subr.bf16.mxu0 0
    %5862 = vmatpush1.bf16.msra.mxu0 %v5813
    %5863 = vmatprep.subr.bf16.mxu0 0
    %5864 = vmatpush1.bf16.msra.mxu0 %v5814
    %5865 = vmatprep.subr.bf16.mxu0 0
    %5866 = vmatpush1.bf16.msra.mxu0 %v5815
    %5867 = vmatprep.subr.bf16.mxu0 0
    %5868 = vmatpush1.bf16.msra.mxu0 %v5816
    %5869 = vmatprep.subr.bf16.mxu0 0
    %5870 = vmatpush1.bf16.msra.mxu0 %v5817
    %5871 = vmatprep.subr.bf16.mxu0 0
    %5872 = vmatpush1.bf16.msra.mxu0 %v5818
    %5873 = vmatprep.subr.bf16.mxu0 0
    %5874 = vmatpush1.bf16.msra.mxu0 %v5819
    %5875 = vmatprep.subr.bf16.mxu0 0
    %5876 = vmatpush1.bf16.msra.mxu0 %v5820
    %5877 = vmatprep.subr.bf16.mxu0 0
    %5878 = vmatpush1.bf16.msra.mxu0 %v5821
    %5879 = vmatprep.subr.bf16.mxu0 0
    %5880 = vmatpush1.bf16.msra.mxu0 %v5822
    %5881 = vmatprep.subr.bf16.mxu0 0
    %5882 = vmatpush1.bf16.msra.mxu0 %v5823
    %5883 = vmatprep.subr.bf16.mxu0 0
    %5884 = vmatpush1.bf16.msra.mxu0 %v5824
    %5885 = vmatprep.subr.bf16.mxu0 0
    %5886 = vmatpush1.bf16.msra.mxu0 %v5825
    %5887 = vmatprep.subr.bf16.mxu0 0
    %5888 = vmatpush1.bf16.msra.mxu0 %v5826
    %5889 = vmatprep.subr.bf16.mxu0 0
    %5890 = vmatpush1.bf16.msra.mxu0 %v5827
    %5891 = vmatprep.subr.bf16.mxu0 0
    %5892 = vmatpush1.bf16.msra.mxu0 %v5828
    %5893 = vmatprep.mubr.bf16.mxu0 %v5340
    %5894 = vmatmul.mubr.bf16.gmra.mrb[0].mxu0 %v5339
    %v5895 = vpop.f32.mrb[0].mxu0
    %v5896 = vadd.f32 %v5703, %v5895
    %v5897 = vpop.f32.mrb[0].mxu0
    %v5898 = vpop.f32.mrb[0].mxu0
    %v5899 = vadd.f32 %v5706, %v5898
    %v5900 = vpop.f32.mrb[0].mxu0
    %5901 = vmatprep.mubr.bf16.mxu0 %v5343
    %5902 = vmatmul.mubr.bf16.gmra.mrb[0].mxu0 %v5342
    %v5903 = vpop.f32.mrb[0].mxu0
    %v5904 = vadd.f32 %v5711, %v5903
    %v5905 = vpop.f32.mrb[0].mxu0
    %v5906 = vpop.f32.mrb[0].mxu0
    %v5907 = vadd.f32 %v5714, %v5906
    %v5908 = vpop.f32.mrb[0].mxu0
    %5909 = vdwg.mxu0
    %5910 = vmatprep.subr.bf16.mxu0 0
    %5911 = vmatpush1.bf16.msra.mxu0 %v5829
    %5912 = vmatprep.subr.bf16.mxu0 0
    %5913 = vmatpush1.bf16.msra.mxu0 %v5830
    %5914 = vmatprep.subr.bf16.mxu0 0
    %5915 = vmatpush1.bf16.msra.mxu0 %v5831
    %5916 = vmatprep.subr.bf16.mxu0 0
    %5917 = vmatpush1.bf16.msra.mxu0 %v5832
    %5918 = vmatprep.subr.bf16.mxu0 0
    %5919 = vmatpush1.bf16.msra.mxu0 %v5833
    %5920 = vmatprep.subr.bf16.mxu0 0
    %5921 = vmatpush1.bf16.msra.mxu0 %v5834
    %5922 = vmatprep.subr.bf16.mxu0 0
    %5923 = vmatpush1.bf16.msra.mxu0 %v5835
    %5924 = vmatprep.subr.bf16.mxu0 0
    %5925 = vmatpush1.bf16.msra.mxu0 %v5836
    %5926 = vmatprep.subr.bf16.mxu0 0
    %5927 = vmatpush1.bf16.msra.mxu0 0
    %5928 = vmatprep.subr.bf16.mxu0 0
    %5929 = vmatpush1.bf16.msra.mxu0 0
    %5930 = vmatprep.subr.bf16.mxu0 0
    %5931 = vmatpush1.bf16.msra.mxu0 0
    %5932 = vmatprep.subr.bf16.mxu0 0
    %5933 = vmatpush1.bf16.msra.mxu0 0
    %5934 = vmatprep.subr.bf16.mxu0 0
    %5935 = vmatpush1.bf16.msra.mxu0 0
    %5936 = vmatprep.subr.bf16.mxu0 0
    %5937 = vmatpush1.bf16.msra.mxu0 0
    %5938 = vmatprep.subr.bf16.mxu0 0
    %5939 = vmatpush1.bf16.msra.mxu0 0
    %5940 = vmatprep.subr.bf16.mxu0 0
    %5941 = vmatpush1.bf16.msra.mxu0 0
    %5942 = vmatprep.mubr.bf16.mxu0 0
    %5943 = vmatmul.mubr.bf16.gmra.mrb[0].mxu0 %v5341
    %v5944 = vpop.f32.mrb[0].mxu0
    %v5945 = vadd.f32 %v5896, %v5944
    %v5946 = vpop.f32.mrb[0].mxu0
    %v5947 = vpop.f32.mrb[0].mxu0
    %v5948 = vadd.f32 %v5899, %v5947
    %v5949 = vpop.f32.mrb[0].mxu0
    %5950 = vmatprep.mubr.bf16.mxu0 0
    %5951 = vmatmul.mubr.bf16.gmra.mrb[0].mxu0 %v5344
    %v5952 = vpop.f32.mrb[0].mxu0
    %v5953 = vadd.f32 %v5904, %v5952
    %v5954 = vpop.f32.mrb[0].mxu0
    %v5955 = vpop.f32.mrb[0].mxu0
    %v5956 = vadd.f32 %v5907, %v5955
    %v5957 = vpop.f32.mrb[0].mxu0
    %5958 = vdwg.mxu0
    %s5959 = scalar_lea.vmem %s5, 384
    %v5960 = vld [vmem:[%s5959] sm:$0xf]
    %v5961 = vld [vmem:[%s5959 + $0x4] sm:$0xf]
    %v5962 = vld [vmem:[%s5959 + $0x8] sm:$0xf]
    %v5963 = vld [vmem:[%s5959 + $0xc] sm:$0xf]
    %v5964 = vld [vmem:[%s5959 + $0x10] sm:$0xf]
    %v5965 = vld [vmem:[%s5959 + $0x14] sm:$0xf]
    %v5966 = vld [vmem:[%s5959 + $0x18] sm:$0xf]
    %v5967 = vld [vmem:[%s5959 + $0x1c] sm:$0xf]
    %v5968 = vld [vmem:[%s5959 + $0x20] sm:$0xf]
    %v5969 = vld [vmem:[%s5959 + $0x24] sm:$0xf]
    %v5970 = vld [vmem:[%s5959 + $0x28] sm:$0xf]
    %v5971 = vld [vmem:[%s5959 + $0x2c] sm:$0xf]
    %v5972 = vld [vmem:[%s5959 + $0x30] sm:$0xf]
    %v5973 = vld [vmem:[%s5959 + $0x34] sm:$0xf]
    %v5974 = vld [vmem:[%s5959 + $0x38] sm:$0xf]
    %v5975 = vld [vmem:[%s5959 + $0x3c] sm:$0xf]
    %v5976 = vld [vmem:[%s5959 + $0x40] sm:$0xf]
    %v5977 = vld [vmem:[%s5959 + $0x44] sm:$0xf]
    %v5978 = vld [vmem:[%s5959 + $0x48] sm:$0xf]
    %v5979 = vld [vmem:[%s5959 + $0x4c] sm:$0xf]
    %v5980 = vld [vmem:[%s5959 + $0x50] sm:$0xf]
    %v5981 = vld [vmem:[%s5959 + $0x54] sm:$0xf]
    %v5982 = vld [vmem:[%s5959 + $0x58] sm:$0xf]
    %v5983 = vld [vmem:[%s5959 + $0x5c] sm:$0xf]
    %v5984 = vld [vmem:[%s5959 + $0x60] sm:$0xf]
    %v5985 = vld [vmem:[%s5959 + $0x64] sm:$0xf]
    %v5986 = vld [vmem:[%s5959 + $0x68] sm:$0xf]
    %v5987 = vld [vmem:[%s5959 + $0x6c] sm:$0xf]
    %v5988 = vld [vmem:[%s5959 + $0x70] sm:$0xf]
    %v5989 = vld [vmem:[%s5959 + $0x74] sm:$0xf]
    %v5990 = vld [vmem:[%s5959 + $0x78] sm:$0xf]
    %v5991 = vld [vmem:[%s5959 + $0x7c] sm:$0xf]
    %v5992 = vld [vmem:[%s5959 + $0x80] sm:$0xf]
    %v5993 = vld [vmem:[%s5959 + $0x84] sm:$0xf]
    %v5994 = vld [vmem:[%s5959 + $0x88] sm:$0xf]
    %v5995 = vld [vmem:[%s5959 + $0x8c] sm:$0xf]
    %v5996 = vld [vmem:[%s5959 + $0x90] sm:$0xf]
    %v5997 = vld [vmem:[%s5959 + $0x94] sm:$0xf]
    %v5998 = vld [vmem:[%s5959 + $0x98] sm:$0xf]
    %v5999 = vld [vmem:[%s5959 + $0x9c] sm:$0xf]
    %v6000 = vld [vmem:[%s5959 + $0xa0] sm:$0xf]
    %v6001 = vld [vmem:[%s5959 + $0xa4] sm:$0xf]
    %v6002 = vld [vmem:[%s5959 + $0xa8] sm:$0xf]
    %v6003 = vld [vmem:[%s5959 + $0xac] sm:$0xf]
    %v6004 = vld [vmem:[%s5959 + $0xb0] sm:$0xf]
    %v6005 = vld [vmem:[%s5959 + $0xb4] sm:$0xf]
    %v6006 = vld [vmem:[%s5959 + $0xb8] sm:$0xf]
    %v6007 = vld [vmem:[%s5959 + $0xbc] sm:$0xf]
    %v6056 = vunpack.c.l.b16 %v5960
    %v6057 = vunpack.c.l.b16 %v5961
    %v6058 = vunpack.c.l.b16 %v5962
    %v6059 = vunpack.c.l.b16 %v5963
    %v6060 = vunpack.c.l.b16 %v5964
    %v6061 = vunpack.c.l.b16 %v5965
    %v6062 = vunpack.c.l.b16 %v5966
    %v6063 = vunpack.c.l.b16 %v5967
    %v6064 = vunpack.c.l.b16 %v5968
    %v6065 = vunpack.c.l.b16 %v5969
    %v6066 = vunpack.c.l.b16 %v5970
    %v6067 = vunpack.c.l.b16 %v5971
    %v6068 = vunpack.c.l.b16 %v5972
    %v6069 = vunpack.c.l.b16 %v5973
    %v6070 = vunpack.c.l.b16 %v5974
    %v6071 = vunpack.c.l.b16 %v5975
    %v6072 = vunpack.c.l.b16 %v5976
    %v6073 = vunpack.c.l.b16 %v5977
    %v6074 = vunpack.c.l.b16 %v5978
    %v6075 = vunpack.c.l.b16 %v5979
    %v6076 = vunpack.c.l.b16 %v5980
    %v6077 = vunpack.c.l.b16 %v5981
    %v6078 = vunpack.c.l.b16 %v5982
    %v6079 = vunpack.c.l.b16 %v5983
    %v6080 = vunpack.c.l.b16 %v5984
    %v6081 = vunpack.c.l.b16 %v5985
    %v6082 = vunpack.c.l.b16 %v5986
    %v6083 = vunpack.c.l.b16 %v5987
    %v6084 = vunpack.c.l.b16 %v5988
    %v6085 = vunpack.c.l.b16 %v5989
    %v6086 = vunpack.c.l.b16 %v5990
    %v6087 = vunpack.c.l.b16 %v5991
    %v6088 = vunpack.c.l.b16 %v5992
    %v6089 = vunpack.c.l.b16 %v5993
    %v6090 = vunpack.c.l.b16 %v5994
    %v6091 = vunpack.c.l.b16 %v5995
    %v6092 = vunpack.c.l.b16 %v5996
    %v6093 = vunpack.c.l.b16 %v5997
    %v6094 = vunpack.c.l.b16 %v5998
    %v6095 = vunpack.c.l.b16 %v5999
    %v6096 = vunpack.c.l.b16 %v6000
    %v6097 = vunpack.c.l.b16 %v6001
    %v6098 = vunpack.c.l.b16 %v6002
    %v6099 = vunpack.c.l.b16 %v6003
    %v6100 = vunpack.c.l.b16 %v6004
    %v6101 = vunpack.c.l.b16 %v6005
    %v6102 = vunpack.c.l.b16 %v6006
    %v6103 = vunpack.c.l.b16 %v6007
    %v6104 = vpack.c.b16 %v6057, %v6056
    %v6105 = vpack.c.b16 %v6059, %v6058
    %v6106 = vpack.c.b16 %v6061, %v6060
    %v6107 = vpack.c.b16 %v6063, %v6062
    %v6108 = vpack.c.b16 %v6065, %v6064
    %v6109 = vpack.c.b16 %v6067, %v6066
    %v6110 = vpack.c.b16 %v6069, %v6068
    %v6111 = vpack.c.b16 %v6071, %v6070
    %v6112 = vpack.c.b16 %v6073, %v6072
    %v6113 = vpack.c.b16 %v6075, %v6074
    %v6114 = vpack.c.b16 %v6077, %v6076
    %v6115 = vpack.c.b16 %v6079, %v6078
    %v6116 = vpack.c.b16 %v6081, %v6080
    %v6117 = vpack.c.b16 %v6083, %v6082
    %v6118 = vpack.c.b16 %v6085, %v6084
    %v6119 = vpack.c.b16 %v6087, %v6086
    %v6120 = vpack.c.b16 %v6089, %v6088
    %v6121 = vpack.c.b16 %v6091, %v6090
    %v6122 = vpack.c.b16 %v6093, %v6092
    %v6123 = vpack.c.b16 %v6095, %v6094
    %v6124 = vpack.c.b16 %v6097, %v6096
    %v6125 = vpack.c.b16 %v6099, %v6098
    %v6126 = vpack.c.b16 %v6101, %v6100
    %v6127 = vpack.c.b16 %v6103, %v6102
    %6152 = vmatprep.subr.bf16.mxu0 0
    %6153 = vmatpush1.bf16.msra.mxu0 %v6104
    %6154 = vmatprep.subr.bf16.mxu0 0
    %6155 = vmatpush1.bf16.msra.mxu0 %v6105
    %6156 = vmatprep.subr.bf16.mxu0 0
    %6157 = vmatpush1.bf16.msra.mxu0 %v6106
    %6158 = vmatprep.subr.bf16.mxu0 0
    %6159 = vmatpush1.bf16.msra.mxu0 %v6107
    %6160 = vmatprep.subr.bf16.mxu0 0
    %6161 = vmatpush1.bf16.msra.mxu0 %v6108
    %6162 = vmatprep.subr.bf16.mxu0 0
    %6163 = vmatpush1.bf16.msra.mxu0 %v6109
    %6164 = vmatprep.subr.bf16.mxu0 0
    %6165 = vmatpush1.bf16.msra.mxu0 %v6110
    %6166 = vmatprep.subr.bf16.mxu0 0
    %6167 = vmatpush1.bf16.msra.mxu0 %v6111
    %6168 = vmatprep.subr.bf16.mxu0 0
    %6169 = vmatpush1.bf16.msra.mxu0 %v6112
    %6170 = vmatprep.subr.bf16.mxu0 0
    %6171 = vmatpush1.bf16.msra.mxu0 %v6113
    %6172 = vmatprep.subr.bf16.mxu0 0
    %6173 = vmatpush1.bf16.msra.mxu0 %v6114
    %6174 = vmatprep.subr.bf16.mxu0 0
    %6175 = vmatpush1.bf16.msra.mxu0 %v6115
    %6176 = vmatprep.subr.bf16.mxu0 0
    %6177 = vmatpush1.bf16.msra.mxu0 %v6116
    %6178 = vmatprep.subr.bf16.mxu0 0
    %6179 = vmatpush1.bf16.msra.mxu0 %v6117
    %6180 = vmatprep.subr.bf16.mxu0 0
    %6181 = vmatpush1.bf16.msra.mxu0 %v6118
    %6182 = vmatprep.subr.bf16.mxu0 0
    %6183 = vmatpush1.bf16.msra.mxu0 %v6119
    %6184 = vmatprep.mubr.bf16.mxu0 %v5343
    %6185 = vmatmul.mubr.bf16.gmra.mrb[0].mxu0 %v5342
    %v6186 = vpop.f32.mrb[0].mxu0
    %v6187 = vadd.f32 0.0, %v6186
    %v6188 = vpop.f32.mrb[0].mxu0
    %v6189 = vpop.f32.mrb[0].mxu0
    %v6190 = vadd.f32 0.0, %v6189
    %v6191 = vpop.f32.mrb[0].mxu0
    %6192 = vmatprep.mubr.bf16.mxu0 %v5346
    %6193 = vmatmul.mubr.bf16.gmra.mrb[0].mxu0 %v5345
    %v6194 = vpop.f32.mrb[0].mxu0
    %v6195 = vadd.f32 0.0, %v6194
    %v6196 = vpop.f32.mrb[0].mxu0
    %v6197 = vpop.f32.mrb[0].mxu0
    %v6198 = vadd.f32 0.0, %v6197
    %v6199 = vpop.f32.mrb[0].mxu0
    %6200 = vdwg.mxu0
    %6201 = vmatprep.subr.bf16.mxu0 0
    %6202 = vmatpush1.bf16.msra.mxu0 %v6120
    %6203 = vmatprep.subr.bf16.mxu0 0
    %6204 = vmatpush1.bf16.msra.mxu0 %v6121
    %6205 = vmatprep.subr.bf16.mxu0 0
    %6206 = vmatpush1.bf16.msra.mxu0 %v6122
    %6207 = vmatprep.subr.bf16.mxu0 0
    %6208 = vmatpush1.bf16.msra.mxu0 %v6123
    %6209 = vmatprep.subr.bf16.mxu0 0
    %6210 = vmatpush1.bf16.msra.mxu0 %v6124
    %6211 = vmatprep.subr.bf16.mxu0 0
    %6212 = vmatpush1.bf16.msra.mxu0 %v6125
    %6213 = vmatprep.subr.bf16.mxu0 0
    %6214 = vmatpush1.bf16.msra.mxu0 %v6126
    %6215 = vmatprep.subr.bf16.mxu0 0
    %6216 = vmatpush1.bf16.msra.mxu0 %v6127
    %6217 = vmatprep.subr.bf16.mxu0 0
    %6218 = vmatpush1.bf16.msra.mxu0 0
    %6219 = vmatprep.subr.bf16.mxu0 0
    %6220 = vmatpush1.bf16.msra.mxu0 0
    %6221 = vmatprep.subr.bf16.mxu0 0
    %6222 = vmatpush1.bf16.msra.mxu0 0
    %6223 = vmatprep.subr.bf16.mxu0 0
    %6224 = vmatpush1.bf16.msra.mxu0 0
    %6225 = vmatprep.subr.bf16.mxu0 0
    %6226 = vmatpush1.bf16.msra.mxu0 0
    %6227 = vmatprep.subr.bf16.mxu0 0
    %6228 = vmatpush1.bf16.msra.mxu0 0
    %6229 = vmatprep.subr.bf16.mxu0 0
    %6230 = vmatpush1.bf16.msra.mxu0 0
    %6231 = vmatprep.subr.bf16.mxu0 0
    %6232 = vmatpush1.bf16.msra.mxu0 0
    %6233 = vmatprep.mubr.bf16.mxu0 0
    %6234 = vmatmul.mubr.bf16.gmra.mrb[0].mxu0 %v5344
    %v6235 = vpop.f32.mrb[0].mxu0
    %v6236 = vadd.f32 %v6187, %v6235
    %v6237 = vpop.f32.mrb[0].mxu0
    %v6238 = vpop.f32.mrb[0].mxu0
    %v6239 = vadd.f32 %v6190, %v6238
    %v6240 = vpop.f32.mrb[0].mxu0
    %6241 = vmatprep.mubr.bf16.mxu0 0
    %6242 = vmatmul.mubr.bf16.gmra.mrb[0].mxu0 %v5347
    %v6243 = vpop.f32.mrb[0].mxu0
    %v6244 = vadd.f32 %v6195, %v6243
    %v6245 = vpop.f32.mrb[0].mxu0
    %v6246 = vpop.f32.mrb[0].mxu0
    %v6247 = vadd.f32 %v6198, %v6246
    %v6248 = vpop.f32.mrb[0].mxu0
    %6249 = vdwg.mxu0
    %v6250 = vadd.f32 %v5945, %v6236
    %v6251 = vadd.f32 %v5948, %v6239
    %v6252 = vadd.f32 %v5953, %v6244
    %v6253 = vadd.f32 %v5956, %v6247
    %v6254 = vld [vmem:[#allocation7] sm:$0x1]
    %v6256 = vlaneseq
    %v6257 = vshrl.u32 %v6256, 7
    %v6258 = vsub.s32 0, %v6257
    %v6259 = vrot.slane %v6254, %v6258
    %v6261 = vadd.f32 %v6250, %v6259
    %v6262 = vadd.f32 %v6251, %v6259
    %v6263 = vadd.f32 %v6252, %v6259
    %v6264 = vadd.f32 %v6253, %v6259
    %vm6265 = vcmp.ge.f32.partialorder %v6261, 0.0
    %vm6266 = vcmp.ge.f32.partialorder %v6262, 0.0
    %vm6267 = vcmp.ge.f32.partialorder %v6263, 0.0
    %vm6268 = vcmp.ge.f32.partialorder %v6264, 0.0
    %v6269 = vmul.f32 %v6261, 0.01
    %v6270 = vmul.f32 %v6262, 0.01
    %v6271 = vmul.f32 %v6263, 0.01
    %v6272 = vmul.f32 %v6264, 0.01
    %v6273 = vsel %vm6265, %v6261, %v6269
    %v6274 = vsel %vm6266, %v6262, %v6270
    %v6275 = vsel %vm6267, %v6263, %v6271
    %v6276 = vsel %vm6268, %v6264, %v6272
    %v6277 = vpack.c.bf16 %v6274, %v6273
    %v6278 = vpack.c.bf16 %v6276, %v6275
    %v6279 = vld [vmem:[%s7] sm:$0xf]
    %v6280 = vld [vmem:[%s7 + $0x4] sm:$0xf]
    %v6281 = vld [vmem:[%s7 + $0x8] sm:$0xf]
    %v6282 = vld [vmem:[%s7 + $0xc] sm:$0xf]
    %v6283 = vld [vmem:[%s7 + $0x10] sm:$0xf]
    %v6284 = vld [vmem:[%s7 + $0x14] sm:$0xf]
    %v6285 = vld [vmem:[%s7 + $0x18] sm:$0xf]
    %v6286 = vld [vmem:[%s7 + $0x1c] sm:$0xf]
    %v6287 = vld [vmem:[#allocation9] sm:$0x1]
    %v6289 = vlaneseq
    %v6290 = vshrl.u32 %v6289, 7
    %v6291 = vsub.s32 0, %v6290
    %v6292 = vrot.slane %v6287, %v6291
    %v6302 = vunpack.c.l.b16 %v6279
    %v6303 = vunpack.c.l.b16 %v6280
    %v6304 = vunpack.c.l.b16 %v6281
    %v6305 = vunpack.c.l.b16 %v6282
    %v6306 = vunpack.c.l.b16 %v6283
    %v6307 = vunpack.c.l.b16 %v6284
    %v6308 = vunpack.c.l.b16 %v6285
    %v6309 = vunpack.c.l.b16 %v6286
    %v6310 = vpack.c.b16 %v6303, %v6302
    %v6311 = vpack.c.b16 %v6305, %v6304
    %v6312 = vpack.c.b16 %v6307, %v6306
    %v6313 = vpack.c.b16 %v6309, %v6308
    %v6319 = vsel %vm2434, %v6277, 0
    %v6322 = vsel %vm2434, %v6278, 0
    %6324 = vmatprep.subr.bf16.mxu0 0
    %6325 = vmatpush1.bf16.msra.mxu0 %v6310
    %6326 = vmatprep.subr.bf16.mxu0 0
    %6327 = vmatpush1.bf16.msra.mxu0 %v6311
    %6328 = vmatprep.subr.bf16.mxu0 0
    %6329 = vmatpush1.bf16.msra.mxu0 %v6312
    %6330 = vmatprep.subr.bf16.mxu0 0
    %6331 = vmatpush1.bf16.msra.mxu0 %v6313
    %6332 = vmatprep.subr.bf16.mxu0 0
    %6333 = vmatpush1.bf16.msra.mxu0 0
    %6334 = vmatprep.subr.bf16.mxu0 0
    %6335 = vmatpush1.bf16.msra.mxu0 0
    %6336 = vmatprep.subr.bf16.mxu0 0
    %6337 = vmatpush1.bf16.msra.mxu0 0
    %6338 = vmatprep.subr.bf16.mxu0 0
    %6339 = vmatpush1.bf16.msra.mxu0 0
    %6340 = vmatprep.subr.bf16.mxu0 0
    %6341 = vmatpush1.bf16.msra.mxu0 0
    %6342 = vmatprep.subr.bf16.mxu0 0
    %6343 = vmatpush1.bf16.msra.mxu0 0
    %6344 = vmatprep.subr.bf16.mxu0 0
    %6345 = vmatpush1.bf16.msra.mxu0 0
    %6346 = vmatprep.subr.bf16.mxu0 0
    %6347 = vmatpush1.bf16.msra.mxu0 0
    %6348 = vmatprep.subr.bf16.mxu0 0
    %6349 = vmatpush1.bf16.msra.mxu0 0
    %6350 = vmatprep.subr.bf16.mxu0 0
    %6351 = vmatpush1.bf16.msra.mxu0 0
    %6352 = vmatprep.subr.bf16.mxu0 0
    %6353 = vmatpush1.bf16.msra.mxu0 0
    %6354 = vmatprep.subr.bf16.mxu0 0
    %6355 = vmatpush1.bf16.msra.mxu0 0
    %6356 = vmatprep.mubr.bf16.mxu0 0
    %6357 = vmatmul.mubr.bf16.gmra.mrb[0].mxu0 %v6319
    %v6358 = vpop.f32.mrb[0].mxu0
    %v6359 = vadd.f32 %v6292, %v6358
    %v6360 = vpop.f32.mrb[0].mxu0
    %v6361 = vpop.f32.mrb[0].mxu0
    %v6362 = vadd.f32 %v6292, %v6361
    %v6363 = vpop.f32.mrb[0].mxu0
    %6364 = vmatprep.mubr.bf16.mxu0 0
    %6365 = vmatmul.mubr.bf16.gmra.mrb[0].mxu0 %v6322
    %v6366 = vpop.f32.mrb[0].mxu0
    %v6367 = vadd.f32 %v6292, %v6366
    %v6368 = vpop.f32.mrb[0].mxu0
    %v6369 = vpop.f32.mrb[0].mxu0
    %v6370 = vadd.f32 %v6292, %v6369
    %v6371 = vpop.f32.mrb[0].mxu0
    %6372 = vdwg.mxu0
    %vm6373 = vcmp.ge.f32.partialorder %v6359, 0.0
    %vm6374 = vcmp.ge.f32.partialorder %v6362, 0.0
    %vm6375 = vcmp.ge.f32.partialorder %v6367, 0.0
    %vm6376 = vcmp.ge.f32.partialorder %v6370, 0.0
    %v6377 = vmul.f32 %v6359, 0.01
    %v6378 = vmul.f32 %v6362, 0.01
    %v6379 = vmul.f32 %v6367, 0.01
    %v6380 = vmul.f32 %v6370, 0.01
    %v6381 = vsel %vm6373, %v6359, %v6377
    %v6382 = vsel %vm6374, %v6362, %v6378
    %v6383 = vsel %vm6375, %v6367, %v6379
    %v6384 = vsel %vm6376, %v6370, %v6380
    %v6385 = vpack.c.bf16 %v6382, %v6381
    %v6386 = vpack.c.bf16 %v6384, %v6383
    %v6387 = vld [vmem:[#allocation10] sm:$0xf]
    %v6388 = vld [vmem:[#allocation10 + $0x4] sm:$0xf]
    %v6389 = vld [vmem:[#allocation12] sm:$0x1]
    %vm6390 = vcmask 31744
    %v6392 = vsel %vm6390, %v6385, 0
    %vm6394 = vcmask 1041408
    %v6396 = vsel %vm6394, %v6387, 0
    %6398 = vmatprep.subr.bf16.mxu0 0
    %6399 = vmatpush1.bf16.msra.mxu0 %v6396
    %6400 = vmatprep.subr.bf16.mxu0 0
    %6401 = vmatpush1.bf16.msra.mxu0 0
    %6402 = vmatprep.subr.bf16.mxu0 0
    %6403 = vmatpush1.bf16.msra.mxu0 0
    %6404 = vmatprep.subr.bf16.mxu0 0
    %6405 = vmatpush1.bf16.msra.mxu0 0
    %6406 = vmatprep.subr.bf16.mxu0 0
    %6407 = vmatpush1.bf16.msra.mxu0 0
    %6408 = vmatprep.subr.bf16.mxu0 0
    %6409 = vmatpush1.bf16.msra.mxu0 0
    %6410 = vmatprep.subr.bf16.mxu0 0
    %6411 = vmatpush1.bf16.msra.mxu0 0
    %6412 = vmatprep.subr.bf16.mxu0 0
    %6413 = vmatpush1.bf16.msra.mxu0 0
    %6414 = vmatprep.subr.bf16.mxu0 0
    %6415 = vmatpush1.bf16.msra.mxu0 0
    %6416 = vmatprep.subr.bf16.mxu0 0
    %6417 = vmatpush1.bf16.msra.mxu0 0
    %6418 = vmatprep.subr.bf16.mxu0 0
    %6419 = vmatpush1.bf16.msra.mxu0 0
    %6420 = vmatprep.subr.bf16.mxu0 0
    %6421 = vmatpush1.bf16.msra.mxu0 0
    %6422 = vmatprep.subr.bf16.mxu0 0
    %6423 = vmatpush1.bf16.msra.mxu0 0
    %6424 = vmatprep.subr.bf16.mxu0 0
    %6425 = vmatpush1.bf16.msra.mxu0 0
    %6426 = vmatprep.subr.bf16.mxu0 0
    %6427 = vmatpush1.bf16.msra.mxu0 0
    %6428 = vmatprep.subr.bf16.mxu0 0
    %6429 = vmatpush1.bf16.msra.mxu0 0
    %6430 = vmatprep.mubr.bf16.mxu0 0
    %6431 = vmatmul.mubr.bf16.gmra.mrb[0].mxu0 %v6392
    %v6432 = vpop.f32.mrb[0].mxu0
    %v6433 = vadd.f32 0.0, %v6432
    %v6434 = vpop.f32.mrb[0].mxu0
    %v6435 = vpop.f32.mrb[0].mxu0
    %v6436 = vpop.f32.mrb[0].mxu0
    %6437 = vdwg.mxu0
    %v6439 = vlaneseq
    %v6440 = vshrl.u32 %v6439, 7
    %v6441 = vsub.s32 0, %v6440
    %v6442 = vrot.slane %v6389, %v6441
    %v6444 = vadd.f32 %v6442, %v6433
    %v6446 = vrot.slane %v6385, 4
    %v6448 = vunpack.c.l.b16 %v6387
    %v6449 = vpack.c.b16 %v6448, %v6448
    %v6450 = vrot.slane %v6449, 2
    %v6452 = vsel %vm6390, %v6446, 0
    %v6455 = vsel %vm6394, %v6450, 0
    %6457 = vmatprep.subr.bf16.mxu0 0
    %6458 = vmatpush1.bf16.msra.mxu0 %v6455
    %6459 = vmatprep.subr.bf16.mxu0 0
    %6460 = vmatpush1.bf16.msra.mxu0 0
    %6461 = vmatprep.subr.bf16.mxu0 0
    %6462 = vmatpush1.bf16.msra.mxu0 0
    %6463 = vmatprep.subr.bf16.mxu0 0
    %6464 = vmatpush1.bf16.msra.mxu0 0
    %6465 = vmatprep.subr.bf16.mxu0 0
    %6466 = vmatpush1.bf16.msra.mxu0 0
    %6467 = vmatprep.subr.bf16.mxu0 0
    %6468 = vmatpush1.bf16.msra.mxu0 0
    %6469 = vmatprep.subr.bf16.mxu0 0
    %6470 = vmatpush1.bf16.msra.mxu0 0
    %6471 = vmatprep.subr.bf16.mxu0 0
    %6472 = vmatpush1.bf16.msra.mxu0 0
    %6473 = vmatprep.subr.bf16.mxu0 0
    %6474 = vmatpush1.bf16.msra.mxu0 0
    %6475 = vmatprep.subr.bf16.mxu0 0
    %6476 = vmatpush1.bf16.msra.mxu0 0
    %6477 = vmatprep.subr.bf16.mxu0 0
    %6478 = vmatpush1.bf16.msra.mxu0 0
    %6479 = vmatprep.subr.bf16.mxu0 0
    %6480 = vmatpush1.bf16.msra.mxu0 0
    %6481 = vmatprep.subr.bf16.mxu0 0
    %6482 = vmatpush1.bf16.msra.mxu0 0
    %6483 = vmatprep.subr.bf16.mxu0 0
    %6484 = vmatpush1.bf16.msra.mxu0 0
    %6485 = vmatprep.subr.bf16.mxu0 0
    %6486 = vmatpush1.bf16.msra.mxu0 0
    %6487 = vmatprep.subr.bf16.mxu0 0
    %6488 = vmatpush1.bf16.msra.mxu0 0
    %6489 = vmatprep.mubr.bf16.mxu0 0
    %6490 = vmatmul.mubr.bf16.gmra.mrb[0].mxu0 %v6452
    %v6491 = vpop.f32.mrb[0].mxu0
    %v6492 = vadd.f32 0.0, %v6491
    %v6493 = vpop.f32.mrb[0].mxu0
    %v6494 = vpop.f32.mrb[0].mxu0
    %v6495 = vpop.f32.mrb[0].mxu0
    %6496 = vdwg.mxu0
    %v6497 = vadd.f32 %v6444, %v6492
    %v6499 = vsel %vm6390, %v6386, 0
    %v6502 = vsel %vm6394, %v6388, 0
    %6504 = vmatprep.subr.bf16.mxu0 0
    %6505 = vmatpush1.bf16.msra.mxu0 %v6502
    %6506 = vmatprep.subr.bf16.mxu0 0
    %6507 = vmatpush1.bf16.msra.mxu0 0
    %6508 = vmatprep.subr.bf16.mxu0 0
    %6509 = vmatpush1.bf16.msra.mxu0 0
    %6510 = vmatprep.subr.bf16.mxu0 0
    %6511 = vmatpush1.bf16.msra.mxu0 0
    %6512 = vmatprep.subr.bf16.mxu0 0
    %6513 = vmatpush1.bf16.msra.mxu0 0
    %6514 = vmatprep.subr.bf16.mxu0 0
    %6515 = vmatpush1.bf16.msra.mxu0 0
    %6516 = vmatprep.subr.bf16.mxu0 0
    %6517 = vmatpush1.bf16.msra.mxu0 0
    %6518 = vmatprep.subr.bf16.mxu0 0
    %6519 = vmatpush1.bf16.msra.mxu0 0
    %6520 = vmatprep.subr.bf16.mxu0 0
    %6521 = vmatpush1.bf16.msra.mxu0 0
    %6522 = vmatprep.subr.bf16.mxu0 0
    %6523 = vmatpush1.bf16.msra.mxu0 0
    %6524 = vmatprep.subr.bf16.mxu0 0
    %6525 = vmatpush1.bf16.msra.mxu0 0
    %6526 = vmatprep.subr.bf16.mxu0 0
    %6527 = vmatpush1.bf16.msra.mxu0 0
    %6528 = vmatprep.subr.bf16.mxu0 0
    %6529 = vmatpush1.bf16.msra.mxu0 0
    %6530 = vmatprep.subr.bf16.mxu0 0
    %6531 = vmatpush1.bf16.msra.mxu0 0
    %6532 = vmatprep.subr.bf16.mxu0 0
    %6533 = vmatpush1.bf16.msra.mxu0 0
    %6534 = vmatprep.subr.bf16.mxu0 0
    %6535 = vmatpush1.bf16.msra.mxu0 0
    %6536 = vmatprep.mubr.bf16.mxu0 0
    %6537 = vmatmul.mubr.bf16.gmra.mrb[0].mxu0 %v6499
    %v6538 = vpop.f32.mrb[0].mxu0
    %v6539 = vadd.f32 0.0, %v6538
    %v6540 = vpop.f32.mrb[0].mxu0
    %v6541 = vpop.f32.mrb[0].mxu0
    %v6542 = vpop.f32.mrb[0].mxu0
    %6543 = vdwg.mxu0
    %v6544 = vadd.f32 %v6497, %v6539
    %v6546 = vrot.slane %v6386, 4
    %v6548 = vunpack.c.l.b16 %v6388
    %v6549 = vpack.c.b16 %v6548, %v6548
    %v6550 = vrot.slane %v6549, 2
    %v6552 = vsel %vm6390, %v6546, 0
    %v6555 = vsel %vm6394, %v6550, 0
    %6557 = vmatprep.subr.bf16.mxu0 0
    %6558 = vmatpush1.bf16.msra.mxu0 %v6555
    %6559 = vmatprep.subr.bf16.mxu0 0
    %6560 = vmatpush1.bf16.msra.mxu0 0
    %6561 = vmatprep.subr.bf16.mxu0 0
    %6562 = vmatpush1.bf16.msra.mxu0 0
    %6563 = vmatprep.subr.bf16.mxu0 0
    %6564 = vmatpush1.bf16.msra.mxu0 0
    %6565 = vmatprep.subr.bf16.mxu0 0
    %6566 = vmatpush1.bf16.msra.mxu0 0
    %6567 = vmatprep.subr.bf16.mxu0 0
    %6568 = vmatpush1.bf16.msra.mxu0 0
    %6569 = vmatprep.subr.bf16.mxu0 0
    %6570 = vmatpush1.bf16.msra.mxu0 0
    %6571 = vmatprep.subr.bf16.mxu0 0
    %6572 = vmatpush1.bf16.msra.mxu0 0
    %6573 = vmatprep.subr.bf16.mxu0 0
    %6574 = vmatpush1.bf16.msra.mxu0 0
    %6575 = vmatprep.subr.bf16.mxu0 0
    %6576 = vmatpush1.bf16.msra.mxu0 0
    %6577 = vmatprep.subr.bf16.mxu0 0
    %6578 = vmatpush1.bf16.msra.mxu0 0
    %6579 = vmatprep.subr.bf16.mxu0 0
    %6580 = vmatpush1.bf16.msra.mxu0 0
    %6581 = vmatprep.subr.bf16.mxu0 0
    %6582 = vmatpush1.bf16.msra.mxu0 0
    %6583 = vmatprep.subr.bf16.mxu0 0
    %6584 = vmatpush1.bf16.msra.mxu0 0
    %6585 = vmatprep.subr.bf16.mxu0 0
    %6586 = vmatpush1.bf16.msra.mxu0 0
    %6587 = vmatprep.subr.bf16.mxu0 0
    %6588 = vmatpush1.bf16.msra.mxu0 0
    %6589 = vmatprep.mubr.bf16.mxu0 0
    %6590 = vmatmul.mubr.bf16.gmra.mrb[0].mxu0 %v6552
    %v6591 = vpop.f32.mrb[0].mxu0
    %v6592 = vadd.f32 0.0, %v6591
    %v6593 = vpop.f32.mrb[0].mxu0
    %v6594 = vpop.f32.mrb[0].mxu0
    %v6595 = vpop.f32.mrb[0].mxu0
    %6596 = vdwg.mxu0
    %v6597 = vadd.f32 %v6544, %v6592
    %vm6598 = vcmask 130048
    %6599 = vst.msk [vmem:[%s11] sm:$0xff] %vm6598, %v6597
    // Predicated region
    $region74: #{encoder_forward.1} parent=1 // pred_check
      _
    $region75: #{encoder_forward.1} parent=1 // pred_check_branch
      %6601 = sbr.rel (0) target = $region77
    $region76: #{encoder_forward.1} parent=1 // pred_region
      _
    $region77: #{encoder_forward.1} parent=1 // pred_fallthru
      _
    // Predicated region
    $region78: #{encoder_forward.1} parent=1 // pred_check
      _
    $region79: #{encoder_forward.1} parent=1 // pred_check_branch
      %6603 = sbr.rel (0) target = $region81
    $region80: #{encoder_forward.1} parent=1 // pred_region
      _
    $region81: #{encoder_forward.1} parent=1 // pred_fallthru
      _
    %6604 = vsyncpa [#allocation3], 1
    %6605 = vsyncpa [#allocation5], 1
    %6606 = vsyncpa [#allocation8], 1
    %6607 = vsyncpa [#allocation11], 1

</llo_original>
